<compile_context>
chip_gen: v7x
topology: tpu7x:2x2x1
jax: 0.10.0
libtpu: 0.0.40
codegen_flags: <defaults>
</compile_context>

<pallas_src>
import functools
import math

import jax
import jax.numpy as jnp
from jax.experimental import pallas as pl
from jax.experimental.pallas import tpu as pltpu

# ----------------------------- hyperparameters ------------------------------
d_model = 32
d_k = 16
d_v = 16
n_heads = 2
d_ff = 64
n_layers = 2
tgt_vocab_size = 16
src_vocab_size = 16

_LN_EPS = 1e-5
_LANES = 128
_NEG_INF = -1e9


# --------------------- static layout of the packed weight slab ---------------
def _weight_entries():
    ents = []
    for l in range(n_layers):
        ents += [
            (f"sa_wqkv_{l}", d_model, n_heads * (2 * d_k + d_v)),   # [Wq*s | Wk | Wv]
            (f"sa_wo_{l}", n_heads * d_v, d_model),
            (f"ea_wq_{l}", d_model, n_heads * d_k),
            (f"ea_wkv_{l}", d_model, n_heads * (d_k + d_v)),        # [Wk | Wv]
            (f"ea_wo_{l}", n_heads * d_v, d_model),
            (f"ff_w1_{l}", d_model, d_ff),
            (f"ff_w2_{l}", d_ff, d_model),
            (f"sa_bqkv_{l}", 1, n_heads * (2 * d_k + d_v)),
            (f"sa_bo_{l}", 1, d_model),
            (f"sa_g_{l}", 1, d_model),
            (f"sa_b_{l}", 1, d_model),
            (f"ea_bq_{l}", 1, n_heads * d_k),
            (f"ea_bkv_{l}", 1, n_heads * (d_k + d_v)),
            (f"ea_bo_{l}", 1, d_model),
            (f"ea_g_{l}", 1, d_model),
            (f"ea_b_{l}", 1, d_model),
            (f"ff_b1_{l}", 1, d_ff),
            (f"ff_b2_{l}", 1, d_model),
            (f"ff_g_{l}", 1, d_model),
            (f"ff_b_{l}", 1, d_model),
        ]
    return ents


def _compute_layout():
    layout, row = {}, 0
    for key, r, c in _weight_entries():
        layout[key] = (row, r, c)
        row += r + (-r) % 8          # every entry starts on a sublane-tile (8-row) boundary
    return layout, row


_W_LAYOUT, _W_ROWS = _compute_layout()


# ------------------------------ weight repack --------------------------------
def fuse_params(params):
    """One-time host repack: every weight/bias -> one lane-dense (R, 128) slab.

    * Q|K|V (self-attn) and K|V (enc-attn) projections are lane-concatenated so
      each is a single matmul in the kernel.
    * 1/sqrt(d_k) is folded into the Q weight/bias columns (no in-kernel scale).
    * One operand -> one HBM->VMEM DMA instead of ~24 tiny per-array DMAs.
    """
    scale = 1.0 / math.sqrt(d_k)
    t = {}
    for l, L in enumerate(params["layers"]):
        sa, ea, ff = L["self_attn"], L["enc_attn"], L["ffn"]
        t[f"sa_wqkv_{l}"] = jnp.concatenate([sa["wq"] * scale, sa["wk"], sa["wv"]], axis=1)
        t[f"sa_bqkv_{l}"] = jnp.concatenate([sa["bq"] * scale, sa["bk"], sa["bv"]])[None, :]
        t[f"sa_wo_{l}"] = sa["wo"]
        t[f"sa_bo_{l}"] = sa["bo"][None, :]
        t[f"sa_g_{l}"] = sa["ln_g"][None, :]
        t[f"sa_b_{l}"] = sa["ln_b"][None, :]
        t[f"ea_wq_{l}"] = ea["wq"] * scale
        t[f"ea_bq_{l}"] = (ea["bq"] * scale)[None, :]
        t[f"ea_wkv_{l}"] = jnp.concatenate([ea["wk"], ea["wv"]], axis=1)
        t[f"ea_bkv_{l}"] = jnp.concatenate([ea["bk"], ea["bv"]])[None, :]
        t[f"ea_wo_{l}"] = ea["wo"]
        t[f"ea_bo_{l}"] = ea["bo"][None, :]
        t[f"ea_g_{l}"] = ea["ln_g"][None, :]
        t[f"ea_b_{l}"] = ea["ln_b"][None, :]
        t[f"ff_w1_{l}"] = ff["w1"]
        t[f"ff_b1_{l}"] = ff["b1"][None, :]
        t[f"ff_w2_{l}"] = ff["w2"]
        t[f"ff_b2_{l}"] = ff["b2"][None, :]
        t[f"ff_g_{l}"] = ff["ln_g"][None, :]
        t[f"ff_b_{l}"] = ff["ln_b"][None, :]
    slab = jnp.zeros((_W_ROWS, _LANES), jnp.float32)
    for key, (row, r, c) in _W_LAYOUT.items():
        slab = slab.at[row:row + r, :c].set(t[key])
    return slab


# --------------------------- in-kernel helpers -------------------------------
def _layer_norm(y, g, b):
    mean = jnp.mean(y, axis=-1, keepdims=True)
    var = jnp.mean((y - mean) ** 2, axis=-1, keepdims=True)
    return (y - mean) * jax.lax.rsqrt(var + _LN_EPS) * g + b


def _softmax_rows(s):
    s = s - jnp.max(s, axis=-1, keepdims=True)
    p = jnp.exp(s)
    return p / jnp.sum(p, axis=-1, keepdims=True)   # exact (maps are outputs)


# ------------------------------ fused kernel --------------------------------
def decoder_kernel(act_ref, w_ref, out_ref, *, B, Ld, Le):
    """Whole n_layers-deep decoder stack in one grid-less invocation.

    act_ref : (B*Ld, 128) packed [dec_emb | enc_out | self-mask bias | enc-mask bias]
    w_ref   : (R, 128)    packed weights/biases (see _W_LAYOUT)
    out_ref : (B*Ld, 256) packed [dec_out | self-attn maps | enc-attn maps | 0 pad]
    """
    H, dk, dv, D = n_heads, d_k, d_v, d_model

    def W(key):
        r0, nr, nc = _W_LAYOUT[key]
        return w_ref[r0:r0 + nr, :nc]

    x = act_ref[:, 0:D]                                       # [B*Ld, D]
    enc = act_ref[0:B * Le, D:2 * D]                          # [B*Le, D]
    sbias = act_ref[:, 2 * D:2 * D + B * Ld]                  # [B*Ld, B*Ld] additive mask
    ebias = act_ref[:, 2 * D + B * Ld:2 * D + B * Ld + B * Le]  # [B*Ld, B*Le]

    self_blocks, enc_blocks = [], []

    def mha(q_proj, kv_proj, bias, wo, bo, g, b, residual, blocks):
        # q_proj: [B*Lq, H*dk]; kv_proj: [B*Lk, H*dk + H*dv] laid out as [K | V].
        # bias is block-diagonal over batch (-1e9 off the own-batch block), so a
        # single softmax over B*Lk keys per head is exact for every batch.
        out = None
        for h in range(H):                                    # H = 2, fully unrolled
            q = q_proj[:, h * dk:(h + 1) * dk]
            k = kv_proj[:, h * dk:(h + 1) * dk]
            v = kv_proj[:, H * dk + h * dv:H * dk + (h + 1) * dv]
            # q @ k^T (NT contraction, no transpose); 1/sqrt(d_k) folded into Wq.
            scores = jax.lax.dot_general(
                q, k, (((1,), (1,)), ((), ())),
                preferred_element_type=jnp.float32) + bias
            attn = _softmax_rows(scores)
            blocks.append(attn)                               # [B*Lq, B*Lk]
            ctx = jnp.dot(attn, v, preferred_element_type=jnp.float32)
            # Fold "concat heads -> output Linear" into per-head partial matmuls
            # summed together (no lane concatenation, results stay in vregs).
            contrib = jnp.dot(ctx, wo[h * dv:(h + 1) * dv, :],
                              preferred_element_type=jnp.float32)
            out = contrib if out is None else out + contrib
        out = out + bo
        return _layer_norm(out + residual, g, b)

    for l in range(n_layers):                                 # n_layers = 2, unrolled
        # ---- masked self-attention: fused Q|K|V projection (one matmul) ----
        qkv = jnp.dot(x, W(f"sa_wqkv_{l}"),
                      preferred_element_type=jnp.float32) + W(f"sa_bqkv_{l}")
        x = mha(qkv[:, :H * dk], qkv[:, H * dk:], sbias,
                W(f"sa_wo_{l}"), W(f"sa_bo_{l}"), W(f"sa_g_{l}"), W(f"sa_b_{l}"),
                x, self_blocks)

        # ---- encoder-decoder attention: fused K|V projection ----
        q_proj = jnp.dot(x, W(f"ea_wq_{l}"),
                         preferred_element_type=jnp.float32) + W(f"ea_bq_{l}")
        kv_proj = jnp.dot(enc, W(f"ea_wkv_{l}"),
                          preferred_element_type=jnp.float32) + W(f"ea_bkv_{l}")
        x = mha(q_proj, kv_proj, ebias,
                W(f"ea_wo_{l}"), W(f"ea_bo_{l}"), W(f"ea_g_{l}"), W(f"ea_b_{l}"),
                x, enc_blocks)

        # ---- position-wise FFN (Conv1d k=1 == per-position Linear) ----
        h1 = jnp.maximum(
            jnp.dot(x, W(f"ff_w1_{l}"), preferred_element_type=jnp.float32)
            + W(f"ff_b1_{l}"), 0.0)
        y = jnp.dot(h1, W(f"ff_w2_{l}"),
                    preferred_element_type=jnp.float32) + W(f"ff_b2_{l}")
        x = _layer_norm(y + x, W(f"ff_g_{l}"), W(f"ff_b_{l}"))

    # ---- pack everything into one lane-dense output slab ----
    out_ref[:, 0:D] = x
    for j, blk in enumerate(self_blocks):                     # n_layers*H blocks
        c0 = D + j * (B * Ld)
        out_ref[:, c0:c0 + B * Ld] = blk
    off_e = D + n_layers * H * B * Ld
    for j, blk in enumerate(enc_blocks):
        c0 = off_e + j * (B * Le)
        out_ref[:, c0:c0 + B * Le] = blk
    off_pad = off_e + n_layers * H * B * Le
    pad = out_ref.shape[1] - off_pad
    out_ref[:, off_pad:off_pad + pad] = jnp.zeros((B * Ld, pad), jnp.float32)


# ------------------------------ pallas wrapper --------------------------------
def fused_decoder(act_slab, w_slab, B, Ld, Le):
    out_cols = d_model + n_layers * n_heads * B * (Ld + Le)
    out_lanes = ((out_cols + _LANES - 1) // _LANES) * _LANES
    kernel = functools.partial(decoder_kernel, B=B, Ld=Ld, Le=Le)
    vmem = pl.BlockSpec(memory_space=pltpu.MemorySpace.VMEM)
    return pl.pallas_call(
        kernel,
        out_shape=jax.ShapeDtypeStruct((B * Ld, out_lanes), jnp.float32),
        in_specs=[vmem, vmem],
        out_specs=vmem,
    )(act_slab, w_slab)


# ---------------------------- mask / PE helpers ------------------------------
def get_attn_pad_mask(seq_q, seq_k):
    B, Lq = seq_q.shape
    Lk = seq_k.shape[1]
    pad = (seq_k == 0)[:, None, :]                      # [B, 1, Lk]
    return jnp.broadcast_to(pad, (B, Lq, Lk))


def get_attn_subsequent_mask(seq):
    B, L = seq.shape
    sub = jnp.triu(jnp.ones((L, L), dtype=jnp.float32), k=1)
    return jnp.broadcast_to(sub[None], (B, L, L))


def positional_encoding_table(max_len, dm):
    position = jnp.arange(max_len, dtype=jnp.float32)[:, None]
    div_term = jnp.exp(jnp.arange(0, dm, 2, dtype=jnp.float32)
                       * (-math.log(10000.0) / dm))
    pe = jnp.zeros((max_len, dm), dtype=jnp.float32)
    pe = pe.at[:, 0::2].set(jnp.sin(position * div_term))
    pe = pe.at[:, 1::2].set(jnp.cos(position * div_term))
    return pe


def _block_diag_bias(mask):
    """mask: (B, Lq, Lk) bool -> (B*Lq, B*Lk) additive f32 bias whose cross-batch
    blocks are fully masked, so one softmax per head covers all batches."""
    B, Lq, Lk = mask.shape
    bias = jnp.full((B * Lq, B * Lk), _NEG_INF, dtype=jnp.float32)
    for bi in range(B):
        bias = bias.at[bi * Lq:(bi + 1) * Lq, bi * Lk:(bi + 1) * Lk].set(
            jnp.where(mask[bi], _NEG_INF, 0.0))
    return bias


# ------------------------------- forward pass --------------------------------
@jax.jit
def decoder_forward(params, w_slab, dec_inputs, enc_inputs, enc_outputs):
    B, Ld = dec_inputs.shape
    Le = enc_inputs.shape[1]
    D = d_model

    # Embedding gather + positional encoding (glue, fused by XLA under jit).
    dec_emb = jnp.take(params["tgt_emb"], dec_inputs, axis=0) + params["pe"][:Ld][None, :, :]
    # TODO(synk): PositionalEncoding's Dropout(p=0.1) is stochastic (torch RNG);
    # implemented as identity (eval-mode semantics).

    self_pad = get_attn_pad_mask(dec_inputs, dec_inputs).astype(jnp.float32)
    self_mask = (self_pad + get_attn_subsequent_mask(dec_inputs)) > 0
    enc_mask = get_attn_pad_mask(dec_inputs, enc_inputs)

    sbias = _block_diag_bias(self_mask)                 # (B*Ld, B*Ld)
    ebias = _block_diag_bias(enc_mask)                  # (B*Ld, B*Le)

    # Pack activations + masks into ONE lane-dense (B*Ld, 128) input slab.
    act = jnp.zeros((B * Ld, _LANES), jnp.float32)
    act = act.at[:, 0:D].set(dec_emb.reshape(B * Ld, D))
    act = act.at[0:B * Le, D:2 * D].set(enc_outputs.reshape(B * Le, D))
    act = act.at[:, 2 * D:2 * D + B * Ld].set(sbias)
    act = act.at[:, 2 * D + B * Ld:2 * D + B * Ld + B * Le].set(ebias)

    out = fused_decoder(act, w_slab, B, Ld, Le)

    # ---- unpack the lane-dense output slab (layout plumbing, XLA side) ----
    dec_out = out[:, 0:D].reshape(B, Ld, D)

    def extract_attn(col0, Lk):
        per_layer = []
        for l in range(n_layers):
            per_batch = []
            for bi in range(B):
                heads = []
                for h in range(n_heads):
                    c0 = col0 + (l * n_heads + h) * (B * Lk) + bi * Lk
                    heads.append(out[bi * Ld:(bi + 1) * Ld, c0:c0 + Lk])
                per_batch.append(jnp.stack(heads))      # (H, Ld, Lk)
            per_layer.append(jnp.stack(per_batch))      # (B, H, Ld, Lk)
        return per_layer

    self_attns = extract_attn(D, Ld)
    enc_attns = extract_attn(D + n_layers * n_heads * B * Ld, Le)
    return dec_out, self_attns, enc_attns


# ------------------------------- param init ---------------------------------
def init_params(key):
    keys = iter(jax.random.split(key, 64))

    def dense(din, dout):
        w = jax.random.normal(next(keys), (din, dout), jnp.float32) * 0.1
        b = jnp.zeros((dout,), jnp.float32)
        return w, b

    def mha_params():
        wq, bq = dense(d_model, d_k * n_heads)
        wk, bk = dense(d_model, d_k * n_heads)
        wv, bv = dense(d_model, d_v * n_heads)
        wo, bo = dense(n_heads * d_v, d_model)
        return dict(wq=wq, bq=bq, wk=wk, bk=bk, wv=wv, bv=bv, wo=wo, bo=bo,
                    ln_g=jnp.ones((d_model,), jnp.float32),
                    ln_b=jnp.zeros((d_model,), jnp.float32))

    def ffn_params():
        w1, b1 = dense(d_model, d_ff)
        w2, b2 = dense(d_ff, d_model)
        return dict(w1=w1, b1=b1, w2=w2, b2=b2,
                    ln_g=jnp.ones((d_model,), jnp.float32),
                    ln_b=jnp.zeros((d_model,), jnp.float32))

    layers = [dict(self_attn=mha_params(), enc_attn=mha_params(),
                   ffn=ffn_params()) for _ in range(n_layers)]
    tgt_emb = jax.random.normal(next(keys), (tgt_vocab_size, d_model),
                                jnp.float32) * 0.1
    return dict(tgt_emb=tgt_emb, pe=positional_encoding_table(64, d_model),
                layers=layers)


# -------------------------- pure-JAX reference (torch parity) ----------------
def reference_decoder(params, dec_inputs, enc_inputs, enc_outputs):
    B, Ld = dec_inputs.shape
    x = jnp.take(params["tgt_emb"], dec_inputs, axis=0) + params["pe"][:Ld][None, :, :]

    self_pad = get_attn_pad_mask(dec_inputs, dec_inputs).astype(jnp.float32)
    self_mask = (self_pad + get_attn_subsequent_mask(dec_inputs)) > 0
    enc_mask = get_attn_pad_mask(dec_inputs, enc_inputs)

    def layer_norm(y, g, b):
        mean = y.mean(-1, keepdims=True)
        var = ((y - mean) ** 2).mean(-1, keepdims=True)
        return (y - mean) / jnp.sqrt(var + _LN_EPS) * g + b

    def mha(P, Q, K, V, mask):
        q = (Q @ P["wq"] + P["bq"]).reshape(B, -1, n_heads, d_k).transpose(0, 2, 1, 3)
        k = (K @ P["wk"] + P["bk"]).reshape(B, -1, n_heads, d_k).transpose(0, 2, 1, 3)
        v = (V @ P["wv"] + P["bv"]).reshape(B, -1, n_heads, d_v).transpose(0, 2, 1, 3)
        scores = jnp.einsum("bhqd,bhkd->bhqk", q, k) / math.sqrt(d_k)
        scores = jnp.where(mask[:, None, :, :], _NEG_INF, scores)
        attn = jax.nn.softmax(scores, axis=-1)
        ctx = jnp.einsum("bhqk,bhkd->bhqd", attn, v)
        ctx = ctx.transpose(0, 2, 1, 3).reshape(B, -1, n_heads * d_v)
        out = ctx @ P["wo"] + P["bo"]
        return layer_norm(out + Q, P["ln_g"], P["ln_b"]), attn

    self_attns, enc_attns = [], []
    for L in params["layers"]:
        x, sa = mha(L["self_attn"], x, x, x, self_mask)
        x, ea = mha(L["enc_attn"], x, enc_outputs, enc_outputs, enc_mask)
        F = L["ffn"]
        h1 = jnp.maximum(x @ F["w1"] + F["b1"], 0.0)
        x = layer_norm(h1 @ F["w2"] + F["b2"] + x, F["ln_g"], F["ln_b"])
        self_attns.append(sa)
        enc_attns.append(ea)
    return x, self_attns, enc_attns


# ----------------------------------- main ------------------------------------
if __name__ == "__main__":
    key = jax.random.PRNGKey(0)
    k_par, k_dec, k_enc, k_eo = jax.random.split(key, 4)

    B, Ld, Le = 2, 8, 8
    params = init_params(k_par)
    w_slab = fuse_params(params)     # one-time weight repack -> single lane-dense slab

    # token ids in [1, vocab), last position of each sequence padded with 0
    dec_inputs = jax.random.randint(k_dec, (B, Ld), 1, tgt_vocab_size).astype(jnp.int32)
    dec_inputs = dec_inputs.at[:, -1].set(0)
    enc_inputs = jax.random.randint(k_enc, (B, Le), 1, src_vocab_size).astype(jnp.int32)
    enc_inputs = enc_inputs.at[:, -1].set(0)
    enc_outputs = jax.random.normal(k_eo, (B, Le, d_model), jnp.float32)

    dec_out, self_attns, enc_attns = decoder_forward(
        params, w_slab, dec_inputs, enc_inputs, enc_outputs)
    jax.block_until_ready((dec_out, self_attns, enc_attns))

    assert dec_out.shape == (B, Ld, d_model)
    assert len(self_attns) == n_layers and self_attns[0].shape == (B, n_heads, Ld, Ld)
    assert len(enc_attns) == n_layers and enc_attns[0].shape == (B, n_heads, Ld, Le)

    # numeric parity against a pure-JAX port of the PyTorch reference
    ref_out, ref_sa, ref_ea = reference_decoder(params, dec_inputs, enc_inputs, enc_outputs)
    assert jnp.allclose(dec_out, ref_out, atol=1e-3, rtol=1e-3)
    for l in range(n_layers):
        assert jnp.allclose(self_attns[l], ref_sa[l], atol=1e-3, rtol=1e-3)
        assert jnp.allclose(enc_attns[l], ref_ea[l], atol=1e-3, rtol=1e-3)

    print("KERNEL_OK")
</pallas_src>

<mosaic_0001>
module attributes {stable_mosaic.version = 11 : i64} {
  func.func @decoder_kernel(%arg0: memref<16x128xf32, #tpu.memory_space<vmem>>, %arg1: memref<720x128xf32, #tpu.memory_space<vmem>>, %arg2: memref<16x256xf32, #tpu.memory_space<vmem>>) attributes {dimension_semantics = [], scalar_prefetch = 0 : i64, scratch_operands = 0 : i64, tpu.core_type = #tpu.core_type<tc>} {
    %c0 = arith.constant 0 : index
    %c0_0 = arith.constant 0 : index
    %0 = vector.load %arg0[%c0, %c0_0] : memref<16x128xf32, #tpu.memory_space<vmem>>, vector<16x32xf32>
    %c0_1 = arith.constant 0 : index
    %c32 = arith.constant 32 : index
    %1 = vector.load %arg0[%c0_1, %c32] : memref<16x128xf32, #tpu.memory_space<vmem>>, vector<16x32xf32>
    %c0_2 = arith.constant 0 : index
    %c64 = arith.constant 64 : index
    %2 = vector.load %arg0[%c0_2, %c64] : memref<16x128xf32, #tpu.memory_space<vmem>>, vector<16x16xf32>
    %c0_3 = arith.constant 0 : index
    %c80 = arith.constant 80 : index
    %3 = vector.load %arg0[%c0_3, %c80] : memref<16x128xf32, #tpu.memory_space<vmem>>, vector<16x16xf32>
    %c0_4 = arith.constant 0 : index
    %c0_5 = arith.constant 0 : index
    %4 = vector.load %arg1[%c0_4, %c0_5] : memref<720x128xf32, #tpu.memory_space<vmem>>, vector<32x96xf32>
    %cst = arith.constant dense<0.000000e+00> : vector<16x96xf32>
    %5 = tpu.matmul %0, %4, %cst {dimension_numbers = #tpu.dot_dimension_numbers<[1], [0], [0], [1], [0, 0, 1, 1], [], []>} : vector<16x32xf32>, vector<32x96xf32>, vector<16x96xf32> -> vector<16x96xf32>
    %c256 = arith.constant 256 : index
    %c0_6 = arith.constant 0 : index
    %6 = vector.load %arg1[%c256, %c0_6] : memref<720x128xf32, #tpu.memory_space<vmem>>, vector<1x96xf32>
    %7 = vector.broadcast %6 : vector<1x96xf32> to vector<16x96xf32>
    %8 = arith.addf %5, %7 : vector<16x96xf32>
    %9 = vector.extract_strided_slice %8 {offsets = [0, 0], sizes = [16, 32], strides = [1, 1]} : vector<16x96xf32> to vector<16x32xf32>
    %10 = vector.extract_strided_slice %8 {offsets = [0, 32], sizes = [16, 64], strides = [1, 1]} : vector<16x96xf32> to vector<16x64xf32>
    %c32_7 = arith.constant 32 : index
    %c0_8 = arith.constant 0 : index
    %11 = vector.load %arg1[%c32_7, %c0_8] : memref<720x128xf32, #tpu.memory_space<vmem>>, vector<32x32xf32>
    %c264 = arith.constant 264 : index
    %c0_9 = arith.constant 0 : index
    %12 = vector.load %arg1[%c264, %c0_9] : memref<720x128xf32, #tpu.memory_space<vmem>>, vector<1x32xf32>
    %c272 = arith.constant 272 : index
    %c0_10 = arith.constant 0 : index
    %13 = vector.load %arg1[%c272, %c0_10] : memref<720x128xf32, #tpu.memory_space<vmem>>, vector<1x32xf32>
    %c280 = arith.constant 280 : index
    %c0_11 = arith.constant 0 : index
    %14 = vector.load %arg1[%c280, %c0_11] : memref<720x128xf32, #tpu.memory_space<vmem>>, vector<1x32xf32>
    %15 = vector.extract_strided_slice %9 {offsets = [0, 0], sizes = [16, 16], strides = [1, 1]} : vector<16x32xf32> to vector<16x16xf32>
    %16 = vector.extract_strided_slice %10 {offsets = [0, 0], sizes = [16, 16], strides = [1, 1]} : vector<16x64xf32> to vector<16x16xf32>
    %17 = vector.extract_strided_slice %10 {offsets = [0, 32], sizes = [16, 16], strides = [1, 1]} : vector<16x64xf32> to vector<16x16xf32>
    %cst_12 = arith.constant dense<0.000000e+00> : vector<16x16xf32>
    %18 = tpu.matmul %15, %16, %cst_12 {dimension_numbers = #tpu.dot_dimension_numbers<[1], [1], [0], [0], [0, 0, 1, 0], [], []>} : vector<16x16xf32>, vector<16x16xf32>, vector<16x16xf32> -> vector<16x16xf32>
    %19 = arith.addf %18, %2 : vector<16x16xf32>
    %cst_13 = arith.constant dense<0xFF800000> : vector<16xf32>
    %20 = vector.multi_reduction <maximumf>, %19, %cst_13 [1] : vector<16x16xf32> to vector<16xf32>
    %21 = vector.shape_cast %20 : vector<16xf32> to vector<16x1xf32>
    %22 = vector.broadcast %21 : vector<16x1xf32> to vector<16x16xf32>
    %23 = arith.subf %19, %22 : vector<16x16xf32>
    %24 = math.exp %23 : vector<16x16xf32>
    %cst_14 = arith.constant dense<0.000000e+00> : vector<16xf32>
    %25 = vector.multi_reduction <add>, %24, %cst_14 [1] : vector<16x16xf32> to vector<16xf32>
    %26 = vector.shape_cast %25 : vector<16xf32> to vector<16x1xf32>
    %27 = vector.broadcast %26 : vector<16x1xf32> to vector<16x16xf32>
    %28 = arith.divf %24, %27 : vector<16x16xf32>
    %cst_15 = arith.constant dense<0.000000e+00> : vector<16x16xf32>
    %29 = tpu.matmul %28, %17, %cst_15 {dimension_numbers = #tpu.dot_dimension_numbers<[1], [0], [0], [1], [0, 0, 1, 1], [], []>} : vector<16x16xf32>, vector<16x16xf32>, vector<16x16xf32> -> vector<16x16xf32>
    %30 = vector.extract_strided_slice %11 {offsets = [0, 0], sizes = [16, 32], strides = [1, 1]} : vector<32x32xf32> to vector<16x32xf32>
    %cst_16 = arith.constant dense<0.000000e+00> : vector<16x32xf32>
    %31 = tpu.matmul %29, %30, %cst_16 {dimension_numbers = #tpu.dot_dimension_numbers<[1], [0], [0], [1], [0, 0, 1, 1], [], []>} : vector<16x16xf32>, vector<16x32xf32>, vector<16x32xf32> -> vector<16x32xf32>
    %32 = vector.extract_strided_slice %9 {offsets = [0, 16], sizes = [16, 16], strides = [1, 1]} : vector<16x32xf32> to vector<16x16xf32>
    %33 = vector.extract_strided_slice %10 {offsets = [0, 16], sizes = [16, 16], strides = [1, 1]} : vector<16x64xf32> to vector<16x16xf32>
    %34 = vector.extract_strided_slice %10 {offsets = [0, 48], sizes = [16, 16], strides = [1, 1]} : vector<16x64xf32> to vector<16x16xf32>
    %cst_17 = arith.constant dense<0.000000e+00> : vector<16x16xf32>
    %35 = tpu.matmul %32, %33, %cst_17 {dimension_numbers = #tpu.dot_dimension_numbers<[1], [1], [0], [0], [0, 0, 1, 0], [], []>} : vector<16x16xf32>, vector<16x16xf32>, vector<16x16xf32> -> vector<16x16xf32>
    %36 = arith.addf %35, %2 : vector<16x16xf32>
    %cst_18 = arith.constant dense<0xFF800000> : vector<16xf32>
    %37 = vector.multi_reduction <maximumf>, %36, %cst_18 [1] : vector<16x16xf32> to vector<16xf32>
    %38 = vector.shape_cast %37 : vector<16xf32> to vector<16x1xf32>
    %39 = vector.broadcast %38 : vector<16x1xf32> to vector<16x16xf32>
    %40 = arith.subf %36, %39 : vector<16x16xf32>
    %41 = math.exp %40 : vector<16x16xf32>
    %cst_19 = arith.constant dense<0.000000e+00> : vector<16xf32>
    %42 = vector.multi_reduction <add>, %41, %cst_19 [1] : vector<16x16xf32> to vector<16xf32>
    %43 = vector.shape_cast %42 : vector<16xf32> to vector<16x1xf32>
    %44 = vector.broadcast %43 : vector<16x1xf32> to vector<16x16xf32>
    %45 = arith.divf %41, %44 : vector<16x16xf32>
    %cst_20 = arith.constant dense<0.000000e+00> : vector<16x16xf32>
    %46 = tpu.matmul %45, %34, %cst_20 {dimension_numbers = #tpu.dot_dimension_numbers<[1], [0], [0], [1], [0, 0, 1, 1], [], []>} : vector<16x16xf32>, vector<16x16xf32>, vector<16x16xf32> -> vector<16x16xf32>
    %47 = vector.extract_strided_slice %11 {offsets = [16, 0], sizes = [16, 32], strides = [1, 1]} : vector<32x32xf32> to vector<16x32xf32>
    %cst_21 = arith.constant dense<0.000000e+00> : vector<16x32xf32>
    %48 = tpu.matmul %46, %47, %cst_21 {dimension_numbers = #tpu.dot_dimension_numbers<[1], [0], [0], [1], [0, 0, 1, 1], [], []>} : vector<16x16xf32>, vector<16x32xf32>, vector<16x32xf32> -> vector<16x32xf32>
    %49 = arith.addf %31, %48 : vector<16x32xf32>
    %50 = vector.broadcast %12 : vector<1x32xf32> to vector<16x32xf32>
    %51 = arith.addf %49, %50 : vector<16x32xf32>
    %52 = arith.addf %51, %0 : vector<16x32xf32>
    %cst_22 = arith.constant dense<0.000000e+00> : vector<16xf32>
    %53 = vector.multi_reduction <add>, %52, %cst_22 [1] : vector<16x32xf32> to vector<16xf32>
    %54 = vector.shape_cast %53 : vector<16xf32> to vector<16x1xf32>
    %cst_23 = arith.constant 3.200000e+01 : f32
    %55 = vector.broadcast %cst_23 : f32 to vector<16x1xf32>
    %56 = arith.divf %54, %55 : vector<16x1xf32>
    %57 = vector.broadcast %56 : vector<16x1xf32> to vector<16x32xf32>
    %58 = arith.subf %52, %57 : vector<16x32xf32>
    %59 = arith.mulf %58, %58 : vector<16x32xf32>
    %cst_24 = arith.constant dense<0.000000e+00> : vector<16xf32>
    %60 = vector.multi_reduction <add>, %59, %cst_24 [1] : vector<16x32xf32> to vector<16xf32>
    %61 = vector.shape_cast %60 : vector<16xf32> to vector<16x1xf32>
    %cst_25 = arith.constant 3.200000e+01 : f32
    %62 = vector.broadcast %cst_25 : f32 to vector<16x1xf32>
    %63 = arith.divf %61, %62 : vector<16x1xf32>
    %64 = vector.broadcast %56 : vector<16x1xf32> to vector<16x32xf32>
    %65 = arith.subf %52, %64 : vector<16x32xf32>
    %cst_26 = arith.constant 9.99999974E-6 : f32
    %66 = vector.broadcast %cst_26 : f32 to vector<16x1xf32>
    %67 = arith.addf %63, %66 : vector<16x1xf32>
    %68 = math.rsqrt %67 : vector<16x1xf32>
    %69 = vector.broadcast %68 : vector<16x1xf32> to vector<16x32xf32>
    %70 = arith.mulf %65, %69 : vector<16x32xf32>
    %71 = vector.broadcast %13 : vector<1x32xf32> to vector<16x32xf32>
    %72 = arith.mulf %70, %71 : vector<16x32xf32>
    %73 = vector.broadcast %14 : vector<1x32xf32> to vector<16x32xf32>
    %74 = arith.addf %72, %73 : vector<16x32xf32>
    %c64_27 = arith.constant 64 : index
    %c0_28 = arith.constant 0 : index
    %75 = vector.load %arg1[%c64_27, %c0_28] : memref<720x128xf32, #tpu.memory_space<vmem>>, vector<32x32xf32>
    %cst_29 = arith.constant dense<0.000000e+00> : vector<16x32xf32>
    %76 = tpu.matmul %74, %75, %cst_29 {dimension_numbers = #tpu.dot_dimension_numbers<[1], [0], [0], [1], [0, 0, 1, 1], [], []>} : vector<16x32xf32>, vector<32x32xf32>, vector<16x32xf32> -> vector<16x32xf32>
    %c288 = arith.constant 288 : index
    %c0_30 = arith.constant 0 : index
    %77 = vector.load %arg1[%c288, %c0_30] : memref<720x128xf32, #tpu.memory_space<vmem>>, vector<1x32xf32>
    %78 = vector.broadcast %77 : vector<1x32xf32> to vector<16x32xf32>
    %79 = arith.addf %76, %78 : vector<16x32xf32>
    %c96 = arith.constant 96 : index
    %c0_31 = arith.constant 0 : index
    %80 = vector.load %arg1[%c96, %c0_31] : memref<720x128xf32, #tpu.memory_space<vmem>>, vector<32x64xf32>
    %cst_32 = arith.constant dense<0.000000e+00> : vector<16x64xf32>
    %81 = tpu.matmul %1, %80, %cst_32 {dimension_numbers = #tpu.dot_dimension_numbers<[1], [0], [0], [1], [0, 0, 1, 1], [], []>} : vector<16x32xf32>, vector<32x64xf32>, vector<16x64xf32> -> vector<16x64xf32>
    %c296 = arith.constant 296 : index
    %c0_33 = arith.constant 0 : index
    %82 = vector.load %arg1[%c296, %c0_33] : memref<720x128xf32, #tpu.memory_space<vmem>>, vector<1x64xf32>
    %83 = vector.broadcast %82 : vector<1x64xf32> to vector<16x64xf32>
    %84 = arith.addf %81, %83 : vector<16x64xf32>
    %c128 = arith.constant 128 : index
    %c0_34 = arith.constant 0 : index
    %85 = vector.load %arg1[%c128, %c0_34] : memref<720x128xf32, #tpu.memory_space<vmem>>, vector<32x32xf32>
    %c304 = arith.constant 304 : index
    %c0_35 = arith.constant 0 : index
    %86 = vector.load %arg1[%c304, %c0_35] : memref<720x128xf32, #tpu.memory_space<vmem>>, vector<1x32xf32>
    %c312 = arith.constant 312 : index
    %c0_36 = arith.constant 0 : index
    %87 = vector.load %arg1[%c312, %c0_36] : memref<720x128xf32, #tpu.memory_space<vmem>>, vector<1x32xf32>
    %c320 = arith.constant 320 : index
    %c0_37 = arith.constant 0 : index
    %88 = vector.load %arg1[%c320, %c0_37] : memref<720x128xf32, #tpu.memory_space<vmem>>, vector<1x32xf32>
    %89 = vector.extract_strided_slice %79 {offsets = [0, 0], sizes = [16, 16], strides = [1, 1]} : vector<16x32xf32> to vector<16x16xf32>
    %90 = vector.extract_strided_slice %84 {offsets = [0, 0], sizes = [16, 16], strides = [1, 1]} : vector<16x64xf32> to vector<16x16xf32>
    %91 = vector.extract_strided_slice %84 {offsets = [0, 32], sizes = [16, 16], strides = [1, 1]} : vector<16x64xf32> to vector<16x16xf32>
    %cst_38 = arith.constant dense<0.000000e+00> : vector<16x16xf32>
    %92 = tpu.matmul %89, %90, %cst_38 {dimension_numbers = #tpu.dot_dimension_numbers<[1], [1], [0], [0], [0, 0, 1, 0], [], []>} : vector<16x16xf32>, vector<16x16xf32>, vector<16x16xf32> -> vector<16x16xf32>
    %93 = arith.addf %92, %3 : vector<16x16xf32>
    %cst_39 = arith.constant dense<0xFF800000> : vector<16xf32>
    %94 = vector.multi_reduction <maximumf>, %93, %cst_39 [1] : vector<16x16xf32> to vector<16xf32>
    %95 = vector.shape_cast %94 : vector<16xf32> to vector<16x1xf32>
    %96 = vector.broadcast %95 : vector<16x1xf32> to vector<16x16xf32>
    %97 = arith.subf %93, %96 : vector<16x16xf32>
    %98 = math.exp %97 : vector<16x16xf32>
    %cst_40 = arith.constant dense<0.000000e+00> : vector<16xf32>
    %99 = vector.multi_reduction <add>, %98, %cst_40 [1] : vector<16x16xf32> to vector<16xf32>
    %100 = vector.shape_cast %99 : vector<16xf32> to vector<16x1xf32>
    %101 = vector.broadcast %100 : vector<16x1xf32> to vector<16x16xf32>
    %102 = arith.divf %98, %101 : vector<16x16xf32>
    %cst_41 = arith.constant dense<0.000000e+00> : vector<16x16xf32>
    %103 = tpu.matmul %102, %91, %cst_41 {dimension_numbers = #tpu.dot_dimension_numbers<[1], [0], [0], [1], [0, 0, 1, 1], [], []>} : vector<16x16xf32>, vector<16x16xf32>, vector<16x16xf32> -> vector<16x16xf32>
    %104 = vector.extract_strided_slice %85 {offsets = [0, 0], sizes = [16, 32], strides = [1, 1]} : vector<32x32xf32> to vector<16x32xf32>
    %cst_42 = arith.constant dense<0.000000e+00> : vector<16x32xf32>
    %105 = tpu.matmul %103, %104, %cst_42 {dimension_numbers = #tpu.dot_dimension_numbers<[1], [0], [0], [1], [0, 0, 1, 1], [], []>} : vector<16x16xf32>, vector<16x32xf32>, vector<16x32xf32> -> vector<16x32xf32>
    %106 = vector.extract_strided_slice %79 {offsets = [0, 16], sizes = [16, 16], strides = [1, 1]} : vector<16x32xf32> to vector<16x16xf32>
    %107 = vector.extract_strided_slice %84 {offsets = [0, 16], sizes = [16, 16], strides = [1, 1]} : vector<16x64xf32> to vector<16x16xf32>
    %108 = vector.extract_strided_slice %84 {offsets = [0, 48], sizes = [16, 16], strides = [1, 1]} : vector<16x64xf32> to vector<16x16xf32>
    %cst_43 = arith.constant dense<0.000000e+00> : vector<16x16xf32>
    %109 = tpu.matmul %106, %107, %cst_43 {dimension_numbers = #tpu.dot_dimension_numbers<[1], [1], [0], [0], [0, 0, 1, 0], [], []>} : vector<16x16xf32>, vector<16x16xf32>, vector<16x16xf32> -> vector<16x16xf32>
    %110 = arith.addf %109, %3 : vector<16x16xf32>
    %cst_44 = arith.constant dense<0xFF800000> : vector<16xf32>
    %111 = vector.multi_reduction <maximumf>, %110, %cst_44 [1] : vector<16x16xf32> to vector<16xf32>
    %112 = vector.shape_cast %111 : vector<16xf32> to vector<16x1xf32>
    %113 = vector.broadcast %112 : vector<16x1xf32> to vector<16x16xf32>
    %114 = arith.subf %110, %113 : vector<16x16xf32>
    %115 = math.exp %114 : vector<16x16xf32>
    %cst_45 = arith.constant dense<0.000000e+00> : vector<16xf32>
    %116 = vector.multi_reduction <add>, %115, %cst_45 [1] : vector<16x16xf32> to vector<16xf32>
    %117 = vector.shape_cast %116 : vector<16xf32> to vector<16x1xf32>
    %118 = vector.broadcast %117 : vector<16x1xf32> to vector<16x16xf32>
    %119 = arith.divf %115, %118 : vector<16x16xf32>
    %cst_46 = arith.constant dense<0.000000e+00> : vector<16x16xf32>
    %120 = tpu.matmul %119, %108, %cst_46 {dimension_numbers = #tpu.dot_dimension_numbers<[1], [0], [0], [1], [0, 0, 1, 1], [], []>} : vector<16x16xf32>, vector<16x16xf32>, vector<16x16xf32> -> vector<16x16xf32>
    %121 = vector.extract_strided_slice %85 {offsets = [16, 0], sizes = [16, 32], strides = [1, 1]} : vector<32x32xf32> to vector<16x32xf32>
    %cst_47 = arith.constant dense<0.000000e+00> : vector<16x32xf32>
    %122 = tpu.matmul %120, %121, %cst_47 {dimension_numbers = #tpu.dot_dimension_numbers<[1], [0], [0], [1], [0, 0, 1, 1], [], []>} : vector<16x16xf32>, vector<16x32xf32>, vector<16x32xf32> -> vector<16x32xf32>
    %123 = arith.addf %105, %122 : vector<16x32xf32>
    %124 = vector.broadcast %86 : vector<1x32xf32> to vector<16x32xf32>
    %125 = arith.addf %123, %124 : vector<16x32xf32>
    %126 = arith.addf %125, %74 : vector<16x32xf32>
    %cst_48 = arith.constant dense<0.000000e+00> : vector<16xf32>
    %127 = vector.multi_reduction <add>, %126, %cst_48 [1] : vector<16x32xf32> to vector<16xf32>
    %128 = vector.shape_cast %127 : vector<16xf32> to vector<16x1xf32>
    %cst_49 = arith.constant 3.200000e+01 : f32
    %129 = vector.broadcast %cst_49 : f32 to vector<16x1xf32>
    %130 = arith.divf %128, %129 : vector<16x1xf32>
    %131 = vector.broadcast %130 : vector<16x1xf32> to vector<16x32xf32>
    %132 = arith.subf %126, %131 : vector<16x32xf32>
    %133 = arith.mulf %132, %132 : vector<16x32xf32>
    %cst_50 = arith.constant dense<0.000000e+00> : vector<16xf32>
    %134 = vector.multi_reduction <add>, %133, %cst_50 [1] : vector<16x32xf32> to vector<16xf32>
    %135 = vector.shape_cast %134 : vector<16xf32> to vector<16x1xf32>
    %cst_51 = arith.constant 3.200000e+01 : f32
    %136 = vector.broadcast %cst_51 : f32 to vector<16x1xf32>
    %137 = arith.divf %135, %136 : vector<16x1xf32>
    %138 = vector.broadcast %130 : vector<16x1xf32> to vector<16x32xf32>
    %139 = arith.subf %126, %138 : vector<16x32xf32>
    %cst_52 = arith.constant 9.99999974E-6 : f32
    %140 = vector.broadcast %cst_52 : f32 to vector<16x1xf32>
    %141 = arith.addf %137, %140 : vector<16x1xf32>
    %142 = math.rsqrt %141 : vector<16x1xf32>
    %143 = vector.broadcast %142 : vector<16x1xf32> to vector<16x32xf32>
    %144 = arith.mulf %139, %143 : vector<16x32xf32>
    %145 = vector.broadcast %87 : vector<1x32xf32> to vector<16x32xf32>
    %146 = arith.mulf %144, %145 : vector<16x32xf32>
    %147 = vector.broadcast %88 : vector<1x32xf32> to vector<16x32xf32>
    %148 = arith.addf %146, %147 : vector<16x32xf32>
    %c160 = arith.constant 160 : index
    %c0_53 = arith.constant 0 : index
    %149 = vector.load %arg1[%c160, %c0_53] : memref<720x128xf32, #tpu.memory_space<vmem>>, vector<32x64xf32>
    %cst_54 = arith.constant dense<0.000000e+00> : vector<16x64xf32>
    %150 = tpu.matmul %148, %149, %cst_54 {dimension_numbers = #tpu.dot_dimension_numbers<[1], [0], [0], [1], [0, 0, 1, 1], [], []>} : vector<16x32xf32>, vector<32x64xf32>, vector<16x64xf32> -> vector<16x64xf32>
    %c328 = arith.constant 328 : index
    %c0_55 = arith.constant 0 : index
    %151 = vector.load %arg1[%c328, %c0_55] : memref<720x128xf32, #tpu.memory_space<vmem>>, vector<1x64xf32>
    %152 = vector.broadcast %151 : vector<1x64xf32> to vector<16x64xf32>
    %153 = arith.addf %150, %152 : vector<16x64xf32>
    %cst_56 = arith.constant 0.000000e+00 : f32
    %154 = vector.broadcast %cst_56 : f32 to vector<16x64xf32>
    %155 = arith.maximumf %153, %154 : vector<16x64xf32>
    %c192 = arith.constant 192 : index
    %c0_57 = arith.constant 0 : index
    %156 = vector.load %arg1[%c192, %c0_57] : memref<720x128xf32, #tpu.memory_space<vmem>>, vector<64x32xf32>
    %cst_58 = arith.constant dense<0.000000e+00> : vector<16x32xf32>
    %157 = tpu.matmul %155, %156, %cst_58 {dimension_numbers = #tpu.dot_dimension_numbers<[1], [0], [0], [1], [0, 0, 1, 1], [], []>} : vector<16x64xf32>, vector<64x32xf32>, vector<16x32xf32> -> vector<16x32xf32>
    %c336 = arith.constant 336 : index
    %c0_59 = arith.constant 0 : index
    %158 = vector.load %arg1[%c336, %c0_59] : memref<720x128xf32, #tpu.memory_space<vmem>>, vector<1x32xf32>
    %159 = vector.broadcast %158 : vector<1x32xf32> to vector<16x32xf32>
    %160 = arith.addf %157, %159 : vector<16x32xf32>
    %161 = arith.addf %160, %148 : vector<16x32xf32>
    %c344 = arith.constant 344 : index
    %c0_60 = arith.constant 0 : index
    %162 = vector.load %arg1[%c344, %c0_60] : memref<720x128xf32, #tpu.memory_space<vmem>>, vector<1x32xf32>
    %c352 = arith.constant 352 : index
    %c0_61 = arith.constant 0 : index
    %163 = vector.load %arg1[%c352, %c0_61] : memref<720x128xf32, #tpu.memory_space<vmem>>, vector<1x32xf32>
    %cst_62 = arith.constant dense<0.000000e+00> : vector<16xf32>
    %164 = vector.multi_reduction <add>, %161, %cst_62 [1] : vector<16x32xf32> to vector<16xf32>
    %165 = vector.shape_cast %164 : vector<16xf32> to vector<16x1xf32>
    %cst_63 = arith.constant 3.200000e+01 : f32
    %166 = vector.broadcast %cst_63 : f32 to vector<16x1xf32>
    %167 = arith.divf %165, %166 : vector<16x1xf32>
    %168 = vector.broadcast %167 : vector<16x1xf32> to vector<16x32xf32>
    %169 = arith.subf %161, %168 : vector<16x32xf32>
    %170 = arith.mulf %169, %169 : vector<16x32xf32>
    %cst_64 = arith.constant dense<0.000000e+00> : vector<16xf32>
    %171 = vector.multi_reduction <add>, %170, %cst_64 [1] : vector<16x32xf32> to vector<16xf32>
    %172 = vector.shape_cast %171 : vector<16xf32> to vector<16x1xf32>
    %cst_65 = arith.constant 3.200000e+01 : f32
    %173 = vector.broadcast %cst_65 : f32 to vector<16x1xf32>
    %174 = arith.divf %172, %173 : vector<16x1xf32>
    %175 = vector.broadcast %167 : vector<16x1xf32> to vector<16x32xf32>
    %176 = arith.subf %161, %175 : vector<16x32xf32>
    %cst_66 = arith.constant 9.99999974E-6 : f32
    %177 = vector.broadcast %cst_66 : f32 to vector<16x1xf32>
    %178 = arith.addf %174, %177 : vector<16x1xf32>
    %179 = math.rsqrt %178 : vector<16x1xf32>
    %180 = vector.broadcast %179 : vector<16x1xf32> to vector<16x32xf32>
    %181 = arith.mulf %176, %180 : vector<16x32xf32>
    %182 = vector.broadcast %162 : vector<1x32xf32> to vector<16x32xf32>
    %183 = arith.mulf %181, %182 : vector<16x32xf32>
    %184 = vector.broadcast %163 : vector<1x32xf32> to vector<16x32xf32>
    %185 = arith.addf %183, %184 : vector<16x32xf32>
    %c360 = arith.constant 360 : index
    %c0_67 = arith.constant 0 : index
    %186 = vector.load %arg1[%c360, %c0_67] : memref<720x128xf32, #tpu.memory_space<vmem>>, vector<32x96xf32>
    %cst_68 = arith.constant dense<0.000000e+00> : vector<16x96xf32>
    %187 = tpu.matmul %185, %186, %cst_68 {dimension_numbers = #tpu.dot_dimension_numbers<[1], [0], [0], [1], [0, 0, 1, 1], [], []>} : vector<16x32xf32>, vector<32x96xf32>, vector<16x96xf32> -> vector<16x96xf32>
    %c616 = arith.constant 616 : index
    %c0_69 = arith.constant 0 : index
    %188 = vector.load %arg1[%c616, %c0_69] : memref<720x128xf32, #tpu.memory_space<vmem>>, vector<1x96xf32>
    %189 = vector.broadcast %188 : vector<1x96xf32> to vector<16x96xf32>
    %190 = arith.addf %187, %189 : vector<16x96xf32>
    %191 = vector.extract_strided_slice %190 {offsets = [0, 0], sizes = [16, 32], strides = [1, 1]} : vector<16x96xf32> to vector<16x32xf32>
    %192 = vector.extract_strided_slice %190 {offsets = [0, 32], sizes = [16, 64], strides = [1, 1]} : vector<16x96xf32> to vector<16x64xf32>
    %c392 = arith.constant 392 : index
    %c0_70 = arith.constant 0 : index
    %193 = vector.load %arg1[%c392, %c0_70] : memref<720x128xf32, #tpu.memory_space<vmem>>, vector<32x32xf32>
    %c624 = arith.constant 624 : index
    %c0_71 = arith.constant 0 : index
    %194 = vector.load %arg1[%c624, %c0_71] : memref<720x128xf32, #tpu.memory_space<vmem>>, vector<1x32xf32>
    %c632 = arith.constant 632 : index
    %c0_72 = arith.constant 0 : index
    %195 = vector.load %arg1[%c632, %c0_72] : memref<720x128xf32, #tpu.memory_space<vmem>>, vector<1x32xf32>
    %c640 = arith.constant 640 : index
    %c0_73 = arith.constant 0 : index
    %196 = vector.load %arg1[%c640, %c0_73] : memref<720x128xf32, #tpu.memory_space<vmem>>, vector<1x32xf32>
    %197 = vector.extract_strided_slice %191 {offsets = [0, 0], sizes = [16, 16], strides = [1, 1]} : vector<16x32xf32> to vector<16x16xf32>
    %198 = vector.extract_strided_slice %192 {offsets = [0, 0], sizes = [16, 16], strides = [1, 1]} : vector<16x64xf32> to vector<16x16xf32>
    %199 = vector.extract_strided_slice %192 {offsets = [0, 32], sizes = [16, 16], strides = [1, 1]} : vector<16x64xf32> to vector<16x16xf32>
    %cst_74 = arith.constant dense<0.000000e+00> : vector<16x16xf32>
    %200 = tpu.matmul %197, %198, %cst_74 {dimension_numbers = #tpu.dot_dimension_numbers<[1], [1], [0], [0], [0, 0, 1, 0], [], []>} : vector<16x16xf32>, vector<16x16xf32>, vector<16x16xf32> -> vector<16x16xf32>
    %201 = arith.addf %200, %2 : vector<16x16xf32>
    %cst_75 = arith.constant dense<0xFF800000> : vector<16xf32>
    %202 = vector.multi_reduction <maximumf>, %201, %cst_75 [1] : vector<16x16xf32> to vector<16xf32>
    %203 = vector.shape_cast %202 : vector<16xf32> to vector<16x1xf32>
    %204 = vector.broadcast %203 : vector<16x1xf32> to vector<16x16xf32>
    %205 = arith.subf %201, %204 : vector<16x16xf32>
    %206 = math.exp %205 : vector<16x16xf32>
    %cst_76 = arith.constant dense<0.000000e+00> : vector<16xf32>
    %207 = vector.multi_reduction <add>, %206, %cst_76 [1] : vector<16x16xf32> to vector<16xf32>
    %208 = vector.shape_cast %207 : vector<16xf32> to vector<16x1xf32>
    %209 = vector.broadcast %208 : vector<16x1xf32> to vector<16x16xf32>
    %210 = arith.divf %206, %209 : vector<16x16xf32>
    %cst_77 = arith.constant dense<0.000000e+00> : vector<16x16xf32>
    %211 = tpu.matmul %210, %199, %cst_77 {dimension_numbers = #tpu.dot_dimension_numbers<[1], [0], [0], [1], [0, 0, 1, 1], [], []>} : vector<16x16xf32>, vector<16x16xf32>, vector<16x16xf32> -> vector<16x16xf32>
    %212 = vector.extract_strided_slice %193 {offsets = [0, 0], sizes = [16, 32], strides = [1, 1]} : vector<32x32xf32> to vector<16x32xf32>
    %cst_78 = arith.constant dense<0.000000e+00> : vector<16x32xf32>
    %213 = tpu.matmul %211, %212, %cst_78 {dimension_numbers = #tpu.dot_dimension_numbers<[1], [0], [0], [1], [0, 0, 1, 1], [], []>} : vector<16x16xf32>, vector<16x32xf32>, vector<16x32xf32> -> vector<16x32xf32>
    %214 = vector.extract_strided_slice %191 {offsets = [0, 16], sizes = [16, 16], strides = [1, 1]} : vector<16x32xf32> to vector<16x16xf32>
    %215 = vector.extract_strided_slice %192 {offsets = [0, 16], sizes = [16, 16], strides = [1, 1]} : vector<16x64xf32> to vector<16x16xf32>
    %216 = vector.extract_strided_slice %192 {offsets = [0, 48], sizes = [16, 16], strides = [1, 1]} : vector<16x64xf32> to vector<16x16xf32>
    %cst_79 = arith.constant dense<0.000000e+00> : vector<16x16xf32>
    %217 = tpu.matmul %214, %215, %cst_79 {dimension_numbers = #tpu.dot_dimension_numbers<[1], [1], [0], [0], [0, 0, 1, 0], [], []>} : vector<16x16xf32>, vector<16x16xf32>, vector<16x16xf32> -> vector<16x16xf32>
    %218 = arith.addf %217, %2 : vector<16x16xf32>
    %cst_80 = arith.constant dense<0xFF800000> : vector<16xf32>
    %219 = vector.multi_reduction <maximumf>, %218, %cst_80 [1] : vector<16x16xf32> to vector<16xf32>
    %220 = vector.shape_cast %219 : vector<16xf32> to vector<16x1xf32>
    %221 = vector.broadcast %220 : vector<16x1xf32> to vector<16x16xf32>
    %222 = arith.subf %218, %221 : vector<16x16xf32>
    %223 = math.exp %222 : vector<16x16xf32>
    %cst_81 = arith.constant dense<0.000000e+00> : vector<16xf32>
    %224 = vector.multi_reduction <add>, %223, %cst_81 [1] : vector<16x16xf32> to vector<16xf32>
    %225 = vector.shape_cast %224 : vector<16xf32> to vector<16x1xf32>
    %226 = vector.broadcast %225 : vector<16x1xf32> to vector<16x16xf32>
    %227 = arith.divf %223, %226 : vector<16x16xf32>
    %cst_82 = arith.constant dense<0.000000e+00> : vector<16x16xf32>
    %228 = tpu.matmul %227, %216, %cst_82 {dimension_numbers = #tpu.dot_dimension_numbers<[1], [0], [0], [1], [0, 0, 1, 1], [], []>} : vector<16x16xf32>, vector<16x16xf32>, vector<16x16xf32> -> vector<16x16xf32>
    %229 = vector.extract_strided_slice %193 {offsets = [16, 0], sizes = [16, 32], strides = [1, 1]} : vector<32x32xf32> to vector<16x32xf32>
    %cst_83 = arith.constant dense<0.000000e+00> : vector<16x32xf32>
    %230 = tpu.matmul %228, %229, %cst_83 {dimension_numbers = #tpu.dot_dimension_numbers<[1], [0], [0], [1], [0, 0, 1, 1], [], []>} : vector<16x16xf32>, vector<16x32xf32>, vector<16x32xf32> -> vector<16x32xf32>
    %231 = arith.addf %213, %230 : vector<16x32xf32>
    %232 = vector.broadcast %194 : vector<1x32xf32> to vector<16x32xf32>
    %233 = arith.addf %231, %232 : vector<16x32xf32>
    %234 = arith.addf %233, %185 : vector<16x32xf32>
    %cst_84 = arith.constant dense<0.000000e+00> : vector<16xf32>
    %235 = vector.multi_reduction <add>, %234, %cst_84 [1] : vector<16x32xf32> to vector<16xf32>
    %236 = vector.shape_cast %235 : vector<16xf32> to vector<16x1xf32>
    %cst_85 = arith.constant 3.200000e+01 : f32
    %237 = vector.broadcast %cst_85 : f32 to vector<16x1xf32>
    %238 = arith.divf %236, %237 : vector<16x1xf32>
    %239 = vector.broadcast %238 : vector<16x1xf32> to vector<16x32xf32>
    %240 = arith.subf %234, %239 : vector<16x32xf32>
    %241 = arith.mulf %240, %240 : vector<16x32xf32>
    %cst_86 = arith.constant dense<0.000000e+00> : vector<16xf32>
    %242 = vector.multi_reduction <add>, %241, %cst_86 [1] : vector<16x32xf32> to vector<16xf32>
    %243 = vector.shape_cast %242 : vector<16xf32> to vector<16x1xf32>
    %cst_87 = arith.constant 3.200000e+01 : f32
    %244 = vector.broadcast %cst_87 : f32 to vector<16x1xf32>
    %245 = arith.divf %243, %244 : vector<16x1xf32>
    %246 = vector.broadcast %238 : vector<16x1xf32> to vector<16x32xf32>
    %247 = arith.subf %234, %246 : vector<16x32xf32>
    %cst_88 = arith.constant 9.99999974E-6 : f32
    %248 = vector.broadcast %cst_88 : f32 to vector<16x1xf32>
    %249 = arith.addf %245, %248 : vector<16x1xf32>
    %250 = math.rsqrt %249 : vector<16x1xf32>
    %251 = vector.broadcast %250 : vector<16x1xf32> to vector<16x32xf32>
    %252 = arith.mulf %247, %251 : vector<16x32xf32>
    %253 = vector.broadcast %195 : vector<1x32xf32> to vector<16x32xf32>
    %254 = arith.mulf %252, %253 : vector<16x32xf32>
    %255 = vector.broadcast %196 : vector<1x32xf32> to vector<16x32xf32>
    %256 = arith.addf %254, %255 : vector<16x32xf32>
    %c424 = arith.constant 424 : index
    %c0_89 = arith.constant 0 : index
    %257 = vector.load %arg1[%c424, %c0_89] : memref<720x128xf32, #tpu.memory_space<vmem>>, vector<32x32xf32>
    %cst_90 = arith.constant dense<0.000000e+00> : vector<16x32xf32>
    %258 = tpu.matmul %256, %257, %cst_90 {dimension_numbers = #tpu.dot_dimension_numbers<[1], [0], [0], [1], [0, 0, 1, 1], [], []>} : vector<16x32xf32>, vector<32x32xf32>, vector<16x32xf32> -> vector<16x32xf32>
    %c648 = arith.constant 648 : index
    %c0_91 = arith.constant 0 : index
    %259 = vector.load %arg1[%c648, %c0_91] : memref<720x128xf32, #tpu.memory_space<vmem>>, vector<1x32xf32>
    %260 = vector.broadcast %259 : vector<1x32xf32> to vector<16x32xf32>
    %261 = arith.addf %258, %260 : vector<16x32xf32>
    %c456 = arith.constant 456 : index
    %c0_92 = arith.constant 0 : index
    %262 = vector.load %arg1[%c456, %c0_92] : memref<720x128xf32, #tpu.memory_space<vmem>>, vector<32x64xf32>
    %cst_93 = arith.constant dense<0.000000e+00> : vector<16x64xf32>
    %263 = tpu.matmul %1, %262, %cst_93 {dimension_numbers = #tpu.dot_dimension_numbers<[1], [0], [0], [1], [0, 0, 1, 1], [], []>} : vector<16x32xf32>, vector<32x64xf32>, vector<16x64xf32> -> vector<16x64xf32>
    %c656 = arith.constant 656 : index
    %c0_94 = arith.constant 0 : index
    %264 = vector.load %arg1[%c656, %c0_94] : memref<720x128xf32, #tpu.memory_space<vmem>>, vector<1x64xf32>
    %265 = vector.broadcast %264 : vector<1x64xf32> to vector<16x64xf32>
    %266 = arith.addf %263, %265 : vector<16x64xf32>
    %c488 = arith.constant 488 : index
    %c0_95 = arith.constant 0 : index
    %267 = vector.load %arg1[%c488, %c0_95] : memref<720x128xf32, #tpu.memory_space<vmem>>, vector<32x32xf32>
    %c664 = arith.constant 664 : index
    %c0_96 = arith.constant 0 : index
    %268 = vector.load %arg1[%c664, %c0_96] : memref<720x128xf32, #tpu.memory_space<vmem>>, vector<1x32xf32>
    %c672 = arith.constant 672 : index
    %c0_97 = arith.constant 0 : index
    %269 = vector.load %arg1[%c672, %c0_97] : memref<720x128xf32, #tpu.memory_space<vmem>>, vector<1x32xf32>
    %c680 = arith.constant 680 : index
    %c0_98 = arith.constant 0 : index
    %270 = vector.load %arg1[%c680, %c0_98] : memref<720x128xf32, #tpu.memory_space<vmem>>, vector<1x32xf32>
    %271 = vector.extract_strided_slice %261 {offsets = [0, 0], sizes = [16, 16], strides = [1, 1]} : vector<16x32xf32> to vector<16x16xf32>
    %272 = vector.extract_strided_slice %266 {offsets = [0, 0], sizes = [16, 16], strides = [1, 1]} : vector<16x64xf32> to vector<16x16xf32>
    %273 = vector.extract_strided_slice %266 {offsets = [0, 32], sizes = [16, 16], strides = [1, 1]} : vector<16x64xf32> to vector<16x16xf32>
    %cst_99 = arith.constant dense<0.000000e+00> : vector<16x16xf32>
    %274 = tpu.matmul %271, %272, %cst_99 {dimension_numbers = #tpu.dot_dimension_numbers<[1], [1], [0], [0], [0, 0, 1, 0], [], []>} : vector<16x16xf32>, vector<16x16xf32>, vector<16x16xf32> -> vector<16x16xf32>
    %275 = arith.addf %274, %3 : vector<16x16xf32>
    %cst_100 = arith.constant dense<0xFF800000> : vector<16xf32>
    %276 = vector.multi_reduction <maximumf>, %275, %cst_100 [1] : vector<16x16xf32> to vector<16xf32>
    %277 = vector.shape_cast %276 : vector<16xf32> to vector<16x1xf32>
    %278 = vector.broadcast %277 : vector<16x1xf32> to vector<16x16xf32>
    %279 = arith.subf %275, %278 : vector<16x16xf32>
    %280 = math.exp %279 : vector<16x16xf32>
    %cst_101 = arith.constant dense<0.000000e+00> : vector<16xf32>
    %281 = vector.multi_reduction <add>, %280, %cst_101 [1] : vector<16x16xf32> to vector<16xf32>
    %282 = vector.shape_cast %281 : vector<16xf32> to vector<16x1xf32>
    %283 = vector.broadcast %282 : vector<16x1xf32> to vector<16x16xf32>
    %284 = arith.divf %280, %283 : vector<16x16xf32>
    %cst_102 = arith.constant dense<0.000000e+00> : vector<16x16xf32>
    %285 = tpu.matmul %284, %273, %cst_102 {dimension_numbers = #tpu.dot_dimension_numbers<[1], [0], [0], [1], [0, 0, 1, 1], [], []>} : vector<16x16xf32>, vector<16x16xf32>, vector<16x16xf32> -> vector<16x16xf32>
    %286 = vector.extract_strided_slice %267 {offsets = [0, 0], sizes = [16, 32], strides = [1, 1]} : vector<32x32xf32> to vector<16x32xf32>
    %cst_103 = arith.constant dense<0.000000e+00> : vector<16x32xf32>
    %287 = tpu.matmul %285, %286, %cst_103 {dimension_numbers = #tpu.dot_dimension_numbers<[1], [0], [0], [1], [0, 0, 1, 1], [], []>} : vector<16x16xf32>, vector<16x32xf32>, vector<16x32xf32> -> vector<16x32xf32>
    %288 = vector.extract_strided_slice %261 {offsets = [0, 16], sizes = [16, 16], strides = [1, 1]} : vector<16x32xf32> to vector<16x16xf32>
    %289 = vector.extract_strided_slice %266 {offsets = [0, 16], sizes = [16, 16], strides = [1, 1]} : vector<16x64xf32> to vector<16x16xf32>
    %290 = vector.extract_strided_slice %266 {offsets = [0, 48], sizes = [16, 16], strides = [1, 1]} : vector<16x64xf32> to vector<16x16xf32>
    %cst_104 = arith.constant dense<0.000000e+00> : vector<16x16xf32>
    %291 = tpu.matmul %288, %289, %cst_104 {dimension_numbers = #tpu.dot_dimension_numbers<[1], [1], [0], [0], [0, 0, 1, 0], [], []>} : vector<16x16xf32>, vector<16x16xf32>, vector<16x16xf32> -> vector<16x16xf32>
    %292 = arith.addf %291, %3 : vector<16x16xf32>
    %cst_105 = arith.constant dense<0xFF800000> : vector<16xf32>
    %293 = vector.multi_reduction <maximumf>, %292, %cst_105 [1] : vector<16x16xf32> to vector<16xf32>
    %294 = vector.shape_cast %293 : vector<16xf32> to vector<16x1xf32>
    %295 = vector.broadcast %294 : vector<16x1xf32> to vector<16x16xf32>
    %296 = arith.subf %292, %295 : vector<16x16xf32>
    %297 = math.exp %296 : vector<16x16xf32>
    %cst_106 = arith.constant dense<0.000000e+00> : vector<16xf32>
    %298 = vector.multi_reduction <add>, %297, %cst_106 [1] : vector<16x16xf32> to vector<16xf32>
    %299 = vector.shape_cast %298 : vector<16xf32> to vector<16x1xf32>
    %300 = vector.broadcast %299 : vector<16x1xf32> to vector<16x16xf32>
    %301 = arith.divf %297, %300 : vector<16x16xf32>
    %cst_107 = arith.constant dense<0.000000e+00> : vector<16x16xf32>
    %302 = tpu.matmul %301, %290, %cst_107 {dimension_numbers = #tpu.dot_dimension_numbers<[1], [0], [0], [1], [0, 0, 1, 1], [], []>} : vector<16x16xf32>, vector<16x16xf32>, vector<16x16xf32> -> vector<16x16xf32>
    %303 = vector.extract_strided_slice %267 {offsets = [16, 0], sizes = [16, 32], strides = [1, 1]} : vector<32x32xf32> to vector<16x32xf32>
    %cst_108 = arith.constant dense<0.000000e+00> : vector<16x32xf32>
    %304 = tpu.matmul %302, %303, %cst_108 {dimension_numbers = #tpu.dot_dimension_numbers<[1], [0], [0], [1], [0, 0, 1, 1], [], []>} : vector<16x16xf32>, vector<16x32xf32>, vector<16x32xf32> -> vector<16x32xf32>
    %305 = arith.addf %287, %304 : vector<16x32xf32>
    %306 = vector.broadcast %268 : vector<1x32xf32> to vector<16x32xf32>
    %307 = arith.addf %305, %306 : vector<16x32xf32>
    %308 = arith.addf %307, %256 : vector<16x32xf32>
    %cst_109 = arith.constant dense<0.000000e+00> : vector<16xf32>
    %309 = vector.multi_reduction <add>, %308, %cst_109 [1] : vector<16x32xf32> to vector<16xf32>
    %310 = vector.shape_cast %309 : vector<16xf32> to vector<16x1xf32>
    %cst_110 = arith.constant 3.200000e+01 : f32
    %311 = vector.broadcast %cst_110 : f32 to vector<16x1xf32>
    %312 = arith.divf %310, %311 : vector<16x1xf32>
    %313 = vector.broadcast %312 : vector<16x1xf32> to vector<16x32xf32>
    %314 = arith.subf %308, %313 : vector<16x32xf32>
    %315 = arith.mulf %314, %314 : vector<16x32xf32>
    %cst_111 = arith.constant dense<0.000000e+00> : vector<16xf32>
    %316 = vector.multi_reduction <add>, %315, %cst_111 [1] : vector<16x32xf32> to vector<16xf32>
    %317 = vector.shape_cast %316 : vector<16xf32> to vector<16x1xf32>
    %cst_112 = arith.constant 3.200000e+01 : f32
    %318 = vector.broadcast %cst_112 : f32 to vector<16x1xf32>
    %319 = arith.divf %317, %318 : vector<16x1xf32>
    %320 = vector.broadcast %312 : vector<16x1xf32> to vector<16x32xf32>
    %321 = arith.subf %308, %320 : vector<16x32xf32>
    %cst_113 = arith.constant 9.99999974E-6 : f32
    %322 = vector.broadcast %cst_113 : f32 to vector<16x1xf32>
    %323 = arith.addf %319, %322 : vector<16x1xf32>
    %324 = math.rsqrt %323 : vector<16x1xf32>
    %325 = vector.broadcast %324 : vector<16x1xf32> to vector<16x32xf32>
    %326 = arith.mulf %321, %325 : vector<16x32xf32>
    %327 = vector.broadcast %269 : vector<1x32xf32> to vector<16x32xf32>
    %328 = arith.mulf %326, %327 : vector<16x32xf32>
    %329 = vector.broadcast %270 : vector<1x32xf32> to vector<16x32xf32>
    %330 = arith.addf %328, %329 : vector<16x32xf32>
    %c520 = arith.constant 520 : index
    %c0_114 = arith.constant 0 : index
    %331 = vector.load %arg1[%c520, %c0_114] : memref<720x128xf32, #tpu.memory_space<vmem>>, vector<32x64xf32>
    %cst_115 = arith.constant dense<0.000000e+00> : vector<16x64xf32>
    %332 = tpu.matmul %330, %331, %cst_115 {dimension_numbers = #tpu.dot_dimension_numbers<[1], [0], [0], [1], [0, 0, 1, 1], [], []>} : vector<16x32xf32>, vector<32x64xf32>, vector<16x64xf32> -> vector<16x64xf32>
    %c688 = arith.constant 688 : index
    %c0_116 = arith.constant 0 : index
    %333 = vector.load %arg1[%c688, %c0_116] : memref<720x128xf32, #tpu.memory_space<vmem>>, vector<1x64xf32>
    %334 = vector.broadcast %333 : vector<1x64xf32> to vector<16x64xf32>
    %335 = arith.addf %332, %334 : vector<16x64xf32>
    %cst_117 = arith.constant 0.000000e+00 : f32
    %336 = vector.broadcast %cst_117 : f32 to vector<16x64xf32>
    %337 = arith.maximumf %335, %336 : vector<16x64xf32>
    %c552 = arith.constant 552 : index
    %c0_118 = arith.constant 0 : index
    %338 = vector.load %arg1[%c552, %c0_118] : memref<720x128xf32, #tpu.memory_space<vmem>>, vector<64x32xf32>
    %cst_119 = arith.constant dense<0.000000e+00> : vector<16x32xf32>
    %339 = tpu.matmul %337, %338, %cst_119 {dimension_numbers = #tpu.dot_dimension_numbers<[1], [0], [0], [1], [0, 0, 1, 1], [], []>} : vector<16x64xf32>, vector<64x32xf32>, vector<16x32xf32> -> vector<16x32xf32>
    %c696 = arith.constant 696 : index
    %c0_120 = arith.constant 0 : index
    %340 = vector.load %arg1[%c696, %c0_120] : memref<720x128xf32, #tpu.memory_space<vmem>>, vector<1x32xf32>
    %341 = vector.broadcast %340 : vector<1x32xf32> to vector<16x32xf32>
    %342 = arith.addf %339, %341 : vector<16x32xf32>
    %343 = arith.addf %342, %330 : vector<16x32xf32>
    %c704 = arith.constant 704 : index
    %c0_121 = arith.constant 0 : index
    %344 = vector.load %arg1[%c704, %c0_121] : memref<720x128xf32, #tpu.memory_space<vmem>>, vector<1x32xf32>
    %c712 = arith.constant 712 : index
    %c0_122 = arith.constant 0 : index
    %345 = vector.load %arg1[%c712, %c0_122] : memref<720x128xf32, #tpu.memory_space<vmem>>, vector<1x32xf32>
    %cst_123 = arith.constant dense<0.000000e+00> : vector<16xf32>
    %346 = vector.multi_reduction <add>, %343, %cst_123 [1] : vector<16x32xf32> to vector<16xf32>
    %347 = vector.shape_cast %346 : vector<16xf32> to vector<16x1xf32>
    %cst_124 = arith.constant 3.200000e+01 : f32
    %348 = vector.broadcast %cst_124 : f32 to vector<16x1xf32>
    %349 = arith.divf %347, %348 : vector<16x1xf32>
    %350 = vector.broadcast %349 : vector<16x1xf32> to vector<16x32xf32>
    %351 = arith.subf %343, %350 : vector<16x32xf32>
    %352 = arith.mulf %351, %351 : vector<16x32xf32>
    %cst_125 = arith.constant dense<0.000000e+00> : vector<16xf32>
    %353 = vector.multi_reduction <add>, %352, %cst_125 [1] : vector<16x32xf32> to vector<16xf32>
    %354 = vector.shape_cast %353 : vector<16xf32> to vector<16x1xf32>
    %cst_126 = arith.constant 3.200000e+01 : f32
    %355 = vector.broadcast %cst_126 : f32 to vector<16x1xf32>
    %356 = arith.divf %354, %355 : vector<16x1xf32>
    %357 = vector.broadcast %349 : vector<16x1xf32> to vector<16x32xf32>
    %358 = arith.subf %343, %357 : vector<16x32xf32>
    %cst_127 = arith.constant 9.99999974E-6 : f32
    %359 = vector.broadcast %cst_127 : f32 to vector<16x1xf32>
    %360 = arith.addf %356, %359 : vector<16x1xf32>
    %361 = math.rsqrt %360 : vector<16x1xf32>
    %362 = vector.broadcast %361 : vector<16x1xf32> to vector<16x32xf32>
    %363 = arith.mulf %358, %362 : vector<16x32xf32>
    %364 = vector.broadcast %344 : vector<1x32xf32> to vector<16x32xf32>
    %365 = arith.mulf %363, %364 : vector<16x32xf32>
    %366 = vector.broadcast %345 : vector<1x32xf32> to vector<16x32xf32>
    %367 = arith.addf %365, %366 : vector<16x32xf32>
    %c0_128 = arith.constant 0 : index
    %c0_129 = arith.constant 0 : index
    %368 = vector.load %arg2[%c0_128, %c0_129] : memref<16x256xf32, #tpu.memory_space<vmem>>, vector<16x32xf32>
    tpu.vector_store %arg2[%c0_128, %c0_129], %367 {strides = array<i32>} : memref<16x256xf32, #tpu.memory_space<vmem>>, vector<16x32xf32>,
    %c0_130 = arith.constant 0 : index
    %c32_131 = arith.constant 32 : index
    %369 = vector.load %arg2[%c0_130, %c32_131] : memref<16x256xf32, #tpu.memory_space<vmem>>, vector<16x16xf32>
    tpu.vector_store %arg2[%c0_130, %c32_131], %28 {strides = array<i32>} : memref<16x256xf32, #tpu.memory_space<vmem>>, vector<16x16xf32>,
    %c0_132 = arith.constant 0 : index
    %c48 = arith.constant 48 : index
    %370 = vector.load %arg2[%c0_132, %c48] : memref<16x256xf32, #tpu.memory_space<vmem>>, vector<16x16xf32>
    tpu.vector_store %arg2[%c0_132, %c48], %45 {strides = array<i32>} : memref<16x256xf32, #tpu.memory_space<vmem>>, vector<16x16xf32>,
    %c0_133 = arith.constant 0 : index
    %c64_134 = arith.constant 64 : index
    %371 = vector.load %arg2[%c0_133, %c64_134] : memref<16x256xf32, #tpu.memory_space<vmem>>, vector<16x16xf32>
    tpu.vector_store %arg2[%c0_133, %c64_134], %210 {strides = array<i32>} : memref<16x256xf32, #tpu.memory_space<vmem>>, vector<16x16xf32>,
    %c0_135 = arith.constant 0 : index
    %c80_136 = arith.constant 80 : index
    %372 = vector.load %arg2[%c0_135, %c80_136] : memref<16x256xf32, #tpu.memory_space<vmem>>, vector<16x16xf32>
    tpu.vector_store %arg2[%c0_135, %c80_136], %227 {strides = array<i32>} : memref<16x256xf32, #tpu.memory_space<vmem>>, vector<16x16xf32>,
    %c0_137 = arith.constant 0 : index
    %c96_138 = arith.constant 96 : index
    %373 = vector.load %arg2[%c0_137, %c96_138] : memref<16x256xf32, #tpu.memory_space<vmem>>, vector<16x16xf32>
    tpu.vector_store %arg2[%c0_137, %c96_138], %102 {strides = array<i32>} : memref<16x256xf32, #tpu.memory_space<vmem>>, vector<16x16xf32>,
    %c0_139 = arith.constant 0 : index
    %c112 = arith.constant 112 : index
    %374 = vector.load %arg2[%c0_139, %c112] : memref<16x256xf32, #tpu.memory_space<vmem>>, vector<16x16xf32>
    tpu.vector_store %arg2[%c0_139, %c112], %119 {strides = array<i32>} : memref<16x256xf32, #tpu.memory_space<vmem>>, vector<16x16xf32>,
    %c0_140 = arith.constant 0 : index
    %c128_141 = arith.constant 128 : index
    %375 = vector.load %arg2[%c0_140, %c128_141] : memref<16x256xf32, #tpu.memory_space<vmem>>, vector<16x16xf32>
    tpu.vector_store %arg2[%c0_140, %c128_141], %284 {strides = array<i32>} : memref<16x256xf32, #tpu.memory_space<vmem>>, vector<16x16xf32>,
    %c0_142 = arith.constant 0 : index
    %c144 = arith.constant 144 : index
    %376 = vector.load %arg2[%c0_142, %c144] : memref<16x256xf32, #tpu.memory_space<vmem>>, vector<16x16xf32>
    tpu.vector_store %arg2[%c0_142, %c144], %301 {strides = array<i32>} : memref<16x256xf32, #tpu.memory_space<vmem>>, vector<16x16xf32>,
    %cst_143 = arith.constant 0.000000e+00 : f32
    %377 = vector.broadcast %cst_143 : f32 to vector<16x96xf32>
    %c0_144 = arith.constant 0 : index
    %c160_145 = arith.constant 160 : index
    %378 = vector.load %arg2[%c0_144, %c160_145] : memref<16x256xf32, #tpu.memory_space<vmem>>, vector<16x96xf32>
    tpu.vector_store %arg2[%c0_144, %c160_145], %377 {strides = array<i32>} : memref<16x256xf32, #tpu.memory_space<vmem>>, vector<16x96xf32>,
    return
  }
}

</mosaic_0001>

<llo_original>
// kernel: decoder_forward.1
$region0: #{decoder_forward.1}
  #allocation0 [shape = 'u32[]', space=smem, size = 0x4, offset = 0x4, fixed_abs, tag = 'smem constant byte address 0x4 - core index']
  #allocation1 [shape = 'u32[144,128]{1,0:T(1,128)}', space=vmem, size = 0x12000, scoped, tag = 'internal scratch']
  %s0 = inlined_call_operand.vmem [shape: f32[16,128], index: 0, kind: input, shape index: {}]
  %s1 = inlined_call_operand.vmem [shape: f32[720,128], index: 1, kind: input, shape index: {}]
  %s2 = inlined_call_operand.vmem [shape: f32[16,256], index: 2, kind: output, shape index: {}]
  %s3 = sld [smem:[#allocation0]]
  $region18: #{decoder_forward.1} parent=0
    _
  %s5 = ssub.s32 1, %s3
  %s6 = scalar_select 0, %s5, %s3
  // Predicated region
  $region2: #{decoder_forward.1} parent=0 // pred_check
    _
  $region3: #{decoder_forward.1} parent=0 // pred_check_branch
    %8 = sbr.rel (0) target = $region5
  $region4: #{decoder_forward.1} parent=0 // pred_region
    _
  $region5: #{decoder_forward.1} parent=0 // pred_fallthru
    _
  // Predicated region
  $region6: #{decoder_forward.1} parent=0 // pred_check
    _
  $region7: #{decoder_forward.1} parent=0 // pred_check_branch
    %10 = sbr.rel (0) target = $region9
  $region8: #{decoder_forward.1} parent=0 // pred_region
    _
  $region9: #{decoder_forward.1} parent=0 // pred_fallthru
    _
  %v11 = vld [vmem:[%s0] sm:$0xff]
  %v12 = vld [vmem:[%s0 + $0x8] sm:$0xff]
  %v13 = vld [vmem:[%s1] sm:$0xff]
  %v14 = vld [vmem:[%s1 + $0x8] sm:$0xff]
  %v15 = vld [vmem:[%s1 + $0x10] sm:$0xff]
  %v16 = vld [vmem:[%s1 + $0x18] sm:$0xff]
  %v17 = vld [vmem:[%s1 + $0x100] sm:$0x1]
  %v18 = vlaneseq
  %v19 = vshrl.u32 %v18, 7
  %v20 = vsub.s32 0, %v19
  %v21 = vrot.slane %v17, %v20
  %vm22 = vcmask 261120
  %v24 = vsel %vm22, %v11, 0
  %v27 = vsel %vm22, %v12, 0
  %29 = vmatprep.subr.mxu0 0.0
  %30 = vmatpush1.msra.mxu0 %v13
  %31 = vmatprep.subr.mxu0 0.0
  %32 = vmatpush1.msra.mxu0 %v14
  %33 = vmatprep.subr.mxu0 0.0
  %34 = vmatpush1.msra.mxu0 %v15
  %35 = vmatprep.subr.mxu0 0.0
  %36 = vmatpush1.msra.mxu0 %v16
  %37 = vmatprep.subr.mxu0 0.0
  %38 = vmatpush1.msra.mxu0 0.0
  %39 = vmatprep.subr.mxu0 0.0
  %40 = vmatpush1.msra.mxu0 0.0
  %41 = vmatprep.subr.mxu0 0.0
  %42 = vmatpush1.msra.mxu0 0.0
  %43 = vmatprep.subr.mxu0 0.0
  %44 = vmatpush1.msra.mxu0 0.0
  %45 = vmatprep.subr.mxu0 0.0
  %46 = vmatpush1.msra.mxu0 0.0
  %47 = vmatprep.subr.mxu0 0.0
  %48 = vmatpush1.msra.mxu0 0.0
  %49 = vmatprep.subr.mxu0 0.0
  %50 = vmatpush1.msra.mxu0 0.0
  %51 = vmatprep.subr.mxu0 0.0
  %52 = vmatpush1.msra.mxu0 0.0
  %53 = vmatprep.subr.mxu0 0.0
  %54 = vmatpush1.msra.mxu0 0.0
  %55 = vmatprep.subr.mxu0 0.0
  %56 = vmatpush1.msra.mxu0 0.0
  %57 = vmatprep.subr.mxu0 0.0
  %58 = vmatpush1.msra.mxu0 0.0
  %59 = vmatprep.subr.mxu0 0.0
  %60 = vmatpush1.msra.mxu0 0.0
  %61 = vmatprep.subr.mxu0 0.0
  %62 = vmatpush1.msra.mxu0 0.0
  %63 = vmatprep.subr.mxu0 0.0
  %64 = vmatpush1.msra.mxu0 0.0
  %65 = vmatprep.subr.mxu0 0.0
  %66 = vmatpush1.msra.mxu0 0.0
  %67 = vmatprep.subr.mxu0 0.0
  %68 = vmatpush1.msra.mxu0 0.0
  %69 = vmatprep.subr.mxu0 0.0
  %70 = vmatpush1.msra.mxu0 0.0
  %71 = vmatprep.subr.mxu0 0.0
  %72 = vmatpush1.msra.mxu0 0.0
  %73 = vmatprep.subr.mxu0 0.0
  %74 = vmatpush1.msra.mxu0 0.0
  %75 = vmatprep.subr.mxu0 0.0
  %76 = vmatpush1.msra.mxu0 0.0
  %77 = vmatprep.subr.mxu0 0.0
  %78 = vmatpush1.msra.mxu0 0.0
  %79 = vmatprep.subr.mxu0 0.0
  %80 = vmatpush1.msra.mxu0 0.0
  %81 = vmatprep.subr.mxu0 0.0
  %82 = vmatpush1.msra.mxu0 0.0
  %83 = vmatprep.subr.mxu0 0.0
  %84 = vmatpush1.msra.mxu0 0.0
  %85 = vmatprep.subr.mxu0 0.0
  %86 = vmatpush1.msra.mxu0 0.0
  %87 = vmatprep.subr.mxu0 0.0
  %88 = vmatpush1.msra.mxu0 0.0
  %89 = vmatprep.subr.mxu0 0.0
  %90 = vmatpush1.msra.mxu0 0.0
  %91 = vmatprep.subr.mxu0 0.0
  %92 = vmatpush1.msra.mxu0 0.0
  %93 = vmatprep.mubr.f32.mxu0 0.0
  %94 = vmatmul.mubr.f32.gmra.mrb[0].mxu0 %v24
  %v95 = vpop.f32.mrb[0].mxu0
  %v96 = vadd.f32 %v21, %v95
  %v97 = vpop.f32.mrb[0].mxu0
  %98 = vmatprep.mubr.f32.mxu0 0.0
  %99 = vmatmul.mubr.f32.gmra.mrb[0].mxu0 %v27
  %v100 = vpop.f32.mrb[0].mxu0
  %v101 = vadd.f32 %v21, %v100
  %v102 = vpop.f32.mrb[0].mxu0
  %103 = vdwg.mxu0
  %v104 = vld [vmem:[%s1 + $0x20] sm:$0xff]
  %v105 = vld [vmem:[%s1 + $0x28] sm:$0xff]
  %v106 = vld [vmem:[%s1 + $0x30] sm:$0xff]
  %v107 = vld [vmem:[%s1 + $0x38] sm:$0xff]
  %v108 = vld [vmem:[%s1 + $0x108] sm:$0x1]
  %v109 = vld [vmem:[%s1 + $0x110] sm:$0x1]
  %v110 = vld [vmem:[%s1 + $0x118] sm:$0x1]
  %113 = vrot.lane.b32.xlu0 %v96, 96
  %v114 = vpop.permute.xlu0 %113
  %115 = vrot.lane.b32.xlu0 %v101, 96
  %v116 = vpop.permute.xlu0 %115
  %117 = vrot.lane.b32.xlu0 %v11, 64
  %v118 = vpop.permute.xlu0 %117
  %119 = vrot.lane.b32.xlu0 %v12, 64
  %v120 = vpop.permute.xlu0 %119
  %vm123 = vcmask 130048
  %v124 = vsel %vm123, %v96, 0
  %v126 = vsel %vm123, %v101, 0
  %v128 = vsel %vm123, %v114, 0
  %v130 = vsel %vm123, %v116, 0
  %132 = vmatprep.subr.mxu0 0.0
  %133 = vmatpush1.xpose.msra.mxu0 %v128
  %134 = vmatprep.subr.mxu0 0.0
  %135 = vmatpush1.xpose.msra.mxu0 %v130
  %136 = vmatprep.subr.mxu0 0.0
  %137 = vmatpush1.xpose.msra.mxu0 0.0
  %138 = vmatprep.subr.mxu0 0.0
  %139 = vmatpush1.xpose.msra.mxu0 0.0
  %140 = vmatprep.subr.mxu0 0.0
  %141 = vmatpush1.xpose.msra.mxu0 0.0
  %142 = vmatprep.subr.mxu0 0.0
  %143 = vmatpush1.xpose.msra.mxu0 0.0
  %144 = vmatprep.subr.mxu0 0.0
  %145 = vmatpush1.xpose.msra.mxu0 0.0
  %146 = vmatprep.subr.mxu0 0.0
  %147 = vmatpush1.xpose.msra.mxu0 0.0
  %148 = vmatprep.subr.mxu0 0.0
  %149 = vmatpush1.xpose.msra.mxu0 0.0
  %150 = vmatprep.subr.mxu0 0.0
  %151 = vmatpush1.xpose.msra.mxu0 0.0
  %152 = vmatprep.subr.mxu0 0.0
  %153 = vmatpush1.xpose.msra.mxu0 0.0
  %154 = vmatprep.subr.mxu0 0.0
  %155 = vmatpush1.xpose.msra.mxu0 0.0
  %156 = vmatprep.subr.mxu0 0.0
  %157 = vmatpush1.xpose.msra.mxu0 0.0
  %158 = vmatprep.subr.mxu0 0.0
  %159 = vmatpush1.xpose.msra.mxu0 0.0
  %160 = vmatprep.subr.mxu0 0.0
  %161 = vmatpush1.xpose.msra.mxu0 0.0
  %162 = vmatprep.subr.mxu0 0.0
  %163 = vmatpush1.xpose.msra.mxu0 0.0
  %164 = vmatprep.subr.mxu0 0.0
  %165 = vmatpush1.xpose.msra.mxu0 0.0
  %166 = vmatprep.subr.mxu0 0.0
  %167 = vmatpush1.xpose.msra.mxu0 0.0
  %168 = vmatprep.subr.mxu0 0.0
  %169 = vmatpush1.xpose.msra.mxu0 0.0
  %170 = vmatprep.subr.mxu0 0.0
  %171 = vmatpush1.xpose.msra.mxu0 0.0
  %172 = vmatprep.subr.mxu0 0.0
  %173 = vmatpush1.xpose.msra.mxu0 0.0
  %174 = vmatprep.subr.mxu0 0.0
  %175 = vmatpush1.xpose.msra.mxu0 0.0
  %176 = vmatprep.subr.mxu0 0.0
  %177 = vmatpush1.xpose.msra.mxu0 0.0
  %178 = vmatprep.subr.mxu0 0.0
  %179 = vmatpush1.xpose.msra.mxu0 0.0
  %180 = vmatprep.subr.mxu0 0.0
  %181 = vmatpush1.xpose.msra.mxu0 0.0
  %182 = vmatprep.subr.mxu0 0.0
  %183 = vmatpush1.xpose.msra.mxu0 0.0
  %184 = vmatprep.subr.mxu0 0.0
  %185 = vmatpush1.xpose.msra.mxu0 0.0
  %186 = vmatprep.subr.mxu0 0.0
  %187 = vmatpush1.xpose.msra.mxu0 0.0
  %188 = vmatprep.subr.mxu0 0.0
  %189 = vmatpush1.xpose.msra.mxu0 0.0
  %190 = vmatprep.subr.mxu0 0.0
  %191 = vmatpush1.xpose.msra.mxu0 0.0
  %192 = vmatprep.subr.mxu0 0.0
  %193 = vmatpush1.xpose.msra.mxu0 0.0
  %194 = vmatprep.subr.mxu0 0.0
  %195 = vmatpush1.xpose.msra.mxu0 0.0
  %196 = vmatprep.mubr.f32.mxu0 0.0
  %197 = vmatmul.mubr.f32.gmra.mrb[0].mxu0 %v124
  %v198 = vpop.f32.mrb[0].mxu0
  %v199 = vadd.f32 %v118, %v198
  %v200 = vpop.f32.mrb[0].mxu0
  %201 = vmatprep.mubr.f32.mxu0 0.0
  %202 = vmatmul.mubr.f32.gmra.mrb[0].mxu0 %v126
  %v203 = vpop.f32.mrb[0].mxu0
  %v204 = vadd.f32 %v120, %v203
  %v205 = vpop.f32.mrb[0].mxu0
  %206 = vdwg.mxu0
  %v207 = vsel %vm123, %v199, -inf
  %208 = vmax.xlane.f32.xlu0 %v207
  %v209 = vpop.xlane.xlu0 %208
  %v210 = vsel %vm123, %v204, -inf
  %211 = vmax.xlane.f32.xlu0 %v210
  %v212 = vpop.xlane.xlu0 %211
  %v213 = vsub.f32 %v199, %v209
  %v214 = vsub.f32 %v204, %v212
  %v215 = vmul.f32 %v213, 1.442695
  %v216 = vpow.pop %v215
  %v217 = vmul.f32 %v214, 1.442695
  %v218 = vpow.pop %v217
  %v219 = vsel %vm123, %v216, 0.0
  %220 = vadd.xlane.f32.xlu0 %v219
  %v221 = vpop.xlane.xlu0 %220
  %v222 = vsel %vm123, %v218, 0.0
  %223 = vadd.xlane.f32.xlu0 %v222
  %v224 = vpop.xlane.xlu0 %223
  %v225 = vrcp.pop %v221
  %v226 = vmul.f32 %v216, %v225
  %v227 = vrcp.pop %v224
  %v228 = vmul.f32 %v218, %v227
  %229 = vrot.lane.b32.xlu0 %v96, 64
  %v230 = vpop.permute.xlu0 %229
  %231 = vrot.lane.b32.xlu0 %v101, 64
  %v232 = vpop.permute.xlu0 %231
  %v236 = vsel %vm123, %v226, 0
  %v239 = vsel %vm123, %v228, 0
  %241 = vmatprep.subr.mxu0 0.0
  %242 = vmatpush1.msra.mxu0 %v230
  %243 = vmatprep.subr.mxu0 0.0
  %244 = vmatpush1.msra.mxu0 %v232
  %245 = vmatprep.subr.mxu0 0.0
  %246 = vmatpush1.msra.mxu0 0.0
  %247 = vmatprep.subr.mxu0 0.0
  %248 = vmatpush1.msra.mxu0 0.0
  %249 = vmatprep.subr.mxu0 0.0
  %250 = vmatpush1.msra.mxu0 0.0
  %251 = vmatprep.subr.mxu0 0.0
  %252 = vmatpush1.msra.mxu0 0.0
  %253 = vmatprep.subr.mxu0 0.0
  %254 = vmatpush1.msra.mxu0 0.0
  %255 = vmatprep.subr.mxu0 0.0
  %256 = vmatpush1.msra.mxu0 0.0
  %257 = vmatprep.subr.mxu0 0.0
  %258 = vmatpush1.msra.mxu0 0.0
  %259 = vmatprep.subr.mxu0 0.0
  %260 = vmatpush1.msra.mxu0 0.0
  %261 = vmatprep.subr.mxu0 0.0
  %262 = vmatpush1.msra.mxu0 0.0
  %263 = vmatprep.subr.mxu0 0.0
  %264 = vmatpush1.msra.mxu0 0.0
  %265 = vmatprep.subr.mxu0 0.0
  %266 = vmatpush1.msra.mxu0 0.0
  %267 = vmatprep.subr.mxu0 0.0
  %268 = vmatpush1.msra.mxu0 0.0
  %269 = vmatprep.subr.mxu0 0.0
  %270 = vmatpush1.msra.mxu0 0.0
  %271 = vmatprep.subr.mxu0 0.0
  %272 = vmatpush1.msra.mxu0 0.0
  %273 = vmatprep.subr.mxu0 0.0
  %274 = vmatpush1.msra.mxu0 0.0
  %275 = vmatprep.subr.mxu0 0.0
  %276 = vmatpush1.msra.mxu0 0.0
  %277 = vmatprep.subr.mxu0 0.0
  %278 = vmatpush1.msra.mxu0 0.0
  %279 = vmatprep.subr.mxu0 0.0
  %280 = vmatpush1.msra.mxu0 0.0
  %281 = vmatprep.subr.mxu0 0.0
  %282 = vmatpush1.msra.mxu0 0.0
  %283 = vmatprep.subr.mxu0 0.0
  %284 = vmatpush1.msra.mxu0 0.0
  %285 = vmatprep.subr.mxu0 0.0
  %286 = vmatpush1.msra.mxu0 0.0
  %287 = vmatprep.subr.mxu0 0.0
  %288 = vmatpush1.msra.mxu0 0.0
  %289 = vmatprep.subr.mxu0 0.0
  %290 = vmatpush1.msra.mxu0 0.0
  %291 = vmatprep.subr.mxu0 0.0
  %292 = vmatpush1.msra.mxu0 0.0
  %293 = vmatprep.subr.mxu0 0.0
  %294 = vmatpush1.msra.mxu0 0.0
  %295 = vmatprep.subr.mxu0 0.0
  %296 = vmatpush1.msra.mxu0 0.0
  %297 = vmatprep.subr.mxu0 0.0
  %298 = vmatpush1.msra.mxu0 0.0
  %299 = vmatprep.subr.mxu0 0.0
  %300 = vmatpush1.msra.mxu0 0.0
  %301 = vmatprep.subr.mxu0 0.0
  %302 = vmatpush1.msra.mxu0 0.0
  %303 = vmatprep.subr.mxu0 0.0
  %304 = vmatpush1.msra.mxu0 0.0
  %305 = vmatprep.mubr.f32.mxu0 0.0
  %306 = vmatmul.mubr.f32.gmra.mrb[0].mxu0 %v236
  %v307 = vpop.f32.mrb[0].mxu0
  %v308 = vadd.f32 0.0, %v307
  %v309 = vpop.f32.mrb[0].mxu0
  %310 = vmatprep.mubr.f32.mxu0 0.0
  %311 = vmatmul.mubr.f32.gmra.mrb[0].mxu0 %v239
  %v312 = vpop.f32.mrb[0].mxu0
  %v313 = vadd.f32 0.0, %v312
  %v314 = vpop.f32.mrb[0].mxu0
  %315 = vdwg.mxu0
  %316 = vrot.lane.b32.xlu0 %v96, 112
  %v317 = vpop.permute.xlu0 %316
  %318 = vrot.lane.b32.xlu0 %v101, 112
  %v319 = vpop.permute.xlu0 %318
  %320 = vrot.lane.b32.xlu0 %v96, 80
  %v321 = vpop.permute.xlu0 %320
  %322 = vrot.lane.b32.xlu0 %v101, 80
  %v323 = vpop.permute.xlu0 %322
  %v324 = vsel %vm123, %v317, 0
  %v326 = vsel %vm123, %v319, 0
  %v328 = vsel %vm123, %v321, 0
  %v330 = vsel %vm123, %v323, 0
  %332 = vmatprep.subr.mxu0 0.0
  %333 = vmatpush1.xpose.msra.mxu0 %v328
  %334 = vmatprep.subr.mxu0 0.0
  %335 = vmatpush1.xpose.msra.mxu0 %v330
  %336 = vmatprep.subr.mxu0 0.0
  %337 = vmatpush1.xpose.msra.mxu0 0.0
  %338 = vmatprep.subr.mxu0 0.0
  %339 = vmatpush1.xpose.msra.mxu0 0.0
  %340 = vmatprep.subr.mxu0 0.0
  %341 = vmatpush1.xpose.msra.mxu0 0.0
  %342 = vmatprep.subr.mxu0 0.0
  %343 = vmatpush1.xpose.msra.mxu0 0.0
  %344 = vmatprep.subr.mxu0 0.0
  %345 = vmatpush1.xpose.msra.mxu0 0.0
  %346 = vmatprep.subr.mxu0 0.0
  %347 = vmatpush1.xpose.msra.mxu0 0.0
  %348 = vmatprep.subr.mxu0 0.0
  %349 = vmatpush1.xpose.msra.mxu0 0.0
  %350 = vmatprep.subr.mxu0 0.0
  %351 = vmatpush1.xpose.msra.mxu0 0.0
  %352 = vmatprep.subr.mxu0 0.0
  %353 = vmatpush1.xpose.msra.mxu0 0.0
  %354 = vmatprep.subr.mxu0 0.0
  %355 = vmatpush1.xpose.msra.mxu0 0.0
  %356 = vmatprep.subr.mxu0 0.0
  %357 = vmatpush1.xpose.msra.mxu0 0.0
  %358 = vmatprep.subr.mxu0 0.0
  %359 = vmatpush1.xpose.msra.mxu0 0.0
  %360 = vmatprep.subr.mxu0 0.0
  %361 = vmatpush1.xpose.msra.mxu0 0.0
  %362 = vmatprep.subr.mxu0 0.0
  %363 = vmatpush1.xpose.msra.mxu0 0.0
  %364 = vmatprep.subr.mxu0 0.0
  %365 = vmatpush1.xpose.msra.mxu0 0.0
  %366 = vmatprep.subr.mxu0 0.0
  %367 = vmatpush1.xpose.msra.mxu0 0.0
  %368 = vmatprep.subr.mxu0 0.0
  %369 = vmatpush1.xpose.msra.mxu0 0.0
  %370 = vmatprep.subr.mxu0 0.0
  %371 = vmatpush1.xpose.msra.mxu0 0.0
  %372 = vmatprep.subr.mxu0 0.0
  %373 = vmatpush1.xpose.msra.mxu0 0.0
  %374 = vmatprep.subr.mxu0 0.0
  %375 = vmatpush1.xpose.msra.mxu0 0.0
  %376 = vmatprep.subr.mxu0 0.0
  %377 = vmatpush1.xpose.msra.mxu0 0.0
  %378 = vmatprep.subr.mxu0 0.0
  %379 = vmatpush1.xpose.msra.mxu0 0.0
  %380 = vmatprep.subr.mxu0 0.0
  %381 = vmatpush1.xpose.msra.mxu0 0.0
  %382 = vmatprep.subr.mxu0 0.0
  %383 = vmatpush1.xpose.msra.mxu0 0.0
  %384 = vmatprep.subr.mxu0 0.0
  %385 = vmatpush1.xpose.msra.mxu0 0.0
  %386 = vmatprep.subr.mxu0 0.0
  %387 = vmatpush1.xpose.msra.mxu0 0.0
  %388 = vmatprep.subr.mxu0 0.0
  %389 = vmatpush1.xpose.msra.mxu0 0.0
  %390 = vmatprep.subr.mxu0 0.0
  %391 = vmatpush1.xpose.msra.mxu0 0.0
  %392 = vmatprep.subr.mxu0 0.0
  %393 = vmatpush1.xpose.msra.mxu0 0.0
  %394 = vmatprep.subr.mxu0 0.0
  %395 = vmatpush1.xpose.msra.mxu0 0.0
  %396 = vmatprep.mubr.f32.mxu0 0.0
  %397 = vmatmul.mubr.f32.gmra.mrb[0].mxu0 %v324
  %v398 = vpop.f32.mrb[0].mxu0
  %v399 = vadd.f32 %v118, %v398
  %v400 = vpop.f32.mrb[0].mxu0
  %401 = vmatprep.mubr.f32.mxu0 0.0
  %402 = vmatmul.mubr.f32.gmra.mrb[0].mxu0 %v326
  %v403 = vpop.f32.mrb[0].mxu0
  %v404 = vadd.f32 %v120, %v403
  %v405 = vpop.f32.mrb[0].mxu0
  %406 = vdwg.mxu0
  %v407 = vsel %vm123, %v399, -inf
  %408 = vmax.xlane.f32.xlu0 %v407
  %v409 = vpop.xlane.xlu0 %408
  %v410 = vsel %vm123, %v404, -inf
  %411 = vmax.xlane.f32.xlu0 %v410
  %v412 = vpop.xlane.xlu0 %411
  %v413 = vsub.f32 %v399, %v409
  %v414 = vsub.f32 %v404, %v412
  %v415 = vmul.f32 %v413, 1.442695
  %v416 = vpow.pop %v415
  %v417 = vmul.f32 %v414, 1.442695
  %v418 = vpow.pop %v417
  %v419 = vsel %vm123, %v416, 0.0
  %420 = vadd.xlane.f32.xlu0 %v419
  %v421 = vpop.xlane.xlu0 %420
  %v422 = vsel %vm123, %v418, 0.0
  %423 = vadd.xlane.f32.xlu0 %v422
  %v424 = vpop.xlane.xlu0 %423
  %v425 = vrcp.pop %v421
  %v426 = vmul.f32 %v416, %v425
  %v427 = vrcp.pop %v424
  %v428 = vmul.f32 %v418, %v427
  %429 = vrot.lane.b32.xlu0 %v96, 48
  %v430 = vpop.permute.xlu0 %429
  %431 = vrot.lane.b32.xlu0 %v101, 48
  %v432 = vpop.permute.xlu0 %431
  %v436 = vsel %vm123, %v426, 0
  %v439 = vsel %vm123, %v428, 0
  %441 = vmatprep.subr.mxu0 0.0
  %442 = vmatpush1.msra.mxu0 %v430
  %443 = vmatprep.subr.mxu0 0.0
  %444 = vmatpush1.msra.mxu0 %v432
  %445 = vmatprep.subr.mxu0 0.0
  %446 = vmatpush1.msra.mxu0 0.0
  %447 = vmatprep.subr.mxu0 0.0
  %448 = vmatpush1.msra.mxu0 0.0
  %449 = vmatprep.subr.mxu0 0.0
  %450 = vmatpush1.msra.mxu0 0.0
  %451 = vmatprep.subr.mxu0 0.0
  %452 = vmatpush1.msra.mxu0 0.0
  %453 = vmatprep.subr.mxu0 0.0
  %454 = vmatpush1.msra.mxu0 0.0
  %455 = vmatprep.subr.mxu0 0.0
  %456 = vmatpush1.msra.mxu0 0.0
  %457 = vmatprep.subr.mxu0 0.0
  %458 = vmatpush1.msra.mxu0 0.0
  %459 = vmatprep.subr.mxu0 0.0
  %460 = vmatpush1.msra.mxu0 0.0
  %461 = vmatprep.subr.mxu0 0.0
  %462 = vmatpush1.msra.mxu0 0.0
  %463 = vmatprep.subr.mxu0 0.0
  %464 = vmatpush1.msra.mxu0 0.0
  %465 = vmatprep.subr.mxu0 0.0
  %466 = vmatpush1.msra.mxu0 0.0
  %467 = vmatprep.subr.mxu0 0.0
  %468 = vmatpush1.msra.mxu0 0.0
  %469 = vmatprep.subr.mxu0 0.0
  %470 = vmatpush1.msra.mxu0 0.0
  %471 = vmatprep.subr.mxu0 0.0
  %472 = vmatpush1.msra.mxu0 0.0
  %473 = vmatprep.subr.mxu0 0.0
  %474 = vmatpush1.msra.mxu0 0.0
  %475 = vmatprep.subr.mxu0 0.0
  %476 = vmatpush1.msra.mxu0 0.0
  %477 = vmatprep.subr.mxu0 0.0
  %478 = vmatpush1.msra.mxu0 0.0
  %479 = vmatprep.subr.mxu0 0.0
  %480 = vmatpush1.msra.mxu0 0.0
  %481 = vmatprep.subr.mxu0 0.0
  %482 = vmatpush1.msra.mxu0 0.0
  %483 = vmatprep.subr.mxu0 0.0
  %484 = vmatpush1.msra.mxu0 0.0
  %485 = vmatprep.subr.mxu0 0.0
  %486 = vmatpush1.msra.mxu0 0.0
  %487 = vmatprep.subr.mxu0 0.0
  %488 = vmatpush1.msra.mxu0 0.0
  %489 = vmatprep.subr.mxu0 0.0
  %490 = vmatpush1.msra.mxu0 0.0
  %491 = vmatprep.subr.mxu0 0.0
  %492 = vmatpush1.msra.mxu0 0.0
  %493 = vmatprep.subr.mxu0 0.0
  %494 = vmatpush1.msra.mxu0 0.0
  %495 = vmatprep.subr.mxu0 0.0
  %496 = vmatpush1.msra.mxu0 0.0
  %497 = vmatprep.subr.mxu0 0.0
  %498 = vmatpush1.msra.mxu0 0.0
  %499 = vmatprep.subr.mxu0 0.0
  %500 = vmatpush1.msra.mxu0 0.0
  %501 = vmatprep.subr.mxu0 0.0
  %502 = vmatpush1.msra.mxu0 0.0
  %503 = vmatprep.subr.mxu0 0.0
  %504 = vmatpush1.msra.mxu0 0.0
  %505 = vmatprep.mubr.f32.mxu0 0.0
  %506 = vmatmul.mubr.f32.gmra.mrb[0].mxu0 %v436
  %v507 = vpop.f32.mrb[0].mxu0
  %v508 = vadd.f32 0.0, %v507
  %v509 = vpop.f32.mrb[0].mxu0
  %510 = vmatprep.mubr.f32.mxu0 0.0
  %511 = vmatmul.mubr.f32.gmra.mrb[0].mxu0 %v439
  %v512 = vpop.f32.mrb[0].mxu0
  %v513 = vadd.f32 0.0, %v512
  %v514 = vpop.f32.mrb[0].mxu0
  %515 = vdwg.mxu0
  %v517 = vsel %vm123, %v508, 0
  %v520 = vsel %vm123, %v513, 0
  %522 = vmatprep.subr.mxu0 0.0
  %523 = vmatpush1.msra.mxu0 %v106
  %524 = vmatprep.subr.mxu0 0.0
  %525 = vmatpush1.msra.mxu0 %v107
  %526 = vmatprep.subr.mxu0 0.0
  %527 = vmatpush1.msra.mxu0 0.0
  %528 = vmatprep.subr.mxu0 0.0
  %529 = vmatpush1.msra.mxu0 0.0
  %530 = vmatprep.subr.mxu0 0.0
  %531 = vmatpush1.msra.mxu0 0.0
  %532 = vmatprep.subr.mxu0 0.0
  %533 = vmatpush1.msra.mxu0 0.0
  %534 = vmatprep.subr.mxu0 0.0
  %535 = vmatpush1.msra.mxu0 0.0
  %536 = vmatprep.subr.mxu0 0.0
  %537 = vmatpush1.msra.mxu0 0.0
  %538 = vmatprep.subr.mxu0 0.0
  %539 = vmatpush1.msra.mxu0 0.0
  %540 = vmatprep.subr.mxu0 0.0
  %541 = vmatpush1.msra.mxu0 0.0
  %542 = vmatprep.subr.mxu0 0.0
  %543 = vmatpush1.msra.mxu0 0.0
  %544 = vmatprep.subr.mxu0 0.0
  %545 = vmatpush1.msra.mxu0 0.0
  %546 = vmatprep.subr.mxu0 0.0
  %547 = vmatpush1.msra.mxu0 0.0
  %548 = vmatprep.subr.mxu0 0.0
  %549 = vmatpush1.msra.mxu0 0.0
  %550 = vmatprep.subr.mxu0 0.0
  %551 = vmatpush1.msra.mxu0 0.0
  %552 = vmatprep.subr.mxu0 0.0
  %553 = vmatpush1.msra.mxu0 0.0
  %554 = vmatprep.subr.mxu0 0.0
  %555 = vmatpush1.msra.mxu0 0.0
  %556 = vmatprep.subr.mxu0 0.0
  %557 = vmatpush1.msra.mxu0 0.0
  %558 = vmatprep.subr.mxu0 0.0
  %559 = vmatpush1.msra.mxu0 0.0
  %560 = vmatprep.subr.mxu0 0.0
  %561 = vmatpush1.msra.mxu0 0.0
  %562 = vmatprep.subr.mxu0 0.0
  %563 = vmatpush1.msra.mxu0 0.0
  %564 = vmatprep.subr.mxu0 0.0
  %565 = vmatpush1.msra.mxu0 0.0
  %566 = vmatprep.subr.mxu0 0.0
  %567 = vmatpush1.msra.mxu0 0.0
  %568 = vmatprep.subr.mxu0 0.0
  %569 = vmatpush1.msra.mxu0 0.0
  %570 = vmatprep.subr.mxu0 0.0
  %571 = vmatpush1.msra.mxu0 0.0
  %572 = vmatprep.subr.mxu0 0.0
  %573 = vmatpush1.msra.mxu0 0.0
  %574 = vmatprep.subr.mxu0 0.0
  %575 = vmatpush1.msra.mxu0 0.0
  %576 = vmatprep.subr.mxu0 0.0
  %577 = vmatpush1.msra.mxu0 0.0
  %578 = vmatprep.subr.mxu0 0.0
  %579 = vmatpush1.msra.mxu0 0.0
  %580 = vmatprep.subr.mxu0 0.0
  %581 = vmatpush1.msra.mxu0 0.0
  %582 = vmatprep.subr.mxu0 0.0
  %583 = vmatpush1.msra.mxu0 0.0
  %584 = vmatprep.subr.mxu0 0.0
  %585 = vmatpush1.msra.mxu0 0.0
  %586 = vmatprep.mubr.f32.mxu0 0.0
  %587 = vmatmul.mubr.f32.gmra.mrb[0].mxu0 %v517
  %v588 = vpop.f32.mrb[0].mxu0
  %v589 = vadd.f32 0.0, %v588
  %v590 = vpop.f32.mrb[0].mxu0
  %591 = vmatprep.mubr.f32.mxu0 0.0
  %592 = vmatmul.mubr.f32.gmra.mrb[0].mxu0 %v520
  %v593 = vpop.f32.mrb[0].mxu0
  %v594 = vadd.f32 0.0, %v593
  %v595 = vpop.f32.mrb[0].mxu0
  %596 = vdwg.mxu0
  %v598 = vsel %vm123, %v308, 0
  %v601 = vsel %vm123, %v313, 0
  %603 = vmatprep.subr.mxu0 0.0
  %604 = vmatpush1.msra.mxu0 %v104
  %605 = vmatprep.subr.mxu0 0.0
  %606 = vmatpush1.msra.mxu0 %v105
  %607 = vmatprep.subr.mxu0 0.0
  %608 = vmatpush1.msra.mxu0 0.0
  %609 = vmatprep.subr.mxu0 0.0
  %610 = vmatpush1.msra.mxu0 0.0
  %611 = vmatprep.subr.mxu0 0.0
  %612 = vmatpush1.msra.mxu0 0.0
  %613 = vmatprep.subr.mxu0 0.0
  %614 = vmatpush1.msra.mxu0 0.0
  %615 = vmatprep.subr.mxu0 0.0
  %616 = vmatpush1.msra.mxu0 0.0
  %617 = vmatprep.subr.mxu0 0.0
  %618 = vmatpush1.msra.mxu0 0.0
  %619 = vmatprep.subr.mxu0 0.0
  %620 = vmatpush1.msra.mxu0 0.0
  %621 = vmatprep.subr.mxu0 0.0
  %622 = vmatpush1.msra.mxu0 0.0
  %623 = vmatprep.subr.mxu0 0.0
  %624 = vmatpush1.msra.mxu0 0.0
  %625 = vmatprep.subr.mxu0 0.0
  %626 = vmatpush1.msra.mxu0 0.0
  %627 = vmatprep.subr.mxu0 0.0
  %628 = vmatpush1.msra.mxu0 0.0
  %629 = vmatprep.subr.mxu0 0.0
  %630 = vmatpush1.msra.mxu0 0.0
  %631 = vmatprep.subr.mxu0 0.0
  %632 = vmatpush1.msra.mxu0 0.0
  %633 = vmatprep.subr.mxu0 0.0
  %634 = vmatpush1.msra.mxu0 0.0
  %635 = vmatprep.subr.mxu0 0.0
  %636 = vmatpush1.msra.mxu0 0.0
  %637 = vmatprep.subr.mxu0 0.0
  %638 = vmatpush1.msra.mxu0 0.0
  %639 = vmatprep.subr.mxu0 0.0
  %640 = vmatpush1.msra.mxu0 0.0
  %641 = vmatprep.subr.mxu0 0.0
  %642 = vmatpush1.msra.mxu0 0.0
  %643 = vmatprep.subr.mxu0 0.0
  %644 = vmatpush1.msra.mxu0 0.0
  %645 = vmatprep.subr.mxu0 0.0
  %646 = vmatpush1.msra.mxu0 0.0
  %647 = vmatprep.subr.mxu0 0.0
  %648 = vmatpush1.msra.mxu0 0.0
  %649 = vmatprep.subr.mxu0 0.0
  %650 = vmatpush1.msra.mxu0 0.0
  %651 = vmatprep.subr.mxu0 0.0
  %652 = vmatpush1.msra.mxu0 0.0
  %653 = vmatprep.subr.mxu0 0.0
  %654 = vmatpush1.msra.mxu0 0.0
  %655 = vmatprep.subr.mxu0 0.0
  %656 = vmatpush1.msra.mxu0 0.0
  %657 = vmatprep.subr.mxu0 0.0
  %658 = vmatpush1.msra.mxu0 0.0
  %659 = vmatprep.subr.mxu0 0.0
  %660 = vmatpush1.msra.mxu0 0.0
  %661 = vmatprep.subr.mxu0 0.0
  %662 = vmatpush1.msra.mxu0 0.0
  %663 = vmatprep.subr.mxu0 0.0
  %664 = vmatpush1.msra.mxu0 0.0
  %665 = vmatprep.subr.mxu0 0.0
  %666 = vmatpush1.msra.mxu0 0.0
  %667 = vmatprep.mubr.f32.mxu0 0.0
  %668 = vmatmul.mubr.f32.gmra.mrb[0].mxu0 %v598
  %v669 = vpop.f32.mrb[0].mxu0
  %v670 = vadd.f32 %v589, %v669
  %v671 = vpop.f32.mrb[0].mxu0
  %672 = vmatprep.mubr.f32.mxu0 0.0
  %673 = vmatmul.mubr.f32.gmra.mrb[0].mxu0 %v601
  %v674 = vpop.f32.mrb[0].mxu0
  %v675 = vadd.f32 %v594, %v674
  %v676 = vpop.f32.mrb[0].mxu0
  %677 = vdwg.mxu0
  %v678 = vlaneseq
  %v679 = vshrl.u32 %v678, 7
  %v680 = vsub.s32 0, %v679
  %v681 = vrot.slane %v108, %v680
  %v682 = vadd.f32 %v670, %v681
  %v683 = vadd.f32 %v675, %v681
  %v684 = vadd.f32 %v682, %v11
  %v685 = vadd.f32 %v683, %v12
  %v686 = vsel %vm22, %v684, 0.0
  %687 = vadd.xlane.f32.xlu0 %v686
  %v688 = vpop.xlane.xlu0 %687
  %v689 = vsel %vm22, %v685, 0.0
  %690 = vadd.xlane.f32.xlu0 %v689
  %v691 = vpop.xlane.xlu0 %690
  %v692 = vrcp.pop 32.0
  %v693 = vmul.f32 %v688, %v692
  %v694 = vmul.f32 %v691, %v692
  %v695 = vsub.f32 %v684, %v693
  %v696 = vsub.f32 %v685, %v694
  %v697 = vmul.f32 %v695, %v695
  %v698 = vmul.f32 %v696, %v696
  %v699 = vsel %vm22, %v697, 0.0
  %700 = vadd.xlane.f32.xlu0 %v699
  %v701 = vpop.xlane.xlu0 %700
  %v702 = vsel %vm22, %v698, 0.0
  %703 = vadd.xlane.f32.xlu0 %v702
  %v704 = vpop.xlane.xlu0 %703
  %v705 = vmul.f32 %v701, %v692
  %v706 = vmul.f32 %v704, %v692
  %v707 = vadd.f32 %v705, 1e-05
  %v708 = vadd.f32 %v706, 1e-05
  %v709 = vrsqrt.pop %v707
  %v710 = vrsqrt.pop %v708
  %v711 = vmul.f32 %v695, %v709
  %v712 = vmul.f32 %v696, %v710
  %v713 = vlaneseq
  %v714 = vshrl.u32 %v713, 7
  %v715 = vsub.s32 0, %v714
  %v716 = vrot.slane %v109, %v715
  %v717 = vmul.f32 %v711, %v716
  %v718 = vmul.f32 %v712, %v716
  %v719 = vlaneseq
  %v720 = vshrl.u32 %v719, 7
  %v721 = vsub.s32 0, %v720
  %v722 = vrot.slane %v110, %v721
  %v723 = vadd.f32 %v717, %v722
  %v724 = vadd.f32 %v718, %v722
  %v725 = vld [vmem:[%s1 + $0x40] sm:$0xff]
  %v726 = vld [vmem:[%s1 + $0x48] sm:$0xff]
  %v727 = vld [vmem:[%s1 + $0x50] sm:$0xff]
  %v728 = vld [vmem:[%s1 + $0x58] sm:$0xff]
  %v729 = vld [vmem:[%s1 + $0x120] sm:$0x1]
  %v730 = vlaneseq
  %v731 = vshrl.u32 %v730, 7
  %v732 = vsub.s32 0, %v731
  %v733 = vrot.slane %v729, %v732
  %v735 = vsel %vm22, %v723, 0
  %v738 = vsel %vm22, %v724, 0
  %740 = vmatprep.subr.mxu0 0.0
  %741 = vmatpush1.msra.mxu0 %v725
  %742 = vmatprep.subr.mxu0 0.0
  %743 = vmatpush1.msra.mxu0 %v726
  %744 = vmatprep.subr.mxu0 0.0
  %745 = vmatpush1.msra.mxu0 %v727
  %746 = vmatprep.subr.mxu0 0.0
  %747 = vmatpush1.msra.mxu0 %v728
  %748 = vmatprep.subr.mxu0 0.0
  %749 = vmatpush1.msra.mxu0 0.0
  %750 = vmatprep.subr.mxu0 0.0
  %751 = vmatpush1.msra.mxu0 0.0
  %752 = vmatprep.subr.mxu0 0.0
  %753 = vmatpush1.msra.mxu0 0.0
  %754 = vmatprep.subr.mxu0 0.0
  %755 = vmatpush1.msra.mxu0 0.0
  %756 = vmatprep.subr.mxu0 0.0
  %757 = vmatpush1.msra.mxu0 0.0
  %758 = vmatprep.subr.mxu0 0.0
  %759 = vmatpush1.msra.mxu0 0.0
  %760 = vmatprep.subr.mxu0 0.0
  %761 = vmatpush1.msra.mxu0 0.0
  %762 = vmatprep.subr.mxu0 0.0
  %763 = vmatpush1.msra.mxu0 0.0
  %764 = vmatprep.subr.mxu0 0.0
  %765 = vmatpush1.msra.mxu0 0.0
  %766 = vmatprep.subr.mxu0 0.0
  %767 = vmatpush1.msra.mxu0 0.0
  %768 = vmatprep.subr.mxu0 0.0
  %769 = vmatpush1.msra.mxu0 0.0
  %770 = vmatprep.subr.mxu0 0.0
  %771 = vmatpush1.msra.mxu0 0.0
  %772 = vmatprep.subr.mxu0 0.0
  %773 = vmatpush1.msra.mxu0 0.0
  %774 = vmatprep.subr.mxu0 0.0
  %775 = vmatpush1.msra.mxu0 0.0
  %776 = vmatprep.subr.mxu0 0.0
  %777 = vmatpush1.msra.mxu0 0.0
  %778 = vmatprep.subr.mxu0 0.0
  %779 = vmatpush1.msra.mxu0 0.0
  %780 = vmatprep.subr.mxu0 0.0
  %781 = vmatpush1.msra.mxu0 0.0
  %782 = vmatprep.subr.mxu0 0.0
  %783 = vmatpush1.msra.mxu0 0.0
  %784 = vmatprep.subr.mxu0 0.0
  %785 = vmatpush1.msra.mxu0 0.0
  %786 = vmatprep.subr.mxu0 0.0
  %787 = vmatpush1.msra.mxu0 0.0
  %788 = vmatprep.subr.mxu0 0.0
  %789 = vmatpush1.msra.mxu0 0.0
  %790 = vmatprep.subr.mxu0 0.0
  %791 = vmatpush1.msra.mxu0 0.0
  %792 = vmatprep.subr.mxu0 0.0
  %793 = vmatpush1.msra.mxu0 0.0
  %794 = vmatprep.subr.mxu0 0.0
  %795 = vmatpush1.msra.mxu0 0.0
  %796 = vmatprep.subr.mxu0 0.0
  %797 = vmatpush1.msra.mxu0 0.0
  %798 = vmatprep.subr.mxu0 0.0
  %799 = vmatpush1.msra.mxu0 0.0
  %800 = vmatprep.subr.mxu0 0.0
  %801 = vmatpush1.msra.mxu0 0.0
  %802 = vmatprep.subr.mxu0 0.0
  %803 = vmatpush1.msra.mxu0 0.0
  %804 = vmatprep.mubr.f32.mxu0 0.0
  %805 = vmatmul.mubr.f32.gmra.mrb[0].mxu0 %v735
  %v806 = vpop.f32.mrb[0].mxu0
  %v807 = vadd.f32 %v733, %v806
  %v808 = vpop.f32.mrb[0].mxu0
  %809 = vmatprep.mubr.f32.mxu0 0.0
  %810 = vmatmul.mubr.f32.gmra.mrb[0].mxu0 %v738
  %v811 = vpop.f32.mrb[0].mxu0
  %v812 = vadd.f32 %v733, %v811
  %v813 = vpop.f32.mrb[0].mxu0
  %814 = vdwg.mxu0
  %v815 = vld [vmem:[%s1 + $0x60] sm:$0xff]
  %v816 = vld [vmem:[%s1 + $0x68] sm:$0xff]
  %v817 = vld [vmem:[%s1 + $0x70] sm:$0xff]
  %v818 = vld [vmem:[%s1 + $0x78] sm:$0xff]
  %v819 = vld [vmem:[%s1 + $0x128] sm:$0x1]
  %v820 = vlaneseq
  %v821 = vshrl.u32 %v820, 7
  %v822 = vsub.s32 0, %v821
  %v823 = vrot.slane %v819, %v822
  %824 = vrot.lane.b32.xlu0 %v11, 96
  %v825 = vpop.permute.xlu0 %824
  %826 = vrot.lane.b32.xlu0 %v12, 96
  %v827 = vpop.permute.xlu0 %826
  %v828 = vsel %vm22, %v825, 0
  %v830 = vsel %vm22, %v827, 0
  %832 = vmatprep.subr.mxu0 0.0
  %833 = vmatpush1.msra.mxu0 %v815
  %834 = vmatprep.subr.mxu0 0.0
  %835 = vmatpush1.msra.mxu0 %v816
  %836 = vmatprep.subr.mxu0 0.0
  %837 = vmatpush1.msra.mxu0 %v817
  %838 = vmatprep.subr.mxu0 0.0
  %839 = vmatpush1.msra.mxu0 %v818
  %840 = vmatprep.subr.mxu0 0.0
  %841 = vmatpush1.msra.mxu0 0.0
  %842 = vmatprep.subr.mxu0 0.0
  %843 = vmatpush1.msra.mxu0 0.0
  %844 = vmatprep.subr.mxu0 0.0
  %845 = vmatpush1.msra.mxu0 0.0
  %846 = vmatprep.subr.mxu0 0.0
  %847 = vmatpush1.msra.mxu0 0.0
  %848 = vmatprep.subr.mxu0 0.0
  %849 = vmatpush1.msra.mxu0 0.0
  %850 = vmatprep.subr.mxu0 0.0
  %851 = vmatpush1.msra.mxu0 0.0
  %852 = vmatprep.subr.mxu0 0.0
  %853 = vmatpush1.msra.mxu0 0.0
  %854 = vmatprep.subr.mxu0 0.0
  %855 = vmatpush1.msra.mxu0 0.0
  %856 = vmatprep.subr.mxu0 0.0
  %857 = vmatpush1.msra.mxu0 0.0
  %858 = vmatprep.subr.mxu0 0.0
  %859 = vmatpush1.msra.mxu0 0.0
  %860 = vmatprep.subr.mxu0 0.0
  %861 = vmatpush1.msra.mxu0 0.0
  %862 = vmatprep.subr.mxu0 0.0
  %863 = vmatpush1.msra.mxu0 0.0
  %864 = vmatprep.subr.mxu0 0.0
  %865 = vmatpush1.msra.mxu0 0.0
  %866 = vmatprep.subr.mxu0 0.0
  %867 = vmatpush1.msra.mxu0 0.0
  %868 = vmatprep.subr.mxu0 0.0
  %869 = vmatpush1.msra.mxu0 0.0
  %870 = vmatprep.subr.mxu0 0.0
  %871 = vmatpush1.msra.mxu0 0.0
  %872 = vmatprep.subr.mxu0 0.0
  %873 = vmatpush1.msra.mxu0 0.0
  %874 = vmatprep.subr.mxu0 0.0
  %875 = vmatpush1.msra.mxu0 0.0
  %876 = vmatprep.subr.mxu0 0.0
  %877 = vmatpush1.msra.mxu0 0.0
  %878 = vmatprep.subr.mxu0 0.0
  %879 = vmatpush1.msra.mxu0 0.0
  %880 = vmatprep.subr.mxu0 0.0
  %881 = vmatpush1.msra.mxu0 0.0
  %882 = vmatprep.subr.mxu0 0.0
  %883 = vmatpush1.msra.mxu0 0.0
  %884 = vmatprep.subr.mxu0 0.0
  %885 = vmatpush1.msra.mxu0 0.0
  %886 = vmatprep.subr.mxu0 0.0
  %887 = vmatpush1.msra.mxu0 0.0
  %888 = vmatprep.subr.mxu0 0.0
  %889 = vmatpush1.msra.mxu0 0.0
  %890 = vmatprep.subr.mxu0 0.0
  %891 = vmatpush1.msra.mxu0 0.0
  %892 = vmatprep.subr.mxu0 0.0
  %893 = vmatpush1.msra.mxu0 0.0
  %894 = vmatprep.subr.mxu0 0.0
  %895 = vmatpush1.msra.mxu0 0.0
  %896 = vmatprep.mubr.f32.mxu0 0.0
  %897 = vmatmul.mubr.f32.gmra.mrb[0].mxu0 %v828
  %v898 = vpop.f32.mrb[0].mxu0
  %v899 = vadd.f32 %v823, %v898
  %v900 = vpop.f32.mrb[0].mxu0
  %901 = vmatprep.mubr.f32.mxu0 0.0
  %902 = vmatmul.mubr.f32.gmra.mrb[0].mxu0 %v830
  %v903 = vpop.f32.mrb[0].mxu0
  %v904 = vadd.f32 %v823, %v903
  %v905 = vpop.f32.mrb[0].mxu0
  %906 = vdwg.mxu0
  %v907 = vld [vmem:[%s1 + $0x80] sm:$0xff]
  %v908 = vld [vmem:[%s1 + $0x88] sm:$0xff]
  %v909 = vld [vmem:[%s1 + $0x90] sm:$0xff]
  %v910 = vld [vmem:[%s1 + $0x98] sm:$0xff]
  %v911 = vld [vmem:[%s1 + $0x130] sm:$0x1]
  %v912 = vld [vmem:[%s1 + $0x138] sm:$0x1]
  %v913 = vld [vmem:[%s1 + $0x140] sm:$0x1]
  %914 = vrot.lane.b32.xlu0 %v11, 48
  %v915 = vpop.permute.xlu0 %914
  %916 = vrot.lane.b32.xlu0 %v12, 48
  %v917 = vpop.permute.xlu0 %916
  %v921 = vsel %vm123, %v807, 0
  %v924 = vsel %vm123, %v812, 0
  %v927 = vsel %vm123, %v899, 0
  %v930 = vsel %vm123, %v904, 0
  %932 = vmatprep.subr.mxu0 0.0
  %933 = vmatpush1.xpose.msra.mxu0 %v927
  %934 = vmatprep.subr.mxu0 0.0
  %935 = vmatpush1.xpose.msra.mxu0 %v930
  %936 = vmatprep.subr.mxu0 0.0
  %937 = vmatpush1.xpose.msra.mxu0 0.0
  %938 = vmatprep.subr.mxu0 0.0
  %939 = vmatpush1.xpose.msra.mxu0 0.0
  %940 = vmatprep.subr.mxu0 0.0
  %941 = vmatpush1.xpose.msra.mxu0 0.0
  %942 = vmatprep.subr.mxu0 0.0
  %943 = vmatpush1.xpose.msra.mxu0 0.0
  %944 = vmatprep.subr.mxu0 0.0
  %945 = vmatpush1.xpose.msra.mxu0 0.0
  %946 = vmatprep.subr.mxu0 0.0
  %947 = vmatpush1.xpose.msra.mxu0 0.0
  %948 = vmatprep.subr.mxu0 0.0
  %949 = vmatpush1.xpose.msra.mxu0 0.0
  %950 = vmatprep.subr.mxu0 0.0
  %951 = vmatpush1.xpose.msra.mxu0 0.0
  %952 = vmatprep.subr.mxu0 0.0
  %953 = vmatpush1.xpose.msra.mxu0 0.0
  %954 = vmatprep.subr.mxu0 0.0
  %955 = vmatpush1.xpose.msra.mxu0 0.0
  %956 = vmatprep.subr.mxu0 0.0
  %957 = vmatpush1.xpose.msra.mxu0 0.0
  %958 = vmatprep.subr.mxu0 0.0
  %959 = vmatpush1.xpose.msra.mxu0 0.0
  %960 = vmatprep.subr.mxu0 0.0
  %961 = vmatpush1.xpose.msra.mxu0 0.0
  %962 = vmatprep.subr.mxu0 0.0
  %963 = vmatpush1.xpose.msra.mxu0 0.0
  %964 = vmatprep.subr.mxu0 0.0
  %965 = vmatpush1.xpose.msra.mxu0 0.0
  %966 = vmatprep.subr.mxu0 0.0
  %967 = vmatpush1.xpose.msra.mxu0 0.0
  %968 = vmatprep.subr.mxu0 0.0
  %969 = vmatpush1.xpose.msra.mxu0 0.0
  %970 = vmatprep.subr.mxu0 0.0
  %971 = vmatpush1.xpose.msra.mxu0 0.0
  %972 = vmatprep.subr.mxu0 0.0
  %973 = vmatpush1.xpose.msra.mxu0 0.0
  %974 = vmatprep.subr.mxu0 0.0
  %975 = vmatpush1.xpose.msra.mxu0 0.0
  %976 = vmatprep.subr.mxu0 0.0
  %977 = vmatpush1.xpose.msra.mxu0 0.0
  %978 = vmatprep.subr.mxu0 0.0
  %979 = vmatpush1.xpose.msra.mxu0 0.0
  %980 = vmatprep.subr.mxu0 0.0
  %981 = vmatpush1.xpose.msra.mxu0 0.0
  %982 = vmatprep.subr.mxu0 0.0
  %983 = vmatpush1.xpose.msra.mxu0 0.0
  %984 = vmatprep.subr.mxu0 0.0
  %985 = vmatpush1.xpose.msra.mxu0 0.0
  %986 = vmatprep.subr.mxu0 0.0
  %987 = vmatpush1.xpose.msra.mxu0 0.0
  %988 = vmatprep.subr.mxu0 0.0
  %989 = vmatpush1.xpose.msra.mxu0 0.0
  %990 = vmatprep.subr.mxu0 0.0
  %991 = vmatpush1.xpose.msra.mxu0 0.0
  %992 = vmatprep.subr.mxu0 0.0
  %993 = vmatpush1.xpose.msra.mxu0 0.0
  %994 = vmatprep.subr.mxu0 0.0
  %995 = vmatpush1.xpose.msra.mxu0 0.0
  %996 = vmatprep.mubr.f32.mxu0 0.0
  %997 = vmatmul.mubr.f32.gmra.mrb[0].mxu0 %v921
  %v998 = vpop.f32.mrb[0].mxu0
  %v999 = vadd.f32 %v915, %v998
  %v1000 = vpop.f32.mrb[0].mxu0
  %1001 = vmatprep.mubr.f32.mxu0 0.0
  %1002 = vmatmul.mubr.f32.gmra.mrb[0].mxu0 %v924
  %v1003 = vpop.f32.mrb[0].mxu0
  %v1004 = vadd.f32 %v917, %v1003
  %v1005 = vpop.f32.mrb[0].mxu0
  %1006 = vdwg.mxu0
  %v1007 = vsel %vm123, %v999, -inf
  %1008 = vmax.xlane.f32.xlu0 %v1007
  %v1009 = vpop.xlane.xlu0 %1008
  %v1010 = vsel %vm123, %v1004, -inf
  %1011 = vmax.xlane.f32.xlu0 %v1010
  %v1012 = vpop.xlane.xlu0 %1011
  %v1013 = vsub.f32 %v999, %v1009
  %v1014 = vsub.f32 %v1004, %v1012
  %v1015 = vmul.f32 %v1013, 1.442695
  %v1016 = vpow.pop %v1015
  %v1017 = vmul.f32 %v1014, 1.442695
  %v1018 = vpow.pop %v1017
  %v1019 = vsel %vm123, %v1016, 0.0
  %1020 = vadd.xlane.f32.xlu0 %v1019
  %v1021 = vpop.xlane.xlu0 %1020
  %v1022 = vsel %vm123, %v1018, 0.0
  %1023 = vadd.xlane.f32.xlu0 %v1022
  %v1024 = vpop.xlane.xlu0 %1023
  %v1025 = vrcp.pop %v1021
  %v1026 = vmul.f32 %v1016, %v1025
  %v1027 = vrcp.pop %v1024
  %v1028 = vmul.f32 %v1018, %v1027
  %1029 = vrot.lane.b32.xlu0 %v899, 96
  %v1030 = vpop.permute.xlu0 %1029
  %1031 = vrot.lane.b32.xlu0 %v904, 96
  %v1032 = vpop.permute.xlu0 %1031
  %v1036 = vsel %vm123, %v1026, 0
  %v1039 = vsel %vm123, %v1028, 0
  %1041 = vmatprep.subr.mxu0 0.0
  %1042 = vmatpush1.msra.mxu0 %v1030
  %1043 = vmatprep.subr.mxu0 0.0
  %1044 = vmatpush1.msra.mxu0 %v1032
  %1045 = vmatprep.subr.mxu0 0.0
  %1046 = vmatpush1.msra.mxu0 0.0
  %1047 = vmatprep.subr.mxu0 0.0
  %1048 = vmatpush1.msra.mxu0 0.0
  %1049 = vmatprep.subr.mxu0 0.0
  %1050 = vmatpush1.msra.mxu0 0.0
  %1051 = vmatprep.subr.mxu0 0.0
  %1052 = vmatpush1.msra.mxu0 0.0
  %1053 = vmatprep.subr.mxu0 0.0
  %1054 = vmatpush1.msra.mxu0 0.0
  %1055 = vmatprep.subr.mxu0 0.0
  %1056 = vmatpush1.msra.mxu0 0.0
  %1057 = vmatprep.subr.mxu0 0.0
  %1058 = vmatpush1.msra.mxu0 0.0
  %1059 = vmatprep.subr.mxu0 0.0
  %1060 = vmatpush1.msra.mxu0 0.0
  %1061 = vmatprep.subr.mxu0 0.0
  %1062 = vmatpush1.msra.mxu0 0.0
  %1063 = vmatprep.subr.mxu0 0.0
  %1064 = vmatpush1.msra.mxu0 0.0
  %1065 = vmatprep.subr.mxu0 0.0
  %1066 = vmatpush1.msra.mxu0 0.0
  %1067 = vmatprep.subr.mxu0 0.0
  %1068 = vmatpush1.msra.mxu0 0.0
  %1069 = vmatprep.subr.mxu0 0.0
  %1070 = vmatpush1.msra.mxu0 0.0
  %1071 = vmatprep.subr.mxu0 0.0
  %1072 = vmatpush1.msra.mxu0 0.0
  %1073 = vmatprep.subr.mxu0 0.0
  %1074 = vmatpush1.msra.mxu0 0.0
  %1075 = vmatprep.subr.mxu0 0.0
  %1076 = vmatpush1.msra.mxu0 0.0
  %1077 = vmatprep.subr.mxu0 0.0
  %1078 = vmatpush1.msra.mxu0 0.0
  %1079 = vmatprep.subr.mxu0 0.0
  %1080 = vmatpush1.msra.mxu0 0.0
  %1081 = vmatprep.subr.mxu0 0.0
  %1082 = vmatpush1.msra.mxu0 0.0
  %1083 = vmatprep.subr.mxu0 0.0
  %1084 = vmatpush1.msra.mxu0 0.0
  %1085 = vmatprep.subr.mxu0 0.0
  %1086 = vmatpush1.msra.mxu0 0.0
  %1087 = vmatprep.subr.mxu0 0.0
  %1088 = vmatpush1.msra.mxu0 0.0
  %1089 = vmatprep.subr.mxu0 0.0
  %1090 = vmatpush1.msra.mxu0 0.0
  %1091 = vmatprep.subr.mxu0 0.0
  %1092 = vmatpush1.msra.mxu0 0.0
  %1093 = vmatprep.subr.mxu0 0.0
  %1094 = vmatpush1.msra.mxu0 0.0
  %1095 = vmatprep.subr.mxu0 0.0
  %1096 = vmatpush1.msra.mxu0 0.0
  %1097 = vmatprep.subr.mxu0 0.0
  %1098 = vmatpush1.msra.mxu0 0.0
  %1099 = vmatprep.subr.mxu0 0.0
  %1100 = vmatpush1.msra.mxu0 0.0
  %1101 = vmatprep.subr.mxu0 0.0
  %1102 = vmatpush1.msra.mxu0 0.0
  %1103 = vmatprep.subr.mxu0 0.0
  %1104 = vmatpush1.msra.mxu0 0.0
  %1105 = vmatprep.mubr.f32.mxu0 0.0
  %1106 = vmatmul.mubr.f32.gmra.mrb[0].mxu0 %v1036
  %v1107 = vpop.f32.mrb[0].mxu0
  %v1108 = vadd.f32 0.0, %v1107
  %v1109 = vpop.f32.mrb[0].mxu0
  %1110 = vmatprep.mubr.f32.mxu0 0.0
  %1111 = vmatmul.mubr.f32.gmra.mrb[0].mxu0 %v1039
  %v1112 = vpop.f32.mrb[0].mxu0
  %v1113 = vadd.f32 0.0, %v1112
  %v1114 = vpop.f32.mrb[0].mxu0
  %1115 = vdwg.mxu0
  %1116 = vrot.lane.b32.xlu0 %v807, 112
  %v1117 = vpop.permute.xlu0 %1116
  %1118 = vrot.lane.b32.xlu0 %v812, 112
  %v1119 = vpop.permute.xlu0 %1118
  %1120 = vrot.lane.b32.xlu0 %v899, 112
  %v1121 = vpop.permute.xlu0 %1120
  %1122 = vrot.lane.b32.xlu0 %v904, 112
  %v1123 = vpop.permute.xlu0 %1122
  %v1124 = vsel %vm123, %v1117, 0
  %v1126 = vsel %vm123, %v1119, 0
  %v1128 = vsel %vm123, %v1121, 0
  %v1130 = vsel %vm123, %v1123, 0
  %1132 = vmatprep.subr.mxu0 0.0
  %1133 = vmatpush1.xpose.msra.mxu0 %v1128
  %1134 = vmatprep.subr.mxu0 0.0
  %1135 = vmatpush1.xpose.msra.mxu0 %v1130
  %1136 = vmatprep.subr.mxu0 0.0
  %1137 = vmatpush1.xpose.msra.mxu0 0.0
  %1138 = vmatprep.subr.mxu0 0.0
  %1139 = vmatpush1.xpose.msra.mxu0 0.0
  %1140 = vmatprep.subr.mxu0 0.0
  %1141 = vmatpush1.xpose.msra.mxu0 0.0
  %1142 = vmatprep.subr.mxu0 0.0
  %1143 = vmatpush1.xpose.msra.mxu0 0.0
  %1144 = vmatprep.subr.mxu0 0.0
  %1145 = vmatpush1.xpose.msra.mxu0 0.0
  %1146 = vmatprep.subr.mxu0 0.0
  %1147 = vmatpush1.xpose.msra.mxu0 0.0
  %1148 = vmatprep.subr.mxu0 0.0
  %1149 = vmatpush1.xpose.msra.mxu0 0.0
  %1150 = vmatprep.subr.mxu0 0.0
  %1151 = vmatpush1.xpose.msra.mxu0 0.0
  %1152 = vmatprep.subr.mxu0 0.0
  %1153 = vmatpush1.xpose.msra.mxu0 0.0
  %1154 = vmatprep.subr.mxu0 0.0
  %1155 = vmatpush1.xpose.msra.mxu0 0.0
  %1156 = vmatprep.subr.mxu0 0.0
  %1157 = vmatpush1.xpose.msra.mxu0 0.0
  %1158 = vmatprep.subr.mxu0 0.0
  %1159 = vmatpush1.xpose.msra.mxu0 0.0
  %1160 = vmatprep.subr.mxu0 0.0
  %1161 = vmatpush1.xpose.msra.mxu0 0.0
  %1162 = vmatprep.subr.mxu0 0.0
  %1163 = vmatpush1.xpose.msra.mxu0 0.0
  %1164 = vmatprep.subr.mxu0 0.0
  %1165 = vmatpush1.xpose.msra.mxu0 0.0
  %1166 = vmatprep.subr.mxu0 0.0
  %1167 = vmatpush1.xpose.msra.mxu0 0.0
  %1168 = vmatprep.subr.mxu0 0.0
  %1169 = vmatpush1.xpose.msra.mxu0 0.0
  %1170 = vmatprep.subr.mxu0 0.0
  %1171 = vmatpush1.xpose.msra.mxu0 0.0
  %1172 = vmatprep.subr.mxu0 0.0
  %1173 = vmatpush1.xpose.msra.mxu0 0.0
  %1174 = vmatprep.subr.mxu0 0.0
  %1175 = vmatpush1.xpose.msra.mxu0 0.0
  %1176 = vmatprep.subr.mxu0 0.0
  %1177 = vmatpush1.xpose.msra.mxu0 0.0
  %1178 = vmatprep.subr.mxu0 0.0
  %1179 = vmatpush1.xpose.msra.mxu0 0.0
  %1180 = vmatprep.subr.mxu0 0.0
  %1181 = vmatpush1.xpose.msra.mxu0 0.0
  %1182 = vmatprep.subr.mxu0 0.0
  %1183 = vmatpush1.xpose.msra.mxu0 0.0
  %1184 = vmatprep.subr.mxu0 0.0
  %1185 = vmatpush1.xpose.msra.mxu0 0.0
  %1186 = vmatprep.subr.mxu0 0.0
  %1187 = vmatpush1.xpose.msra.mxu0 0.0
  %1188 = vmatprep.subr.mxu0 0.0
  %1189 = vmatpush1.xpose.msra.mxu0 0.0
  %1190 = vmatprep.subr.mxu0 0.0
  %1191 = vmatpush1.xpose.msra.mxu0 0.0
  %1192 = vmatprep.subr.mxu0 0.0
  %1193 = vmatpush1.xpose.msra.mxu0 0.0
  %1194 = vmatprep.subr.mxu0 0.0
  %1195 = vmatpush1.xpose.msra.mxu0 0.0
  %1196 = vmatprep.mubr.f32.mxu0 0.0
  %1197 = vmatmul.mubr.f32.gmra.mrb[0].mxu0 %v1124
  %v1198 = vpop.f32.mrb[0].mxu0
  %v1199 = vadd.f32 %v915, %v1198
  %v1200 = vpop.f32.mrb[0].mxu0
  %1201 = vmatprep.mubr.f32.mxu0 0.0
  %1202 = vmatmul.mubr.f32.gmra.mrb[0].mxu0 %v1126
  %v1203 = vpop.f32.mrb[0].mxu0
  %v1204 = vadd.f32 %v917, %v1203
  %v1205 = vpop.f32.mrb[0].mxu0
  %1206 = vdwg.mxu0
  %v1207 = vsel %vm123, %v1199, -inf
  %1208 = vmax.xlane.f32.xlu0 %v1207
  %v1209 = vpop.xlane.xlu0 %1208
  %v1210 = vsel %vm123, %v1204, -inf
  %1211 = vmax.xlane.f32.xlu0 %v1210
  %v1212 = vpop.xlane.xlu0 %1211
  %v1213 = vsub.f32 %v1199, %v1209
  %v1214 = vsub.f32 %v1204, %v1212
  %v1215 = vmul.f32 %v1213, 1.442695
  %v1216 = vpow.pop %v1215
  %v1217 = vmul.f32 %v1214, 1.442695
  %v1218 = vpow.pop %v1217
  %v1219 = vsel %vm123, %v1216, 0.0
  %1220 = vadd.xlane.f32.xlu0 %v1219
  %v1221 = vpop.xlane.xlu0 %1220
  %v1222 = vsel %vm123, %v1218, 0.0
  %1223 = vadd.xlane.f32.xlu0 %v1222
  %v1224 = vpop.xlane.xlu0 %1223
  %v1225 = vrcp.pop %v1221
  %v1226 = vmul.f32 %v1216, %v1225
  %v1227 = vrcp.pop %v1224
  %v1228 = vmul.f32 %v1218, %v1227
  %1229 = vrot.lane.b32.xlu0 %v899, 80
  %v1230 = vpop.permute.xlu0 %1229
  %1231 = vrot.lane.b32.xlu0 %v904, 80
  %v1232 = vpop.permute.xlu0 %1231
  %v1236 = vsel %vm123, %v1226, 0
  %v1239 = vsel %vm123, %v1228, 0
  %1241 = vmatprep.subr.mxu0 0.0
  %1242 = vmatpush1.msra.mxu0 %v1230
  %1243 = vmatprep.subr.mxu0 0.0
  %1244 = vmatpush1.msra.mxu0 %v1232
  %1245 = vmatprep.subr.mxu0 0.0
  %1246 = vmatpush1.msra.mxu0 0.0
  %1247 = vmatprep.subr.mxu0 0.0
  %1248 = vmatpush1.msra.mxu0 0.0
  %1249 = vmatprep.subr.mxu0 0.0
  %1250 = vmatpush1.msra.mxu0 0.0
  %1251 = vmatprep.subr.mxu0 0.0
  %1252 = vmatpush1.msra.mxu0 0.0
  %1253 = vmatprep.subr.mxu0 0.0
  %1254 = vmatpush1.msra.mxu0 0.0
  %1255 = vmatprep.subr.mxu0 0.0
  %1256 = vmatpush1.msra.mxu0 0.0
  %1257 = vmatprep.subr.mxu0 0.0
  %1258 = vmatpush1.msra.mxu0 0.0
  %1259 = vmatprep.subr.mxu0 0.0
  %1260 = vmatpush1.msra.mxu0 0.0
  %1261 = vmatprep.subr.mxu0 0.0
  %1262 = vmatpush1.msra.mxu0 0.0
  %1263 = vmatprep.subr.mxu0 0.0
  %1264 = vmatpush1.msra.mxu0 0.0
  %1265 = vmatprep.subr.mxu0 0.0
  %1266 = vmatpush1.msra.mxu0 0.0
  %1267 = vmatprep.subr.mxu0 0.0
  %1268 = vmatpush1.msra.mxu0 0.0
  %1269 = vmatprep.subr.mxu0 0.0
  %1270 = vmatpush1.msra.mxu0 0.0
  %1271 = vmatprep.subr.mxu0 0.0
  %1272 = vmatpush1.msra.mxu0 0.0
  %1273 = vmatprep.subr.mxu0 0.0
  %1274 = vmatpush1.msra.mxu0 0.0
  %1275 = vmatprep.subr.mxu0 0.0
  %1276 = vmatpush1.msra.mxu0 0.0
  %1277 = vmatprep.subr.mxu0 0.0
  %1278 = vmatpush1.msra.mxu0 0.0
  %1279 = vmatprep.subr.mxu0 0.0
  %1280 = vmatpush1.msra.mxu0 0.0
  %1281 = vmatprep.subr.mxu0 0.0
  %1282 = vmatpush1.msra.mxu0 0.0
  %1283 = vmatprep.subr.mxu0 0.0
  %1284 = vmatpush1.msra.mxu0 0.0
  %1285 = vmatprep.subr.mxu0 0.0
  %1286 = vmatpush1.msra.mxu0 0.0
  %1287 = vmatprep.subr.mxu0 0.0
  %1288 = vmatpush1.msra.mxu0 0.0
  %1289 = vmatprep.subr.mxu0 0.0
  %1290 = vmatpush1.msra.mxu0 0.0
  %1291 = vmatprep.subr.mxu0 0.0
  %1292 = vmatpush1.msra.mxu0 0.0
  %1293 = vmatprep.subr.mxu0 0.0
  %1294 = vmatpush1.msra.mxu0 0.0
  %1295 = vmatprep.subr.mxu0 0.0
  %1296 = vmatpush1.msra.mxu0 0.0
  %1297 = vmatprep.subr.mxu0 0.0
  %1298 = vmatpush1.msra.mxu0 0.0
  %1299 = vmatprep.subr.mxu0 0.0
  %1300 = vmatpush1.msra.mxu0 0.0
  %1301 = vmatprep.subr.mxu0 0.0
  %1302 = vmatpush1.msra.mxu0 0.0
  %1303 = vmatprep.subr.mxu0 0.0
  %1304 = vmatpush1.msra.mxu0 0.0
  %1305 = vmatprep.mubr.f32.mxu0 0.0
  %1306 = vmatmul.mubr.f32.gmra.mrb[0].mxu0 %v1236
  %v1307 = vpop.f32.mrb[0].mxu0
  %v1308 = vadd.f32 0.0, %v1307
  %v1309 = vpop.f32.mrb[0].mxu0
  %1310 = vmatprep.mubr.f32.mxu0 0.0
  %1311 = vmatmul.mubr.f32.gmra.mrb[0].mxu0 %v1239
  %v1312 = vpop.f32.mrb[0].mxu0
  %v1313 = vadd.f32 0.0, %v1312
  %v1314 = vpop.f32.mrb[0].mxu0
  %1315 = vdwg.mxu0
  %v1317 = vsel %vm123, %v1308, 0
  %v1320 = vsel %vm123, %v1313, 0
  %1322 = vmatprep.subr.mxu0 0.0
  %1323 = vmatpush1.msra.mxu0 %v909
  %1324 = vmatprep.subr.mxu0 0.0
  %1325 = vmatpush1.msra.mxu0 %v910
  %1326 = vmatprep.subr.mxu0 0.0
  %1327 = vmatpush1.msra.mxu0 0.0
  %1328 = vmatprep.subr.mxu0 0.0
  %1329 = vmatpush1.msra.mxu0 0.0
  %1330 = vmatprep.subr.mxu0 0.0
  %1331 = vmatpush1.msra.mxu0 0.0
  %1332 = vmatprep.subr.mxu0 0.0
  %1333 = vmatpush1.msra.mxu0 0.0
  %1334 = vmatprep.subr.mxu0 0.0
  %1335 = vmatpush1.msra.mxu0 0.0
  %1336 = vmatprep.subr.mxu0 0.0
  %1337 = vmatpush1.msra.mxu0 0.0
  %1338 = vmatprep.subr.mxu0 0.0
  %1339 = vmatpush1.msra.mxu0 0.0
  %1340 = vmatprep.subr.mxu0 0.0
  %1341 = vmatpush1.msra.mxu0 0.0
  %1342 = vmatprep.subr.mxu0 0.0
  %1343 = vmatpush1.msra.mxu0 0.0
  %1344 = vmatprep.subr.mxu0 0.0
  %1345 = vmatpush1.msra.mxu0 0.0
  %1346 = vmatprep.subr.mxu0 0.0
  %1347 = vmatpush1.msra.mxu0 0.0
  %1348 = vmatprep.subr.mxu0 0.0
  %1349 = vmatpush1.msra.mxu0 0.0
  %1350 = vmatprep.subr.mxu0 0.0
  %1351 = vmatpush1.msra.mxu0 0.0
  %1352 = vmatprep.subr.mxu0 0.0
  %1353 = vmatpush1.msra.mxu0 0.0
  %1354 = vmatprep.subr.mxu0 0.0
  %1355 = vmatpush1.msra.mxu0 0.0
  %1356 = vmatprep.subr.mxu0 0.0
  %1357 = vmatpush1.msra.mxu0 0.0
  %1358 = vmatprep.subr.mxu0 0.0
  %1359 = vmatpush1.msra.mxu0 0.0
  %1360 = vmatprep.subr.mxu0 0.0
  %1361 = vmatpush1.msra.mxu0 0.0
  %1362 = vmatprep.subr.mxu0 0.0
  %1363 = vmatpush1.msra.mxu0 0.0
  %1364 = vmatprep.subr.mxu0 0.0
  %1365 = vmatpush1.msra.mxu0 0.0
  %1366 = vmatprep.subr.mxu0 0.0
  %1367 = vmatpush1.msra.mxu0 0.0
  %1368 = vmatprep.subr.mxu0 0.0
  %1369 = vmatpush1.msra.mxu0 0.0
  %1370 = vmatprep.subr.mxu0 0.0
  %1371 = vmatpush1.msra.mxu0 0.0
  %1372 = vmatprep.subr.mxu0 0.0
  %1373 = vmatpush1.msra.mxu0 0.0
  %1374 = vmatprep.subr.mxu0 0.0
  %1375 = vmatpush1.msra.mxu0 0.0
  %1376 = vmatprep.subr.mxu0 0.0
  %1377 = vmatpush1.msra.mxu0 0.0
  %1378 = vmatprep.subr.mxu0 0.0
  %1379 = vmatpush1.msra.mxu0 0.0
  %1380 = vmatprep.subr.mxu0 0.0
  %1381 = vmatpush1.msra.mxu0 0.0
  %1382 = vmatprep.subr.mxu0 0.0
  %1383 = vmatpush1.msra.mxu0 0.0
  %1384 = vmatprep.subr.mxu0 0.0
  %1385 = vmatpush1.msra.mxu0 0.0
  %1386 = vmatprep.mubr.f32.mxu0 0.0
  %1387 = vmatmul.mubr.f32.gmra.mrb[0].mxu0 %v1317
  %v1388 = vpop.f32.mrb[0].mxu0
  %v1389 = vadd.f32 0.0, %v1388
  %v1390 = vpop.f32.mrb[0].mxu0
  %1391 = vmatprep.mubr.f32.mxu0 0.0
  %1392 = vmatmul.mubr.f32.gmra.mrb[0].mxu0 %v1320
  %v1393 = vpop.f32.mrb[0].mxu0
  %v1394 = vadd.f32 0.0, %v1393
  %v1395 = vpop.f32.mrb[0].mxu0
  %1396 = vdwg.mxu0
  %v1398 = vsel %vm123, %v1108, 0
  %v1401 = vsel %vm123, %v1113, 0
  %1403 = vmatprep.subr.mxu0 0.0
  %1404 = vmatpush1.msra.mxu0 %v907
  %1405 = vmatprep.subr.mxu0 0.0
  %1406 = vmatpush1.msra.mxu0 %v908
  %1407 = vmatprep.subr.mxu0 0.0
  %1408 = vmatpush1.msra.mxu0 0.0
  %1409 = vmatprep.subr.mxu0 0.0
  %1410 = vmatpush1.msra.mxu0 0.0
  %1411 = vmatprep.subr.mxu0 0.0
  %1412 = vmatpush1.msra.mxu0 0.0
  %1413 = vmatprep.subr.mxu0 0.0
  %1414 = vmatpush1.msra.mxu0 0.0
  %1415 = vmatprep.subr.mxu0 0.0
  %1416 = vmatpush1.msra.mxu0 0.0
  %1417 = vmatprep.subr.mxu0 0.0
  %1418 = vmatpush1.msra.mxu0 0.0
  %1419 = vmatprep.subr.mxu0 0.0
  %1420 = vmatpush1.msra.mxu0 0.0
  %1421 = vmatprep.subr.mxu0 0.0
  %1422 = vmatpush1.msra.mxu0 0.0
  %1423 = vmatprep.subr.mxu0 0.0
  %1424 = vmatpush1.msra.mxu0 0.0
  %1425 = vmatprep.subr.mxu0 0.0
  %1426 = vmatpush1.msra.mxu0 0.0
  %1427 = vmatprep.subr.mxu0 0.0
  %1428 = vmatpush1.msra.mxu0 0.0
  %1429 = vmatprep.subr.mxu0 0.0
  %1430 = vmatpush1.msra.mxu0 0.0
  %1431 = vmatprep.subr.mxu0 0.0
  %1432 = vmatpush1.msra.mxu0 0.0
  %1433 = vmatprep.subr.mxu0 0.0
  %1434 = vmatpush1.msra.mxu0 0.0
  %1435 = vmatprep.subr.mxu0 0.0
  %1436 = vmatpush1.msra.mxu0 0.0
  %1437 = vmatprep.subr.mxu0 0.0
  %1438 = vmatpush1.msra.mxu0 0.0
  %1439 = vmatprep.subr.mxu0 0.0
  %1440 = vmatpush1.msra.mxu0 0.0
  %1441 = vmatprep.subr.mxu0 0.0
  %1442 = vmatpush1.msra.mxu0 0.0
  %1443 = vmatprep.subr.mxu0 0.0
  %1444 = vmatpush1.msra.mxu0 0.0
  %1445 = vmatprep.subr.mxu0 0.0
  %1446 = vmatpush1.msra.mxu0 0.0
  %1447 = vmatprep.subr.mxu0 0.0
  %1448 = vmatpush1.msra.mxu0 0.0
  %1449 = vmatprep.subr.mxu0 0.0
  %1450 = vmatpush1.msra.mxu0 0.0
  %1451 = vmatprep.subr.mxu0 0.0
  %1452 = vmatpush1.msra.mxu0 0.0
  %1453 = vmatprep.subr.mxu0 0.0
  %1454 = vmatpush1.msra.mxu0 0.0
  %1455 = vmatprep.subr.mxu0 0.0
  %1456 = vmatpush1.msra.mxu0 0.0
  %1457 = vmatprep.subr.mxu0 0.0
  %1458 = vmatpush1.msra.mxu0 0.0
  %1459 = vmatprep.subr.mxu0 0.0
  %1460 = vmatpush1.msra.mxu0 0.0
  %1461 = vmatprep.subr.mxu0 0.0
  %1462 = vmatpush1.msra.mxu0 0.0
  %1463 = vmatprep.subr.mxu0 0.0
  %1464 = vmatpush1.msra.mxu0 0.0
  %1465 = vmatprep.subr.mxu0 0.0
  %1466 = vmatpush1.msra.mxu0 0.0
  %1467 = vmatprep.mubr.f32.mxu0 0.0
  %1468 = vmatmul.mubr.f32.gmra.mrb[0].mxu0 %v1398
  %v1469 = vpop.f32.mrb[0].mxu0
  %v1470 = vadd.f32 %v1389, %v1469
  %v1471 = vpop.f32.mrb[0].mxu0
  %1472 = vmatprep.mubr.f32.mxu0 0.0
  %1473 = vmatmul.mubr.f32.gmra.mrb[0].mxu0 %v1401
  %v1474 = vpop.f32.mrb[0].mxu0
  %v1475 = vadd.f32 %v1394, %v1474
  %v1476 = vpop.f32.mrb[0].mxu0
  %1477 = vdwg.mxu0
  %v1478 = vlaneseq
  %v1479 = vshrl.u32 %v1478, 7
  %v1480 = vsub.s32 0, %v1479
  %v1481 = vrot.slane %v911, %v1480
  %v1482 = vadd.f32 %v1470, %v1481
  %v1483 = vadd.f32 %v1475, %v1481
  %v1484 = vadd.f32 %v1482, %v723
  %v1485 = vadd.f32 %v1483, %v724
  %v1486 = vsel %vm22, %v1484, 0.0
  %1487 = vadd.xlane.f32.xlu0 %v1486
  %v1488 = vpop.xlane.xlu0 %1487
  %v1489 = vsel %vm22, %v1485, 0.0
  %1490 = vadd.xlane.f32.xlu0 %v1489
  %v1491 = vpop.xlane.xlu0 %1490
  %v1492 = vmul.f32 %v1488, %v692
  %v1493 = vmul.f32 %v1491, %v692
  %v1494 = vsub.f32 %v1484, %v1492
  %v1495 = vsub.f32 %v1485, %v1493
  %v1496 = vmul.f32 %v1494, %v1494
  %v1497 = vmul.f32 %v1495, %v1495
  %v1498 = vsel %vm22, %v1496, 0.0
  %1499 = vadd.xlane.f32.xlu0 %v1498
  %v1500 = vpop.xlane.xlu0 %1499
  %v1501 = vsel %vm22, %v1497, 0.0
  %1502 = vadd.xlane.f32.xlu0 %v1501
  %v1503 = vpop.xlane.xlu0 %1502
  %v1504 = vmul.f32 %v1500, %v692
  %v1505 = vmul.f32 %v1503, %v692
  %v1506 = vadd.f32 %v1504, 1e-05
  %v1507 = vadd.f32 %v1505, 1e-05
  %v1508 = vrsqrt.pop %v1506
  %v1509 = vrsqrt.pop %v1507
  %v1510 = vmul.f32 %v1494, %v1508
  %v1511 = vmul.f32 %v1495, %v1509
  %v1512 = vlaneseq
  %v1513 = vshrl.u32 %v1512, 7
  %v1514 = vsub.s32 0, %v1513
  %v1515 = vrot.slane %v912, %v1514
  %v1516 = vmul.f32 %v1510, %v1515
  %v1517 = vmul.f32 %v1511, %v1515
  %v1518 = vlaneseq
  %v1519 = vshrl.u32 %v1518, 7
  %v1520 = vsub.s32 0, %v1519
  %v1521 = vrot.slane %v913, %v1520
  %v1522 = vadd.f32 %v1516, %v1521
  %v1523 = vadd.f32 %v1517, %v1521
  %v1524 = vld [vmem:[%s1 + $0xa0] sm:$0xff]
  %v1525 = vld [vmem:[%s1 + $0xa8] sm:$0xff]
  %v1526 = vld [vmem:[%s1 + $0xb0] sm:$0xff]
  %v1527 = vld [vmem:[%s1 + $0xb8] sm:$0xff]
  %v1528 = vld [vmem:[%s1 + $0x148] sm:$0x1]
  %v1529 = vlaneseq
  %v1530 = vshrl.u32 %v1529, 7
  %v1531 = vsub.s32 0, %v1530
  %v1532 = vrot.slane %v1528, %v1531
  %v1534 = vsel %vm22, %v1522, 0
  %v1537 = vsel %vm22, %v1523, 0
  %1539 = vmatprep.subr.mxu0 0.0
  %1540 = vmatpush1.msra.mxu0 %v1524
  %1541 = vmatprep.subr.mxu0 0.0
  %1542 = vmatpush1.msra.mxu0 %v1525
  %1543 = vmatprep.subr.mxu0 0.0
  %1544 = vmatpush1.msra.mxu0 %v1526
  %1545 = vmatprep.subr.mxu0 0.0
  %1546 = vmatpush1.msra.mxu0 %v1527
  %1547 = vmatprep.subr.mxu0 0.0
  %1548 = vmatpush1.msra.mxu0 0.0
  %1549 = vmatprep.subr.mxu0 0.0
  %1550 = vmatpush1.msra.mxu0 0.0
  %1551 = vmatprep.subr.mxu0 0.0
  %1552 = vmatpush1.msra.mxu0 0.0
  %1553 = vmatprep.subr.mxu0 0.0
  %1554 = vmatpush1.msra.mxu0 0.0
  %1555 = vmatprep.subr.mxu0 0.0
  %1556 = vmatpush1.msra.mxu0 0.0
  %1557 = vmatprep.subr.mxu0 0.0
  %1558 = vmatpush1.msra.mxu0 0.0
  %1559 = vmatprep.subr.mxu0 0.0
  %1560 = vmatpush1.msra.mxu0 0.0
  %1561 = vmatprep.subr.mxu0 0.0
  %1562 = vmatpush1.msra.mxu0 0.0
  %1563 = vmatprep.subr.mxu0 0.0
  %1564 = vmatpush1.msra.mxu0 0.0
  %1565 = vmatprep.subr.mxu0 0.0
  %1566 = vmatpush1.msra.mxu0 0.0
  %1567 = vmatprep.subr.mxu0 0.0
  %1568 = vmatpush1.msra.mxu0 0.0
  %1569 = vmatprep.subr.mxu0 0.0
  %1570 = vmatpush1.msra.mxu0 0.0
  %1571 = vmatprep.subr.mxu0 0.0
  %1572 = vmatpush1.msra.mxu0 0.0
  %1573 = vmatprep.subr.mxu0 0.0
  %1574 = vmatpush1.msra.mxu0 0.0
  %1575 = vmatprep.subr.mxu0 0.0
  %1576 = vmatpush1.msra.mxu0 0.0
  %1577 = vmatprep.subr.mxu0 0.0
  %1578 = vmatpush1.msra.mxu0 0.0
  %1579 = vmatprep.subr.mxu0 0.0
  %1580 = vmatpush1.msra.mxu0 0.0
  %1581 = vmatprep.subr.mxu0 0.0
  %1582 = vmatpush1.msra.mxu0 0.0
  %1583 = vmatprep.subr.mxu0 0.0
  %1584 = vmatpush1.msra.mxu0 0.0
  %1585 = vmatprep.subr.mxu0 0.0
  %1586 = vmatpush1.msra.mxu0 0.0
  %1587 = vmatprep.subr.mxu0 0.0
  %1588 = vmatpush1.msra.mxu0 0.0
  %1589 = vmatprep.subr.mxu0 0.0
  %1590 = vmatpush1.msra.mxu0 0.0
  %1591 = vmatprep.subr.mxu0 0.0
  %1592 = vmatpush1.msra.mxu0 0.0
  %1593 = vmatprep.subr.mxu0 0.0
  %1594 = vmatpush1.msra.mxu0 0.0
  %1595 = vmatprep.subr.mxu0 0.0
  %1596 = vmatpush1.msra.mxu0 0.0
  %1597 = vmatprep.subr.mxu0 0.0
  %1598 = vmatpush1.msra.mxu0 0.0
  %1599 = vmatprep.subr.mxu0 0.0
  %1600 = vmatpush1.msra.mxu0 0.0
  %1601 = vmatprep.subr.mxu0 0.0
  %1602 = vmatpush1.msra.mxu0 0.0
  %1603 = vmatprep.mubr.f32.mxu0 0.0
  %1604 = vmatmul.mubr.f32.gmra.mrb[0].mxu0 %v1534
  %v1605 = vpop.f32.mrb[0].mxu0
  %v1606 = vadd.f32 %v1532, %v1605
  %v1607 = vpop.f32.mrb[0].mxu0
  %1608 = vmatprep.mubr.f32.mxu0 0.0
  %1609 = vmatmul.mubr.f32.gmra.mrb[0].mxu0 %v1537
  %v1610 = vpop.f32.mrb[0].mxu0
  %v1611 = vadd.f32 %v1532, %v1610
  %v1612 = vpop.f32.mrb[0].mxu0
  %1613 = vdwg.mxu0
  %v1614 = vmax.f32 %v1606, 0.0
  %v1615 = vmax.f32 %v1611, 0.0
  %v1616 = vld [vmem:[%s1 + $0xc0] sm:$0xff]
  %v1617 = vld [vmem:[%s1 + $0xc8] sm:$0xff]
  %v1618 = vld [vmem:[%s1 + $0xd0] sm:$0xff]
  %v1619 = vld [vmem:[%s1 + $0xd8] sm:$0xff]
  %v1620 = vld [vmem:[%s1 + $0xe0] sm:$0xff]
  %v1621 = vld [vmem:[%s1 + $0xe8] sm:$0xff]
  %v1622 = vld [vmem:[%s1 + $0xf0] sm:$0xff]
  %v1623 = vld [vmem:[%s1 + $0xf8] sm:$0xff]
  %v1624 = vld [vmem:[%s1 + $0x150] sm:$0x1]
  %v1625 = vlaneseq
  %v1626 = vshrl.u32 %v1625, 7
  %v1627 = vsub.s32 0, %v1626
  %v1628 = vrot.slane %v1624, %v1627
  %vm1629 = vcmask 523264
  %v1631 = vsel %vm1629, %v1614, 0
  %v1634 = vsel %vm1629, %v1615, 0
  %1636 = vmatprep.subr.mxu0 0.0
  %1637 = vmatpush1.msra.mxu0 %v1616
  %1638 = vmatprep.subr.mxu0 0.0
  %1639 = vmatpush1.msra.mxu0 %v1617
  %1640 = vmatprep.subr.mxu0 0.0
  %1641 = vmatpush1.msra.mxu0 %v1618
  %1642 = vmatprep.subr.mxu0 0.0
  %1643 = vmatpush1.msra.mxu0 %v1619
  %1644 = vmatprep.subr.mxu0 0.0
  %1645 = vmatpush1.msra.mxu0 %v1620
  %1646 = vmatprep.subr.mxu0 0.0
  %1647 = vmatpush1.msra.mxu0 %v1621
  %1648 = vmatprep.subr.mxu0 0.0
  %1649 = vmatpush1.msra.mxu0 %v1622
  %1650 = vmatprep.subr.mxu0 0.0
  %1651 = vmatpush1.msra.mxu0 %v1623
  %1652 = vmatprep.subr.mxu0 0.0
  %1653 = vmatpush1.msra.mxu0 0.0
  %1654 = vmatprep.subr.mxu0 0.0
  %1655 = vmatpush1.msra.mxu0 0.0
  %1656 = vmatprep.subr.mxu0 0.0
  %1657 = vmatpush1.msra.mxu0 0.0
  %1658 = vmatprep.subr.mxu0 0.0
  %1659 = vmatpush1.msra.mxu0 0.0
  %1660 = vmatprep.subr.mxu0 0.0
  %1661 = vmatpush1.msra.mxu0 0.0
  %1662 = vmatprep.subr.mxu0 0.0
  %1663 = vmatpush1.msra.mxu0 0.0
  %1664 = vmatprep.subr.mxu0 0.0
  %1665 = vmatpush1.msra.mxu0 0.0
  %1666 = vmatprep.subr.mxu0 0.0
  %1667 = vmatpush1.msra.mxu0 0.0
  %1668 = vmatprep.subr.mxu0 0.0
  %1669 = vmatpush1.msra.mxu0 0.0
  %1670 = vmatprep.subr.mxu0 0.0
  %1671 = vmatpush1.msra.mxu0 0.0
  %1672 = vmatprep.subr.mxu0 0.0
  %1673 = vmatpush1.msra.mxu0 0.0
  %1674 = vmatprep.subr.mxu0 0.0
  %1675 = vmatpush1.msra.mxu0 0.0
  %1676 = vmatprep.subr.mxu0 0.0
  %1677 = vmatpush1.msra.mxu0 0.0
  %1678 = vmatprep.subr.mxu0 0.0
  %1679 = vmatpush1.msra.mxu0 0.0
  %1680 = vmatprep.subr.mxu0 0.0
  %1681 = vmatpush1.msra.mxu0 0.0
  %1682 = vmatprep.subr.mxu0 0.0
  %1683 = vmatpush1.msra.mxu0 0.0
  %1684 = vmatprep.subr.mxu0 0.0
  %1685 = vmatpush1.msra.mxu0 0.0
  %1686 = vmatprep.subr.mxu0 0.0
  %1687 = vmatpush1.msra.mxu0 0.0
  %1688 = vmatprep.subr.mxu0 0.0
  %1689 = vmatpush1.msra.mxu0 0.0
  %1690 = vmatprep.subr.mxu0 0.0
  %1691 = vmatpush1.msra.mxu0 0.0
  %1692 = vmatprep.subr.mxu0 0.0
  %1693 = vmatpush1.msra.mxu0 0.0
  %1694 = vmatprep.subr.mxu0 0.0
  %1695 = vmatpush1.msra.mxu0 0.0
  %1696 = vmatprep.subr.mxu0 0.0
  %1697 = vmatpush1.msra.mxu0 0.0
  %1698 = vmatprep.subr.mxu0 0.0
  %1699 = vmatpush1.msra.mxu0 0.0
  %1700 = vmatprep.mubr.f32.mxu0 0.0
  %1701 = vmatmul.mubr.f32.gmra.mrb[0].mxu0 %v1631
  %v1702 = vpop.f32.mrb[0].mxu0
  %v1703 = vadd.f32 %v1628, %v1702
  %v1704 = vpop.f32.mrb[0].mxu0
  %1705 = vmatprep.mubr.f32.mxu0 0.0
  %1706 = vmatmul.mubr.f32.gmra.mrb[0].mxu0 %v1634
  %v1707 = vpop.f32.mrb[0].mxu0
  %v1708 = vadd.f32 %v1628, %v1707
  %v1709 = vpop.f32.mrb[0].mxu0
  %1710 = vdwg.mxu0
  %v1711 = vadd.f32 %v1703, %v1522
  %v1712 = vadd.f32 %v1708, %v1523
  %v1713 = vld [vmem:[%s1 + $0x158] sm:$0x1]
  %v1714 = vld [vmem:[%s1 + $0x160] sm:$0x1]
  %v1715 = vsel %vm22, %v1711, 0.0
  %1716 = vadd.xlane.f32.xlu0 %v1715
  %v1717 = vpop.xlane.xlu0 %1716
  %v1718 = vsel %vm22, %v1712, 0.0
  %1719 = vadd.xlane.f32.xlu0 %v1718
  %v1720 = vpop.xlane.xlu0 %1719
  %v1721 = vmul.f32 %v1717, %v692
  %v1722 = vmul.f32 %v1720, %v692
  %v1723 = vsub.f32 %v1711, %v1721
  %v1724 = vsub.f32 %v1712, %v1722
  %v1725 = vmul.f32 %v1723, %v1723
  %v1726 = vmul.f32 %v1724, %v1724
  %v1727 = vsel %vm22, %v1725, 0.0
  %1728 = vadd.xlane.f32.xlu0 %v1727
  %v1729 = vpop.xlane.xlu0 %1728
  %v1730 = vsel %vm22, %v1726, 0.0
  %1731 = vadd.xlane.f32.xlu0 %v1730
  %v1732 = vpop.xlane.xlu0 %1731
  %v1733 = vmul.f32 %v1729, %v692
  %v1734 = vmul.f32 %v1732, %v692
  %v1735 = vadd.f32 %v1733, 1e-05
  %v1736 = vadd.f32 %v1734, 1e-05
  %v1737 = vrsqrt.pop %v1735
  %v1738 = vrsqrt.pop %v1736
  %v1739 = vmul.f32 %v1723, %v1737
  %v1740 = vmul.f32 %v1724, %v1738
  %v1741 = vlaneseq
  %v1742 = vshrl.u32 %v1741, 7
  %v1743 = vsub.s32 0, %v1742
  %v1744 = vrot.slane %v1713, %v1743
  %v1745 = vmul.f32 %v1739, %v1744
  %v1746 = vmul.f32 %v1740, %v1744
  %v1747 = vlaneseq
  %v1748 = vshrl.u32 %v1747, 7
  %v1749 = vsub.s32 0, %v1748
  %v1750 = vrot.slane %v1714, %v1749
  %v1751 = vadd.f32 %v1745, %v1750
  %v1752 = vadd.f32 %v1746, %v1750
  %v1753 = vld [vmem:[%s1 + $0x168] sm:$0xff]
  %v1754 = vld [vmem:[%s1 + $0x170] sm:$0xff]
  %v1755 = vld [vmem:[%s1 + $0x178] sm:$0xff]
  %v1756 = vld [vmem:[%s1 + $0x180] sm:$0xff]
  %v1757 = vld [vmem:[%s1 + $0x268] sm:$0x1]
  %v1758 = vlaneseq
  %v1759 = vshrl.u32 %v1758, 7
  %v1760 = vsub.s32 0, %v1759
  %v1761 = vrot.slane %v1757, %v1760
  %v1763 = vsel %vm22, %v1751, 0
  %v1766 = vsel %vm22, %v1752, 0
  %1768 = vmatprep.subr.mxu0 0.0
  %1769 = vmatpush1.msra.mxu0 %v1753
  %1770 = vmatprep.subr.mxu0 0.0
  %1771 = vmatpush1.msra.mxu0 %v1754
  %1772 = vmatprep.subr.mxu0 0.0
  %1773 = vmatpush1.msra.mxu0 %v1755
  %1774 = vmatprep.subr.mxu0 0.0
  %1775 = vmatpush1.msra.mxu0 %v1756
  %1776 = vmatprep.subr.mxu0 0.0
  %1777 = vmatpush1.msra.mxu0 0.0
  %1778 = vmatprep.subr.mxu0 0.0
  %1779 = vmatpush1.msra.mxu0 0.0
  %1780 = vmatprep.subr.mxu0 0.0
  %1781 = vmatpush1.msra.mxu0 0.0
  %1782 = vmatprep.subr.mxu0 0.0
  %1783 = vmatpush1.msra.mxu0 0.0
  %1784 = vmatprep.subr.mxu0 0.0
  %1785 = vmatpush1.msra.mxu0 0.0
  %1786 = vmatprep.subr.mxu0 0.0
  %1787 = vmatpush1.msra.mxu0 0.0
  %1788 = vmatprep.subr.mxu0 0.0
  %1789 = vmatpush1.msra.mxu0 0.0
  %1790 = vmatprep.subr.mxu0 0.0
  %1791 = vmatpush1.msra.mxu0 0.0
  %1792 = vmatprep.subr.mxu0 0.0
  %1793 = vmatpush1.msra.mxu0 0.0
  %1794 = vmatprep.subr.mxu0 0.0
  %1795 = vmatpush1.msra.mxu0 0.0
  %1796 = vmatprep.subr.mxu0 0.0
  %1797 = vmatpush1.msra.mxu0 0.0
  %1798 = vmatprep.subr.mxu0 0.0
  %1799 = vmatpush1.msra.mxu0 0.0
  %1800 = vmatprep.subr.mxu0 0.0
  %1801 = vmatpush1.msra.mxu0 0.0
  %1802 = vmatprep.subr.mxu0 0.0
  %1803 = vmatpush1.msra.mxu0 0.0
  %1804 = vmatprep.subr.mxu0 0.0
  %1805 = vmatpush1.msra.mxu0 0.0
  %1806 = vmatprep.subr.mxu0 0.0
  %1807 = vmatpush1.msra.mxu0 0.0
  %1808 = vmatprep.subr.mxu0 0.0
  %1809 = vmatpush1.msra.mxu0 0.0
  %1810 = vmatprep.subr.mxu0 0.0
  %1811 = vmatpush1.msra.mxu0 0.0
  %1812 = vmatprep.subr.mxu0 0.0
  %1813 = vmatpush1.msra.mxu0 0.0
  %1814 = vmatprep.subr.mxu0 0.0
  %1815 = vmatpush1.msra.mxu0 0.0
  %1816 = vmatprep.subr.mxu0 0.0
  %1817 = vmatpush1.msra.mxu0 0.0
  %1818 = vmatprep.subr.mxu0 0.0
  %1819 = vmatpush1.msra.mxu0 0.0
  %1820 = vmatprep.subr.mxu0 0.0
  %1821 = vmatpush1.msra.mxu0 0.0
  %1822 = vmatprep.subr.mxu0 0.0
  %1823 = vmatpush1.msra.mxu0 0.0
  %1824 = vmatprep.subr.mxu0 0.0
  %1825 = vmatpush1.msra.mxu0 0.0
  %1826 = vmatprep.subr.mxu0 0.0
  %1827 = vmatpush1.msra.mxu0 0.0
  %1828 = vmatprep.subr.mxu0 0.0
  %1829 = vmatpush1.msra.mxu0 0.0
  %1830 = vmatprep.subr.mxu0 0.0
  %1831 = vmatpush1.msra.mxu0 0.0
  %1832 = vmatprep.mubr.f32.mxu0 0.0
  %1833 = vmatmul.mubr.f32.gmra.mrb[0].mxu0 %v1763
  %v1834 = vpop.f32.mrb[0].mxu0
  %v1835 = vadd.f32 %v1761, %v1834
  %v1836 = vpop.f32.mrb[0].mxu0
  %1837 = vmatprep.mubr.f32.mxu0 0.0
  %1838 = vmatmul.mubr.f32.gmra.mrb[0].mxu0 %v1766
  %v1839 = vpop.f32.mrb[0].mxu0
  %v1840 = vadd.f32 %v1761, %v1839
  %v1841 = vpop.f32.mrb[0].mxu0
  %1842 = vdwg.mxu0
  %v1843 = vld [vmem:[%s1 + $0x188] sm:$0xff]
  %v1844 = vld [vmem:[%s1 + $0x190] sm:$0xff]
  %v1845 = vld [vmem:[%s1 + $0x198] sm:$0xff]
  %v1846 = vld [vmem:[%s1 + $0x1a0] sm:$0xff]
  %v1847 = vld [vmem:[%s1 + $0x270] sm:$0x1]
  %v1848 = vld [vmem:[%s1 + $0x278] sm:$0x1]
  %v1849 = vld [vmem:[%s1 + $0x280] sm:$0x1]
  %1852 = vrot.lane.b32.xlu0 %v1835, 96
  %v1853 = vpop.permute.xlu0 %1852
  %1854 = vrot.lane.b32.xlu0 %v1840, 96
  %v1855 = vpop.permute.xlu0 %1854
  %v1856 = vsel %vm123, %v1835, 0
  %v1858 = vsel %vm123, %v1840, 0
  %v1860 = vsel %vm123, %v1853, 0
  %v1862 = vsel %vm123, %v1855, 0
  %1864 = vmatprep.subr.mxu0 0.0
  %1865 = vmatpush1.xpose.msra.mxu0 %v1860
  %1866 = vmatprep.subr.mxu0 0.0
  %1867 = vmatpush1.xpose.msra.mxu0 %v1862
  %1868 = vmatprep.subr.mxu0 0.0
  %1869 = vmatpush1.xpose.msra.mxu0 0.0
  %1870 = vmatprep.subr.mxu0 0.0
  %1871 = vmatpush1.xpose.msra.mxu0 0.0
  %1872 = vmatprep.subr.mxu0 0.0
  %1873 = vmatpush1.xpose.msra.mxu0 0.0
  %1874 = vmatprep.subr.mxu0 0.0
  %1875 = vmatpush1.xpose.msra.mxu0 0.0
  %1876 = vmatprep.subr.mxu0 0.0
  %1877 = vmatpush1.xpose.msra.mxu0 0.0
  %1878 = vmatprep.subr.mxu0 0.0
  %1879 = vmatpush1.xpose.msra.mxu0 0.0
  %1880 = vmatprep.subr.mxu0 0.0
  %1881 = vmatpush1.xpose.msra.mxu0 0.0
  %1882 = vmatprep.subr.mxu0 0.0
  %1883 = vmatpush1.xpose.msra.mxu0 0.0
  %1884 = vmatprep.subr.mxu0 0.0
  %1885 = vmatpush1.xpose.msra.mxu0 0.0
  %1886 = vmatprep.subr.mxu0 0.0
  %1887 = vmatpush1.xpose.msra.mxu0 0.0
  %1888 = vmatprep.subr.mxu0 0.0
  %1889 = vmatpush1.xpose.msra.mxu0 0.0
  %1890 = vmatprep.subr.mxu0 0.0
  %1891 = vmatpush1.xpose.msra.mxu0 0.0
  %1892 = vmatprep.subr.mxu0 0.0
  %1893 = vmatpush1.xpose.msra.mxu0 0.0
  %1894 = vmatprep.subr.mxu0 0.0
  %1895 = vmatpush1.xpose.msra.mxu0 0.0
  %1896 = vmatprep.subr.mxu0 0.0
  %1897 = vmatpush1.xpose.msra.mxu0 0.0
  %1898 = vmatprep.subr.mxu0 0.0
  %1899 = vmatpush1.xpose.msra.mxu0 0.0
  %1900 = vmatprep.subr.mxu0 0.0
  %1901 = vmatpush1.xpose.msra.mxu0 0.0
  %1902 = vmatprep.subr.mxu0 0.0
  %1903 = vmatpush1.xpose.msra.mxu0 0.0
  %1904 = vmatprep.subr.mxu0 0.0
  %1905 = vmatpush1.xpose.msra.mxu0 0.0
  %1906 = vmatprep.subr.mxu0 0.0
  %1907 = vmatpush1.xpose.msra.mxu0 0.0
  %1908 = vmatprep.subr.mxu0 0.0
  %1909 = vmatpush1.xpose.msra.mxu0 0.0
  %1910 = vmatprep.subr.mxu0 0.0
  %1911 = vmatpush1.xpose.msra.mxu0 0.0
  %1912 = vmatprep.subr.mxu0 0.0
  %1913 = vmatpush1.xpose.msra.mxu0 0.0
  %1914 = vmatprep.subr.mxu0 0.0
  %1915 = vmatpush1.xpose.msra.mxu0 0.0
  %1916 = vmatprep.subr.mxu0 0.0
  %1917 = vmatpush1.xpose.msra.mxu0 0.0
  %1918 = vmatprep.subr.mxu0 0.0
  %1919 = vmatpush1.xpose.msra.mxu0 0.0
  %1920 = vmatprep.subr.mxu0 0.0
  %1921 = vmatpush1.xpose.msra.mxu0 0.0
  %1922 = vmatprep.subr.mxu0 0.0
  %1923 = vmatpush1.xpose.msra.mxu0 0.0
  %1924 = vmatprep.subr.mxu0 0.0
  %1925 = vmatpush1.xpose.msra.mxu0 0.0
  %1926 = vmatprep.subr.mxu0 0.0
  %1927 = vmatpush1.xpose.msra.mxu0 0.0
  %1928 = vmatprep.mubr.f32.mxu0 0.0
  %1929 = vmatmul.mubr.f32.gmra.mrb[0].mxu0 %v1856
  %v1930 = vpop.f32.mrb[0].mxu0
  %v1931 = vadd.f32 %v118, %v1930
  %v1932 = vpop.f32.mrb[0].mxu0
  %1933 = vmatprep.mubr.f32.mxu0 0.0
  %1934 = vmatmul.mubr.f32.gmra.mrb[0].mxu0 %v1858
  %v1935 = vpop.f32.mrb[0].mxu0
  %v1936 = vadd.f32 %v120, %v1935
  %v1937 = vpop.f32.mrb[0].mxu0
  %1938 = vdwg.mxu0
  %v1939 = vsel %vm123, %v1931, -inf
  %1940 = vmax.xlane.f32.xlu0 %v1939
  %v1941 = vpop.xlane.xlu0 %1940
  %v1942 = vsel %vm123, %v1936, -inf
  %1943 = vmax.xlane.f32.xlu0 %v1942
  %v1944 = vpop.xlane.xlu0 %1943
  %v1945 = vsub.f32 %v1931, %v1941
  %v1946 = vsub.f32 %v1936, %v1944
  %v1947 = vmul.f32 %v1945, 1.442695
  %v1948 = vpow.pop %v1947
  %v1949 = vmul.f32 %v1946, 1.442695
  %v1950 = vpow.pop %v1949
  %v1951 = vsel %vm123, %v1948, 0.0
  %1952 = vadd.xlane.f32.xlu0 %v1951
  %v1953 = vpop.xlane.xlu0 %1952
  %v1954 = vsel %vm123, %v1950, 0.0
  %1955 = vadd.xlane.f32.xlu0 %v1954
  %v1956 = vpop.xlane.xlu0 %1955
  %v1957 = vrcp.pop %v1953
  %v1958 = vmul.f32 %v1948, %v1957
  %v1959 = vrcp.pop %v1956
  %v1960 = vmul.f32 %v1950, %v1959
  %1961 = vrot.lane.b32.xlu0 %v1835, 64
  %v1962 = vpop.permute.xlu0 %1961
  %1963 = vrot.lane.b32.xlu0 %v1840, 64
  %v1964 = vpop.permute.xlu0 %1963
  %v1968 = vsel %vm123, %v1958, 0
  %v1971 = vsel %vm123, %v1960, 0
  %1973 = vmatprep.subr.mxu0 0.0
  %1974 = vmatpush1.msra.mxu0 %v1962
  %1975 = vmatprep.subr.mxu0 0.0
  %1976 = vmatpush1.msra.mxu0 %v1964
  %1977 = vmatprep.subr.mxu0 0.0
  %1978 = vmatpush1.msra.mxu0 0.0
  %1979 = vmatprep.subr.mxu0 0.0
  %1980 = vmatpush1.msra.mxu0 0.0
  %1981 = vmatprep.subr.mxu0 0.0
  %1982 = vmatpush1.msra.mxu0 0.0
  %1983 = vmatprep.subr.mxu0 0.0
  %1984 = vmatpush1.msra.mxu0 0.0
  %1985 = vmatprep.subr.mxu0 0.0
  %1986 = vmatpush1.msra.mxu0 0.0
  %1987 = vmatprep.subr.mxu0 0.0
  %1988 = vmatpush1.msra.mxu0 0.0
  %1989 = vmatprep.subr.mxu0 0.0
  %1990 = vmatpush1.msra.mxu0 0.0
  %1991 = vmatprep.subr.mxu0 0.0
  %1992 = vmatpush1.msra.mxu0 0.0
  %1993 = vmatprep.subr.mxu0 0.0
  %1994 = vmatpush1.msra.mxu0 0.0
  %1995 = vmatprep.subr.mxu0 0.0
  %1996 = vmatpush1.msra.mxu0 0.0
  %1997 = vmatprep.subr.mxu0 0.0
  %1998 = vmatpush1.msra.mxu0 0.0
  %1999 = vmatprep.subr.mxu0 0.0
  %2000 = vmatpush1.msra.mxu0 0.0
  %2001 = vmatprep.subr.mxu0 0.0
  %2002 = vmatpush1.msra.mxu0 0.0
  %2003 = vmatprep.subr.mxu0 0.0
  %2004 = vmatpush1.msra.mxu0 0.0
  %2005 = vmatprep.subr.mxu0 0.0
  %2006 = vmatpush1.msra.mxu0 0.0
  %2007 = vmatprep.subr.mxu0 0.0
  %2008 = vmatpush1.msra.mxu0 0.0
  %2009 = vmatprep.subr.mxu0 0.0
  %2010 = vmatpush1.msra.mxu0 0.0
  %2011 = vmatprep.subr.mxu0 0.0
  %2012 = vmatpush1.msra.mxu0 0.0
  %2013 = vmatprep.subr.mxu0 0.0
  %2014 = vmatpush1.msra.mxu0 0.0
  %2015 = vmatprep.subr.mxu0 0.0
  %2016 = vmatpush1.msra.mxu0 0.0
  %2017 = vmatprep.subr.mxu0 0.0
  %2018 = vmatpush1.msra.mxu0 0.0
  %2019 = vmatprep.subr.mxu0 0.0
  %2020 = vmatpush1.msra.mxu0 0.0
  %2021 = vmatprep.subr.mxu0 0.0
  %2022 = vmatpush1.msra.mxu0 0.0
  %2023 = vmatprep.subr.mxu0 0.0
  %2024 = vmatpush1.msra.mxu0 0.0
  %2025 = vmatprep.subr.mxu0 0.0
  %2026 = vmatpush1.msra.mxu0 0.0
  %2027 = vmatprep.subr.mxu0 0.0
  %2028 = vmatpush1.msra.mxu0 0.0
  %2029 = vmatprep.subr.mxu0 0.0
  %2030 = vmatpush1.msra.mxu0 0.0
  %2031 = vmatprep.subr.mxu0 0.0
  %2032 = vmatpush1.msra.mxu0 0.0
  %2033 = vmatprep.subr.mxu0 0.0
  %2034 = vmatpush1.msra.mxu0 0.0
  %2035 = vmatprep.subr.mxu0 0.0
  %2036 = vmatpush1.msra.mxu0 0.0
  %2037 = vmatprep.mubr.f32.mxu0 0.0
  %2038 = vmatmul.mubr.f32.gmra.mrb[0].mxu0 %v1968
  %v2039 = vpop.f32.mrb[0].mxu0
  %v2040 = vadd.f32 0.0, %v2039
  %v2041 = vpop.f32.mrb[0].mxu0
  %2042 = vmatprep.mubr.f32.mxu0 0.0
  %2043 = vmatmul.mubr.f32.gmra.mrb[0].mxu0 %v1971
  %v2044 = vpop.f32.mrb[0].mxu0
  %v2045 = vadd.f32 0.0, %v2044
  %v2046 = vpop.f32.mrb[0].mxu0
  %2047 = vdwg.mxu0
  %2048 = vrot.lane.b32.xlu0 %v1835, 112
  %v2049 = vpop.permute.xlu0 %2048
  %2050 = vrot.lane.b32.xlu0 %v1840, 112
  %v2051 = vpop.permute.xlu0 %2050
  %2052 = vrot.lane.b32.xlu0 %v1835, 80
  %v2053 = vpop.permute.xlu0 %2052
  %2054 = vrot.lane.b32.xlu0 %v1840, 80
  %v2055 = vpop.permute.xlu0 %2054
  %v2056 = vsel %vm123, %v2049, 0
  %v2058 = vsel %vm123, %v2051, 0
  %v2060 = vsel %vm123, %v2053, 0
  %v2062 = vsel %vm123, %v2055, 0
  %2064 = vmatprep.subr.mxu0 0.0
  %2065 = vmatpush1.xpose.msra.mxu0 %v2060
  %2066 = vmatprep.subr.mxu0 0.0
  %2067 = vmatpush1.xpose.msra.mxu0 %v2062
  %2068 = vmatprep.subr.mxu0 0.0
  %2069 = vmatpush1.xpose.msra.mxu0 0.0
  %2070 = vmatprep.subr.mxu0 0.0
  %2071 = vmatpush1.xpose.msra.mxu0 0.0
  %2072 = vmatprep.subr.mxu0 0.0
  %2073 = vmatpush1.xpose.msra.mxu0 0.0
  %2074 = vmatprep.subr.mxu0 0.0
  %2075 = vmatpush1.xpose.msra.mxu0 0.0
  %2076 = vmatprep.subr.mxu0 0.0
  %2077 = vmatpush1.xpose.msra.mxu0 0.0
  %2078 = vmatprep.subr.mxu0 0.0
  %2079 = vmatpush1.xpose.msra.mxu0 0.0
  %2080 = vmatprep.subr.mxu0 0.0
  %2081 = vmatpush1.xpose.msra.mxu0 0.0
  %2082 = vmatprep.subr.mxu0 0.0
  %2083 = vmatpush1.xpose.msra.mxu0 0.0
  %2084 = vmatprep.subr.mxu0 0.0
  %2085 = vmatpush1.xpose.msra.mxu0 0.0
  %2086 = vmatprep.subr.mxu0 0.0
  %2087 = vmatpush1.xpose.msra.mxu0 0.0
  %2088 = vmatprep.subr.mxu0 0.0
  %2089 = vmatpush1.xpose.msra.mxu0 0.0
  %2090 = vmatprep.subr.mxu0 0.0
  %2091 = vmatpush1.xpose.msra.mxu0 0.0
  %2092 = vmatprep.subr.mxu0 0.0
  %2093 = vmatpush1.xpose.msra.mxu0 0.0
  %2094 = vmatprep.subr.mxu0 0.0
  %2095 = vmatpush1.xpose.msra.mxu0 0.0
  %2096 = vmatprep.subr.mxu0 0.0
  %2097 = vmatpush1.xpose.msra.mxu0 0.0
  %2098 = vmatprep.subr.mxu0 0.0
  %2099 = vmatpush1.xpose.msra.mxu0 0.0
  %2100 = vmatprep.subr.mxu0 0.0
  %2101 = vmatpush1.xpose.msra.mxu0 0.0
  %2102 = vmatprep.subr.mxu0 0.0
  %2103 = vmatpush1.xpose.msra.mxu0 0.0
  %2104 = vmatprep.subr.mxu0 0.0
  %2105 = vmatpush1.xpose.msra.mxu0 0.0
  %2106 = vmatprep.subr.mxu0 0.0
  %2107 = vmatpush1.xpose.msra.mxu0 0.0
  %2108 = vmatprep.subr.mxu0 0.0
  %2109 = vmatpush1.xpose.msra.mxu0 0.0
  %2110 = vmatprep.subr.mxu0 0.0
  %2111 = vmatpush1.xpose.msra.mxu0 0.0
  %2112 = vmatprep.subr.mxu0 0.0
  %2113 = vmatpush1.xpose.msra.mxu0 0.0
  %2114 = vmatprep.subr.mxu0 0.0
  %2115 = vmatpush1.xpose.msra.mxu0 0.0
  %2116 = vmatprep.subr.mxu0 0.0
  %2117 = vmatpush1.xpose.msra.mxu0 0.0
  %2118 = vmatprep.subr.mxu0 0.0
  %2119 = vmatpush1.xpose.msra.mxu0 0.0
  %2120 = vmatprep.subr.mxu0 0.0
  %2121 = vmatpush1.xpose.msra.mxu0 0.0
  %2122 = vmatprep.subr.mxu0 0.0
  %2123 = vmatpush1.xpose.msra.mxu0 0.0
  %2124 = vmatprep.subr.mxu0 0.0
  %2125 = vmatpush1.xpose.msra.mxu0 0.0
  %2126 = vmatprep.subr.mxu0 0.0
  %2127 = vmatpush1.xpose.msra.mxu0 0.0
  %2128 = vmatprep.mubr.f32.mxu0 0.0
  %2129 = vmatmul.mubr.f32.gmra.mrb[0].mxu0 %v2056
  %v2130 = vpop.f32.mrb[0].mxu0
  %v2131 = vadd.f32 %v118, %v2130
  %v2132 = vpop.f32.mrb[0].mxu0
  %2133 = vmatprep.mubr.f32.mxu0 0.0
  %2134 = vmatmul.mubr.f32.gmra.mrb[0].mxu0 %v2058
  %v2135 = vpop.f32.mrb[0].mxu0
  %v2136 = vadd.f32 %v120, %v2135
  %v2137 = vpop.f32.mrb[0].mxu0
  %2138 = vdwg.mxu0
  %v2139 = vsel %vm123, %v2131, -inf
  %2140 = vmax.xlane.f32.xlu0 %v2139
  %v2141 = vpop.xlane.xlu0 %2140
  %v2142 = vsel %vm123, %v2136, -inf
  %2143 = vmax.xlane.f32.xlu0 %v2142
  %v2144 = vpop.xlane.xlu0 %2143
  %v2145 = vsub.f32 %v2131, %v2141
  %v2146 = vsub.f32 %v2136, %v2144
  %v2147 = vmul.f32 %v2145, 1.442695
  %v2148 = vpow.pop %v2147
  %v2149 = vmul.f32 %v2146, 1.442695
  %v2150 = vpow.pop %v2149
  %v2151 = vsel %vm123, %v2148, 0.0
  %2152 = vadd.xlane.f32.xlu0 %v2151
  %v2153 = vpop.xlane.xlu0 %2152
  %v2154 = vsel %vm123, %v2150, 0.0
  %2155 = vadd.xlane.f32.xlu0 %v2154
  %v2156 = vpop.xlane.xlu0 %2155
  %v2157 = vrcp.pop %v2153
  %v2158 = vmul.f32 %v2148, %v2157
  %v2159 = vrcp.pop %v2156
  %v2160 = vmul.f32 %v2150, %v2159
  %2161 = vrot.lane.b32.xlu0 %v1835, 48
  %v2162 = vpop.permute.xlu0 %2161
  %2163 = vrot.lane.b32.xlu0 %v1840, 48
  %v2164 = vpop.permute.xlu0 %2163
  %v2168 = vsel %vm123, %v2158, 0
  %v2171 = vsel %vm123, %v2160, 0
  %2173 = vmatprep.subr.mxu0 0.0
  %2174 = vmatpush1.msra.mxu0 %v2162
  %2175 = vmatprep.subr.mxu0 0.0
  %2176 = vmatpush1.msra.mxu0 %v2164
  %2177 = vmatprep.subr.mxu0 0.0
  %2178 = vmatpush1.msra.mxu0 0.0
  %2179 = vmatprep.subr.mxu0 0.0
  %2180 = vmatpush1.msra.mxu0 0.0
  %2181 = vmatprep.subr.mxu0 0.0
  %2182 = vmatpush1.msra.mxu0 0.0
  %2183 = vmatprep.subr.mxu0 0.0
  %2184 = vmatpush1.msra.mxu0 0.0
  %2185 = vmatprep.subr.mxu0 0.0
  %2186 = vmatpush1.msra.mxu0 0.0
  %2187 = vmatprep.subr.mxu0 0.0
  %2188 = vmatpush1.msra.mxu0 0.0
  %2189 = vmatprep.subr.mxu0 0.0
  %2190 = vmatpush1.msra.mxu0 0.0
  %2191 = vmatprep.subr.mxu0 0.0
  %2192 = vmatpush1.msra.mxu0 0.0
  %2193 = vmatprep.subr.mxu0 0.0
  %2194 = vmatpush1.msra.mxu0 0.0
  %2195 = vmatprep.subr.mxu0 0.0
  %2196 = vmatpush1.msra.mxu0 0.0
  %2197 = vmatprep.subr.mxu0 0.0
  %2198 = vmatpush1.msra.mxu0 0.0
  %2199 = vmatprep.subr.mxu0 0.0
  %2200 = vmatpush1.msra.mxu0 0.0
  %2201 = vmatprep.subr.mxu0 0.0
  %2202 = vmatpush1.msra.mxu0 0.0
  %2203 = vmatprep.subr.mxu0 0.0
  %2204 = vmatpush1.msra.mxu0 0.0
  %2205 = vmatprep.subr.mxu0 0.0
  %2206 = vmatpush1.msra.mxu0 0.0
  %2207 = vmatprep.subr.mxu0 0.0
  %2208 = vmatpush1.msra.mxu0 0.0
  %2209 = vmatprep.subr.mxu0 0.0
  %2210 = vmatpush1.msra.mxu0 0.0
  %2211 = vmatprep.subr.mxu0 0.0
  %2212 = vmatpush1.msra.mxu0 0.0
  %2213 = vmatprep.subr.mxu0 0.0
  %2214 = vmatpush1.msra.mxu0 0.0
  %2215 = vmatprep.subr.mxu0 0.0
  %2216 = vmatpush1.msra.mxu0 0.0
  %2217 = vmatprep.subr.mxu0 0.0
  %2218 = vmatpush1.msra.mxu0 0.0
  %2219 = vmatprep.subr.mxu0 0.0
  %2220 = vmatpush1.msra.mxu0 0.0
  %2221 = vmatprep.subr.mxu0 0.0
  %2222 = vmatpush1.msra.mxu0 0.0
  %2223 = vmatprep.subr.mxu0 0.0
  %2224 = vmatpush1.msra.mxu0 0.0
  %2225 = vmatprep.subr.mxu0 0.0
  %2226 = vmatpush1.msra.mxu0 0.0
  %2227 = vmatprep.subr.mxu0 0.0
  %2228 = vmatpush1.msra.mxu0 0.0
  %2229 = vmatprep.subr.mxu0 0.0
  %2230 = vmatpush1.msra.mxu0 0.0
  %2231 = vmatprep.subr.mxu0 0.0
  %2232 = vmatpush1.msra.mxu0 0.0
  %2233 = vmatprep.subr.mxu0 0.0
  %2234 = vmatpush1.msra.mxu0 0.0
  %2235 = vmatprep.subr.mxu0 0.0
  %2236 = vmatpush1.msra.mxu0 0.0
  %2237 = vmatprep.mubr.f32.mxu0 0.0
  %2238 = vmatmul.mubr.f32.gmra.mrb[0].mxu0 %v2168
  %v2239 = vpop.f32.mrb[0].mxu0
  %v2240 = vadd.f32 0.0, %v2239
  %v2241 = vpop.f32.mrb[0].mxu0
  %2242 = vmatprep.mubr.f32.mxu0 0.0
  %2243 = vmatmul.mubr.f32.gmra.mrb[0].mxu0 %v2171
  %v2244 = vpop.f32.mrb[0].mxu0
  %v2245 = vadd.f32 0.0, %v2244
  %v2246 = vpop.f32.mrb[0].mxu0
  %2247 = vdwg.mxu0
  %v2249 = vsel %vm123, %v2240, 0
  %v2252 = vsel %vm123, %v2245, 0
  %2254 = vmatprep.subr.mxu0 0.0
  %2255 = vmatpush1.msra.mxu0 %v1845
  %2256 = vmatprep.subr.mxu0 0.0
  %2257 = vmatpush1.msra.mxu0 %v1846
  %2258 = vmatprep.subr.mxu0 0.0
  %2259 = vmatpush1.msra.mxu0 0.0
  %2260 = vmatprep.subr.mxu0 0.0
  %2261 = vmatpush1.msra.mxu0 0.0
  %2262 = vmatprep.subr.mxu0 0.0
  %2263 = vmatpush1.msra.mxu0 0.0
  %2264 = vmatprep.subr.mxu0 0.0
  %2265 = vmatpush1.msra.mxu0 0.0
  %2266 = vmatprep.subr.mxu0 0.0
  %2267 = vmatpush1.msra.mxu0 0.0
  %2268 = vmatprep.subr.mxu0 0.0
  %2269 = vmatpush1.msra.mxu0 0.0
  %2270 = vmatprep.subr.mxu0 0.0
  %2271 = vmatpush1.msra.mxu0 0.0
  %2272 = vmatprep.subr.mxu0 0.0
  %2273 = vmatpush1.msra.mxu0 0.0
  %2274 = vmatprep.subr.mxu0 0.0
  %2275 = vmatpush1.msra.mxu0 0.0
  %2276 = vmatprep.subr.mxu0 0.0
  %2277 = vmatpush1.msra.mxu0 0.0
  %2278 = vmatprep.subr.mxu0 0.0
  %2279 = vmatpush1.msra.mxu0 0.0
  %2280 = vmatprep.subr.mxu0 0.0
  %2281 = vmatpush1.msra.mxu0 0.0
  %2282 = vmatprep.subr.mxu0 0.0
  %2283 = vmatpush1.msra.mxu0 0.0
  %2284 = vmatprep.subr.mxu0 0.0
  %2285 = vmatpush1.msra.mxu0 0.0
  %2286 = vmatprep.subr.mxu0 0.0
  %2287 = vmatpush1.msra.mxu0 0.0
  %2288 = vmatprep.subr.mxu0 0.0
  %2289 = vmatpush1.msra.mxu0 0.0
  %2290 = vmatprep.subr.mxu0 0.0
  %2291 = vmatpush1.msra.mxu0 0.0
  %2292 = vmatprep.subr.mxu0 0.0
  %2293 = vmatpush1.msra.mxu0 0.0
  %2294 = vmatprep.subr.mxu0 0.0
  %2295 = vmatpush1.msra.mxu0 0.0
  %2296 = vmatprep.subr.mxu0 0.0
  %2297 = vmatpush1.msra.mxu0 0.0
  %2298 = vmatprep.subr.mxu0 0.0
  %2299 = vmatpush1.msra.mxu0 0.0
  %2300 = vmatprep.subr.mxu0 0.0
  %2301 = vmatpush1.msra.mxu0 0.0
  %2302 = vmatprep.subr.mxu0 0.0
  %2303 = vmatpush1.msra.mxu0 0.0
  %2304 = vmatprep.subr.mxu0 0.0
  %2305 = vmatpush1.msra.mxu0 0.0
  %2306 = vmatprep.subr.mxu0 0.0
  %2307 = vmatpush1.msra.mxu0 0.0
  %2308 = vmatprep.subr.mxu0 0.0
  %2309 = vmatpush1.msra.mxu0 0.0
  %2310 = vmatprep.subr.mxu0 0.0
  %2311 = vmatpush1.msra.mxu0 0.0
  %2312 = vmatprep.subr.mxu0 0.0
  %2313 = vmatpush1.msra.mxu0 0.0
  %2314 = vmatprep.subr.mxu0 0.0
  %2315 = vmatpush1.msra.mxu0 0.0
  %2316 = vmatprep.subr.mxu0 0.0
  %2317 = vmatpush1.msra.mxu0 0.0
  %2318 = vmatprep.mubr.f32.mxu0 0.0
  %2319 = vmatmul.mubr.f32.gmra.mrb[0].mxu0 %v2249
  %v2320 = vpop.f32.mrb[0].mxu0
  %v2321 = vadd.f32 0.0, %v2320
  %v2322 = vpop.f32.mrb[0].mxu0
  %2323 = vmatprep.mubr.f32.mxu0 0.0
  %2324 = vmatmul.mubr.f32.gmra.mrb[0].mxu0 %v2252
  %v2325 = vpop.f32.mrb[0].mxu0
  %v2326 = vadd.f32 0.0, %v2325
  %v2327 = vpop.f32.mrb[0].mxu0
  %2328 = vdwg.mxu0
  %v2330 = vsel %vm123, %v2040, 0
  %v2333 = vsel %vm123, %v2045, 0
  %2335 = vmatprep.subr.mxu0 0.0
  %2336 = vmatpush1.msra.mxu0 %v1843
  %2337 = vmatprep.subr.mxu0 0.0
  %2338 = vmatpush1.msra.mxu0 %v1844
  %2339 = vmatprep.subr.mxu0 0.0
  %2340 = vmatpush1.msra.mxu0 0.0
  %2341 = vmatprep.subr.mxu0 0.0
  %2342 = vmatpush1.msra.mxu0 0.0
  %2343 = vmatprep.subr.mxu0 0.0
  %2344 = vmatpush1.msra.mxu0 0.0
  %2345 = vmatprep.subr.mxu0 0.0
  %2346 = vmatpush1.msra.mxu0 0.0
  %2347 = vmatprep.subr.mxu0 0.0
  %2348 = vmatpush1.msra.mxu0 0.0
  %2349 = vmatprep.subr.mxu0 0.0
  %2350 = vmatpush1.msra.mxu0 0.0
  %2351 = vmatprep.subr.mxu0 0.0
  %2352 = vmatpush1.msra.mxu0 0.0
  %2353 = vmatprep.subr.mxu0 0.0
  %2354 = vmatpush1.msra.mxu0 0.0
  %2355 = vmatprep.subr.mxu0 0.0
  %2356 = vmatpush1.msra.mxu0 0.0
  %2357 = vmatprep.subr.mxu0 0.0
  %2358 = vmatpush1.msra.mxu0 0.0
  %2359 = vmatprep.subr.mxu0 0.0
  %2360 = vmatpush1.msra.mxu0 0.0
  %2361 = vmatprep.subr.mxu0 0.0
  %2362 = vmatpush1.msra.mxu0 0.0
  %2363 = vmatprep.subr.mxu0 0.0
  %2364 = vmatpush1.msra.mxu0 0.0
  %2365 = vmatprep.subr.mxu0 0.0
  %2366 = vmatpush1.msra.mxu0 0.0
  %2367 = vmatprep.subr.mxu0 0.0
  %2368 = vmatpush1.msra.mxu0 0.0
  %2369 = vmatprep.subr.mxu0 0.0
  %2370 = vmatpush1.msra.mxu0 0.0
  %2371 = vmatprep.subr.mxu0 0.0
  %2372 = vmatpush1.msra.mxu0 0.0
  %2373 = vmatprep.subr.mxu0 0.0
  %2374 = vmatpush1.msra.mxu0 0.0
  %2375 = vmatprep.subr.mxu0 0.0
  %2376 = vmatpush1.msra.mxu0 0.0
  %2377 = vmatprep.subr.mxu0 0.0
  %2378 = vmatpush1.msra.mxu0 0.0
  %2379 = vmatprep.subr.mxu0 0.0
  %2380 = vmatpush1.msra.mxu0 0.0
  %2381 = vmatprep.subr.mxu0 0.0
  %2382 = vmatpush1.msra.mxu0 0.0
  %2383 = vmatprep.subr.mxu0 0.0
  %2384 = vmatpush1.msra.mxu0 0.0
  %2385 = vmatprep.subr.mxu0 0.0
  %2386 = vmatpush1.msra.mxu0 0.0
  %2387 = vmatprep.subr.mxu0 0.0
  %2388 = vmatpush1.msra.mxu0 0.0
  %2389 = vmatprep.subr.mxu0 0.0
  %2390 = vmatpush1.msra.mxu0 0.0
  %2391 = vmatprep.subr.mxu0 0.0
  %2392 = vmatpush1.msra.mxu0 0.0
  %2393 = vmatprep.subr.mxu0 0.0
  %2394 = vmatpush1.msra.mxu0 0.0
  %2395 = vmatprep.subr.mxu0 0.0
  %2396 = vmatpush1.msra.mxu0 0.0
  %2397 = vmatprep.subr.mxu0 0.0
  %2398 = vmatpush1.msra.mxu0 0.0
  %2399 = vmatprep.mubr.f32.mxu0 0.0
  %2400 = vmatmul.mubr.f32.gmra.mrb[0].mxu0 %v2330
  %v2401 = vpop.f32.mrb[0].mxu0
  %v2402 = vadd.f32 %v2321, %v2401
  %v2403 = vpop.f32.mrb[0].mxu0
  %2404 = vmatprep.mubr.f32.mxu0 0.0
  %2405 = vmatmul.mubr.f32.gmra.mrb[0].mxu0 %v2333
  %v2406 = vpop.f32.mrb[0].mxu0
  %v2407 = vadd.f32 %v2326, %v2406
  %v2408 = vpop.f32.mrb[0].mxu0
  %2409 = vdwg.mxu0
  %v2410 = vlaneseq
  %v2411 = vshrl.u32 %v2410, 7
  %v2412 = vsub.s32 0, %v2411
  %v2413 = vrot.slane %v1847, %v2412
  %v2414 = vadd.f32 %v2402, %v2413
  %v2415 = vadd.f32 %v2407, %v2413
  %v2416 = vadd.f32 %v2414, %v1751
  %v2417 = vadd.f32 %v2415, %v1752
  %v2418 = vsel %vm22, %v2416, 0.0
  %2419 = vadd.xlane.f32.xlu0 %v2418
  %v2420 = vpop.xlane.xlu0 %2419
  %v2421 = vsel %vm22, %v2417, 0.0
  %2422 = vadd.xlane.f32.xlu0 %v2421
  %v2423 = vpop.xlane.xlu0 %2422
  %v2424 = vmul.f32 %v2420, %v692
  %v2425 = vmul.f32 %v2423, %v692
  %v2426 = vsub.f32 %v2416, %v2424
  %v2427 = vsub.f32 %v2417, %v2425
  %v2428 = vmul.f32 %v2426, %v2426
  %v2429 = vmul.f32 %v2427, %v2427
  %v2430 = vsel %vm22, %v2428, 0.0
  %2431 = vadd.xlane.f32.xlu0 %v2430
  %v2432 = vpop.xlane.xlu0 %2431
  %v2433 = vsel %vm22, %v2429, 0.0
  %2434 = vadd.xlane.f32.xlu0 %v2433
  %v2435 = vpop.xlane.xlu0 %2434
  %v2436 = vmul.f32 %v2432, %v692
  %v2437 = vmul.f32 %v2435, %v692
  %v2438 = vadd.f32 %v2436, 1e-05
  %v2439 = vadd.f32 %v2437, 1e-05
  %v2440 = vrsqrt.pop %v2438
  %v2441 = vrsqrt.pop %v2439
  %v2442 = vmul.f32 %v2426, %v2440
  %v2443 = vmul.f32 %v2427, %v2441
  %v2444 = vlaneseq
  %v2445 = vshrl.u32 %v2444, 7
  %v2446 = vsub.s32 0, %v2445
  %v2447 = vrot.slane %v1848, %v2446
  %v2448 = vmul.f32 %v2442, %v2447
  %v2449 = vmul.f32 %v2443, %v2447
  %v2450 = vlaneseq
  %v2451 = vshrl.u32 %v2450, 7
  %v2452 = vsub.s32 0, %v2451
  %v2453 = vrot.slane %v1849, %v2452
  %v2454 = vadd.f32 %v2448, %v2453
  %v2455 = vadd.f32 %v2449, %v2453
  %v2456 = vld [vmem:[%s1 + $0x1a8] sm:$0xff]
  %v2457 = vld [vmem:[%s1 + $0x1b0] sm:$0xff]
  %v2458 = vld [vmem:[%s1 + $0x1b8] sm:$0xff]
  %v2459 = vld [vmem:[%s1 + $0x1c0] sm:$0xff]
  %v2460 = vld [vmem:[%s1 + $0x288] sm:$0x1]
  %v2461 = vlaneseq
  %v2462 = vshrl.u32 %v2461, 7
  %v2463 = vsub.s32 0, %v2462
  %v2464 = vrot.slane %v2460, %v2463
  %v2466 = vsel %vm22, %v2454, 0
  %v2469 = vsel %vm22, %v2455, 0
  %2471 = vmatprep.subr.mxu0 0.0
  %2472 = vmatpush1.msra.mxu0 %v2456
  %2473 = vmatprep.subr.mxu0 0.0
  %2474 = vmatpush1.msra.mxu0 %v2457
  %2475 = vmatprep.subr.mxu0 0.0
  %2476 = vmatpush1.msra.mxu0 %v2458
  %2477 = vmatprep.subr.mxu0 0.0
  %2478 = vmatpush1.msra.mxu0 %v2459
  %2479 = vmatprep.subr.mxu0 0.0
  %2480 = vmatpush1.msra.mxu0 0.0
  %2481 = vmatprep.subr.mxu0 0.0
  %2482 = vmatpush1.msra.mxu0 0.0
  %2483 = vmatprep.subr.mxu0 0.0
  %2484 = vmatpush1.msra.mxu0 0.0
  %2485 = vmatprep.subr.mxu0 0.0
  %2486 = vmatpush1.msra.mxu0 0.0
  %2487 = vmatprep.subr.mxu0 0.0
  %2488 = vmatpush1.msra.mxu0 0.0
  %2489 = vmatprep.subr.mxu0 0.0
  %2490 = vmatpush1.msra.mxu0 0.0
  %2491 = vmatprep.subr.mxu0 0.0
  %2492 = vmatpush1.msra.mxu0 0.0
  %2493 = vmatprep.subr.mxu0 0.0
  %2494 = vmatpush1.msra.mxu0 0.0
  %2495 = vmatprep.subr.mxu0 0.0
  %2496 = vmatpush1.msra.mxu0 0.0
  %2497 = vmatprep.subr.mxu0 0.0
  %2498 = vmatpush1.msra.mxu0 0.0
  %2499 = vmatprep.subr.mxu0 0.0
  %2500 = vmatpush1.msra.mxu0 0.0
  %2501 = vmatprep.subr.mxu0 0.0
  %2502 = vmatpush1.msra.mxu0 0.0
  %2503 = vmatprep.subr.mxu0 0.0
  %2504 = vmatpush1.msra.mxu0 0.0
  %2505 = vmatprep.subr.mxu0 0.0
  %2506 = vmatpush1.msra.mxu0 0.0
  %2507 = vmatprep.subr.mxu0 0.0
  %2508 = vmatpush1.msra.mxu0 0.0
  %2509 = vmatprep.subr.mxu0 0.0
  %2510 = vmatpush1.msra.mxu0 0.0
  %2511 = vmatprep.subr.mxu0 0.0
  %2512 = vmatpush1.msra.mxu0 0.0
  %2513 = vmatprep.subr.mxu0 0.0
  %2514 = vmatpush1.msra.mxu0 0.0
  %2515 = vmatprep.subr.mxu0 0.0
  %2516 = vmatpush1.msra.mxu0 0.0
  %2517 = vmatprep.subr.mxu0 0.0
  %2518 = vmatpush1.msra.mxu0 0.0
  %2519 = vmatprep.subr.mxu0 0.0
  %2520 = vmatpush1.msra.mxu0 0.0
  %2521 = vmatprep.subr.mxu0 0.0
  %2522 = vmatpush1.msra.mxu0 0.0
  %2523 = vmatprep.subr.mxu0 0.0
  %2524 = vmatpush1.msra.mxu0 0.0
  %2525 = vmatprep.subr.mxu0 0.0
  %2526 = vmatpush1.msra.mxu0 0.0
  %2527 = vmatprep.subr.mxu0 0.0
  %2528 = vmatpush1.msra.mxu0 0.0
  %2529 = vmatprep.subr.mxu0 0.0
  %2530 = vmatpush1.msra.mxu0 0.0
  %2531 = vmatprep.subr.mxu0 0.0
  %2532 = vmatpush1.msra.mxu0 0.0
  %2533 = vmatprep.subr.mxu0 0.0
  %2534 = vmatpush1.msra.mxu0 0.0
  %2535 = vmatprep.mubr.f32.mxu0 0.0
  %2536 = vmatmul.mubr.f32.gmra.mrb[0].mxu0 %v2466
  %v2537 = vpop.f32.mrb[0].mxu0
  %v2538 = vadd.f32 %v2464, %v2537
  %v2539 = vpop.f32.mrb[0].mxu0
  %2540 = vmatprep.mubr.f32.mxu0 0.0
  %2541 = vmatmul.mubr.f32.gmra.mrb[0].mxu0 %v2469
  %v2542 = vpop.f32.mrb[0].mxu0
  %v2543 = vadd.f32 %v2464, %v2542
  %v2544 = vpop.f32.mrb[0].mxu0
  %2545 = vdwg.mxu0
  %v2546 = vld [vmem:[%s1 + $0x1c8] sm:$0xff]
  %v2547 = vld [vmem:[%s1 + $0x1d0] sm:$0xff]
  %v2548 = vld [vmem:[%s1 + $0x1d8] sm:$0xff]
  %v2549 = vld [vmem:[%s1 + $0x1e0] sm:$0xff]
  %v2550 = vld [vmem:[%s1 + $0x290] sm:$0x1]
  %v2551 = vlaneseq
  %v2552 = vshrl.u32 %v2551, 7
  %v2553 = vsub.s32 0, %v2552
  %v2554 = vrot.slane %v2550, %v2553
  %2555 = vmatprep.subr.mxu0 0.0
  %2556 = vmatpush1.msra.mxu0 %v2546
  %2557 = vmatprep.subr.mxu0 0.0
  %2558 = vmatpush1.msra.mxu0 %v2547
  %2559 = vmatprep.subr.mxu0 0.0
  %2560 = vmatpush1.msra.mxu0 %v2548
  %2561 = vmatprep.subr.mxu0 0.0
  %2562 = vmatpush1.msra.mxu0 %v2549
  %2563 = vmatprep.subr.mxu0 0.0
  %2564 = vmatpush1.msra.mxu0 0.0
  %2565 = vmatprep.subr.mxu0 0.0
  %2566 = vmatpush1.msra.mxu0 0.0
  %2567 = vmatprep.subr.mxu0 0.0
  %2568 = vmatpush1.msra.mxu0 0.0
  %2569 = vmatprep.subr.mxu0 0.0
  %2570 = vmatpush1.msra.mxu0 0.0
  %2571 = vmatprep.subr.mxu0 0.0
  %2572 = vmatpush1.msra.mxu0 0.0
  %2573 = vmatprep.subr.mxu0 0.0
  %2574 = vmatpush1.msra.mxu0 0.0
  %2575 = vmatprep.subr.mxu0 0.0
  %2576 = vmatpush1.msra.mxu0 0.0
  %2577 = vmatprep.subr.mxu0 0.0
  %2578 = vmatpush1.msra.mxu0 0.0
  %2579 = vmatprep.subr.mxu0 0.0
  %2580 = vmatpush1.msra.mxu0 0.0
  %2581 = vmatprep.subr.mxu0 0.0
  %2582 = vmatpush1.msra.mxu0 0.0
  %2583 = vmatprep.subr.mxu0 0.0
  %2584 = vmatpush1.msra.mxu0 0.0
  %2585 = vmatprep.subr.mxu0 0.0
  %2586 = vmatpush1.msra.mxu0 0.0
  %2587 = vmatprep.subr.mxu0 0.0
  %2588 = vmatpush1.msra.mxu0 0.0
  %2589 = vmatprep.subr.mxu0 0.0
  %2590 = vmatpush1.msra.mxu0 0.0
  %2591 = vmatprep.subr.mxu0 0.0
  %2592 = vmatpush1.msra.mxu0 0.0
  %2593 = vmatprep.subr.mxu0 0.0
  %2594 = vmatpush1.msra.mxu0 0.0
  %2595 = vmatprep.subr.mxu0 0.0
  %2596 = vmatpush1.msra.mxu0 0.0
  %2597 = vmatprep.subr.mxu0 0.0
  %2598 = vmatpush1.msra.mxu0 0.0
  %2599 = vmatprep.subr.mxu0 0.0
  %2600 = vmatpush1.msra.mxu0 0.0
  %2601 = vmatprep.subr.mxu0 0.0
  %2602 = vmatpush1.msra.mxu0 0.0
  %2603 = vmatprep.subr.mxu0 0.0
  %2604 = vmatpush1.msra.mxu0 0.0
  %2605 = vmatprep.subr.mxu0 0.0
  %2606 = vmatpush1.msra.mxu0 0.0
  %2607 = vmatprep.subr.mxu0 0.0
  %2608 = vmatpush1.msra.mxu0 0.0
  %2609 = vmatprep.subr.mxu0 0.0
  %2610 = vmatpush1.msra.mxu0 0.0
  %2611 = vmatprep.subr.mxu0 0.0
  %2612 = vmatpush1.msra.mxu0 0.0
  %2613 = vmatprep.subr.mxu0 0.0
  %2614 = vmatpush1.msra.mxu0 0.0
  %2615 = vmatprep.subr.mxu0 0.0
  %2616 = vmatpush1.msra.mxu0 0.0
  %2617 = vmatprep.subr.mxu0 0.0
  %2618 = vmatpush1.msra.mxu0 0.0
  %2619 = vmatprep.mubr.f32.mxu0 0.0
  %2620 = vmatmul.mubr.f32.gmra.mrb[0].mxu0 %v828
  %v2621 = vpop.f32.mrb[0].mxu0
  %v2622 = vadd.f32 %v2554, %v2621
  %v2623 = vpop.f32.mrb[0].mxu0
  %2624 = vmatprep.mubr.f32.mxu0 0.0
  %2625 = vmatmul.mubr.f32.gmra.mrb[0].mxu0 %v830
  %v2626 = vpop.f32.mrb[0].mxu0
  %v2627 = vadd.f32 %v2554, %v2626
  %v2628 = vpop.f32.mrb[0].mxu0
  %2629 = vdwg.mxu0
  %v2630 = vld [vmem:[%s1 + $0x1e8] sm:$0xff]
  %v2631 = vld [vmem:[%s1 + $0x1f0] sm:$0xff]
  %v2632 = vld [vmem:[%s1 + $0x1f8] sm:$0xff]
  %v2633 = vld [vmem:[%s1 + $0x200] sm:$0xff]
  %v2634 = vld [vmem:[%s1 + $0x298] sm:$0x1]
  %v2635 = vld [vmem:[%s1 + $0x2a0] sm:$0x1]
  %v2636 = vld [vmem:[%s1 + $0x2a8] sm:$0x1]
  %v2638 = vsel %vm123, %v2538, 0
  %v2641 = vsel %vm123, %v2543, 0
  %v2644 = vsel %vm123, %v2622, 0
  %v2647 = vsel %vm123, %v2627, 0
  %2649 = vmatprep.subr.mxu0 0.0
  %2650 = vmatpush1.xpose.msra.mxu0 %v2644
  %2651 = vmatprep.subr.mxu0 0.0
  %2652 = vmatpush1.xpose.msra.mxu0 %v2647
  %2653 = vmatprep.subr.mxu0 0.0
  %2654 = vmatpush1.xpose.msra.mxu0 0.0
  %2655 = vmatprep.subr.mxu0 0.0
  %2656 = vmatpush1.xpose.msra.mxu0 0.0
  %2657 = vmatprep.subr.mxu0 0.0
  %2658 = vmatpush1.xpose.msra.mxu0 0.0
  %2659 = vmatprep.subr.mxu0 0.0
  %2660 = vmatpush1.xpose.msra.mxu0 0.0
  %2661 = vmatprep.subr.mxu0 0.0
  %2662 = vmatpush1.xpose.msra.mxu0 0.0
  %2663 = vmatprep.subr.mxu0 0.0
  %2664 = vmatpush1.xpose.msra.mxu0 0.0
  %2665 = vmatprep.subr.mxu0 0.0
  %2666 = vmatpush1.xpose.msra.mxu0 0.0
  %2667 = vmatprep.subr.mxu0 0.0
  %2668 = vmatpush1.xpose.msra.mxu0 0.0
  %2669 = vmatprep.subr.mxu0 0.0
  %2670 = vmatpush1.xpose.msra.mxu0 0.0
  %2671 = vmatprep.subr.mxu0 0.0
  %2672 = vmatpush1.xpose.msra.mxu0 0.0
  %2673 = vmatprep.subr.mxu0 0.0
  %2674 = vmatpush1.xpose.msra.mxu0 0.0
  %2675 = vmatprep.subr.mxu0 0.0
  %2676 = vmatpush1.xpose.msra.mxu0 0.0
  %2677 = vmatprep.subr.mxu0 0.0
  %2678 = vmatpush1.xpose.msra.mxu0 0.0
  %2679 = vmatprep.subr.mxu0 0.0
  %2680 = vmatpush1.xpose.msra.mxu0 0.0
  %2681 = vmatprep.subr.mxu0 0.0
  %2682 = vmatpush1.xpose.msra.mxu0 0.0
  %2683 = vmatprep.subr.mxu0 0.0
  %2684 = vmatpush1.xpose.msra.mxu0 0.0
  %2685 = vmatprep.subr.mxu0 0.0
  %2686 = vmatpush1.xpose.msra.mxu0 0.0
  %2687 = vmatprep.subr.mxu0 0.0
  %2688 = vmatpush1.xpose.msra.mxu0 0.0
  %2689 = vmatprep.subr.mxu0 0.0
  %2690 = vmatpush1.xpose.msra.mxu0 0.0
  %2691 = vmatprep.subr.mxu0 0.0
  %2692 = vmatpush1.xpose.msra.mxu0 0.0
  %2693 = vmatprep.subr.mxu0 0.0
  %2694 = vmatpush1.xpose.msra.mxu0 0.0
  %2695 = vmatprep.subr.mxu0 0.0
  %2696 = vmatpush1.xpose.msra.mxu0 0.0
  %2697 = vmatprep.subr.mxu0 0.0
  %2698 = vmatpush1.xpose.msra.mxu0 0.0
  %2699 = vmatprep.subr.mxu0 0.0
  %2700 = vmatpush1.xpose.msra.mxu0 0.0
  %2701 = vmatprep.subr.mxu0 0.0
  %2702 = vmatpush1.xpose.msra.mxu0 0.0
  %2703 = vmatprep.subr.mxu0 0.0
  %2704 = vmatpush1.xpose.msra.mxu0 0.0
  %2705 = vmatprep.subr.mxu0 0.0
  %2706 = vmatpush1.xpose.msra.mxu0 0.0
  %2707 = vmatprep.subr.mxu0 0.0
  %2708 = vmatpush1.xpose.msra.mxu0 0.0
  %2709 = vmatprep.subr.mxu0 0.0
  %2710 = vmatpush1.xpose.msra.mxu0 0.0
  %2711 = vmatprep.subr.mxu0 0.0
  %2712 = vmatpush1.xpose.msra.mxu0 0.0
  %2713 = vmatprep.mubr.f32.mxu0 0.0
  %2714 = vmatmul.mubr.f32.gmra.mrb[0].mxu0 %v2638
  %v2715 = vpop.f32.mrb[0].mxu0
  %v2716 = vadd.f32 %v915, %v2715
  %v2717 = vpop.f32.mrb[0].mxu0
  %2718 = vmatprep.mubr.f32.mxu0 0.0
  %2719 = vmatmul.mubr.f32.gmra.mrb[0].mxu0 %v2641
  %v2720 = vpop.f32.mrb[0].mxu0
  %v2721 = vadd.f32 %v917, %v2720
  %v2722 = vpop.f32.mrb[0].mxu0
  %2723 = vdwg.mxu0
  %v2724 = vsel %vm123, %v2716, -inf
  %2725 = vmax.xlane.f32.xlu0 %v2724
  %v2726 = vpop.xlane.xlu0 %2725
  %v2727 = vsel %vm123, %v2721, -inf
  %2728 = vmax.xlane.f32.xlu0 %v2727
  %v2729 = vpop.xlane.xlu0 %2728
  %v2730 = vsub.f32 %v2716, %v2726
  %v2731 = vsub.f32 %v2721, %v2729
  %v2732 = vmul.f32 %v2730, 1.442695
  %v2733 = vpow.pop %v2732
  %v2734 = vmul.f32 %v2731, 1.442695
  %v2735 = vpow.pop %v2734
  %v2736 = vsel %vm123, %v2733, 0.0
  %2737 = vadd.xlane.f32.xlu0 %v2736
  %v2738 = vpop.xlane.xlu0 %2737
  %v2739 = vsel %vm123, %v2735, 0.0
  %2740 = vadd.xlane.f32.xlu0 %v2739
  %v2741 = vpop.xlane.xlu0 %2740
  %v2742 = vrcp.pop %v2738
  %v2743 = vmul.f32 %v2733, %v2742
  %v2744 = vrcp.pop %v2741
  %v2745 = vmul.f32 %v2735, %v2744
  %2746 = vrot.lane.b32.xlu0 %v2622, 96
  %v2747 = vpop.permute.xlu0 %2746
  %2748 = vrot.lane.b32.xlu0 %v2627, 96
  %v2749 = vpop.permute.xlu0 %2748
  %v2753 = vsel %vm123, %v2743, 0
  %v2756 = vsel %vm123, %v2745, 0
  %2758 = vmatprep.subr.mxu0 0.0
  %2759 = vmatpush1.msra.mxu0 %v2747
  %2760 = vmatprep.subr.mxu0 0.0
  %2761 = vmatpush1.msra.mxu0 %v2749
  %2762 = vmatprep.subr.mxu0 0.0
  %2763 = vmatpush1.msra.mxu0 0.0
  %2764 = vmatprep.subr.mxu0 0.0
  %2765 = vmatpush1.msra.mxu0 0.0
  %2766 = vmatprep.subr.mxu0 0.0
  %2767 = vmatpush1.msra.mxu0 0.0
  %2768 = vmatprep.subr.mxu0 0.0
  %2769 = vmatpush1.msra.mxu0 0.0
  %2770 = vmatprep.subr.mxu0 0.0
  %2771 = vmatpush1.msra.mxu0 0.0
  %2772 = vmatprep.subr.mxu0 0.0
  %2773 = vmatpush1.msra.mxu0 0.0
  %2774 = vmatprep.subr.mxu0 0.0
  %2775 = vmatpush1.msra.mxu0 0.0
  %2776 = vmatprep.subr.mxu0 0.0
  %2777 = vmatpush1.msra.mxu0 0.0
  %2778 = vmatprep.subr.mxu0 0.0
  %2779 = vmatpush1.msra.mxu0 0.0
  %2780 = vmatprep.subr.mxu0 0.0
  %2781 = vmatpush1.msra.mxu0 0.0
  %2782 = vmatprep.subr.mxu0 0.0
  %2783 = vmatpush1.msra.mxu0 0.0
  %2784 = vmatprep.subr.mxu0 0.0
  %2785 = vmatpush1.msra.mxu0 0.0
  %2786 = vmatprep.subr.mxu0 0.0
  %2787 = vmatpush1.msra.mxu0 0.0
  %2788 = vmatprep.subr.mxu0 0.0
  %2789 = vmatpush1.msra.mxu0 0.0
  %2790 = vmatprep.subr.mxu0 0.0
  %2791 = vmatpush1.msra.mxu0 0.0
  %2792 = vmatprep.subr.mxu0 0.0
  %2793 = vmatpush1.msra.mxu0 0.0
  %2794 = vmatprep.subr.mxu0 0.0
  %2795 = vmatpush1.msra.mxu0 0.0
  %2796 = vmatprep.subr.mxu0 0.0
  %2797 = vmatpush1.msra.mxu0 0.0
  %2798 = vmatprep.subr.mxu0 0.0
  %2799 = vmatpush1.msra.mxu0 0.0
  %2800 = vmatprep.subr.mxu0 0.0
  %2801 = vmatpush1.msra.mxu0 0.0
  %2802 = vmatprep.subr.mxu0 0.0
  %2803 = vmatpush1.msra.mxu0 0.0
  %2804 = vmatprep.subr.mxu0 0.0
  %2805 = vmatpush1.msra.mxu0 0.0
  %2806 = vmatprep.subr.mxu0 0.0
  %2807 = vmatpush1.msra.mxu0 0.0
  %2808 = vmatprep.subr.mxu0 0.0
  %2809 = vmatpush1.msra.mxu0 0.0
  %2810 = vmatprep.subr.mxu0 0.0
  %2811 = vmatpush1.msra.mxu0 0.0
  %2812 = vmatprep.subr.mxu0 0.0
  %2813 = vmatpush1.msra.mxu0 0.0
  %2814 = vmatprep.subr.mxu0 0.0
  %2815 = vmatpush1.msra.mxu0 0.0
  %2816 = vmatprep.subr.mxu0 0.0
  %2817 = vmatpush1.msra.mxu0 0.0
  %2818 = vmatprep.subr.mxu0 0.0
  %2819 = vmatpush1.msra.mxu0 0.0
  %2820 = vmatprep.subr.mxu0 0.0
  %2821 = vmatpush1.msra.mxu0 0.0
  %2822 = vmatprep.mubr.f32.mxu0 0.0
  %2823 = vmatmul.mubr.f32.gmra.mrb[0].mxu0 %v2753
  %v2824 = vpop.f32.mrb[0].mxu0
  %v2825 = vadd.f32 0.0, %v2824
  %v2826 = vpop.f32.mrb[0].mxu0
  %2827 = vmatprep.mubr.f32.mxu0 0.0
  %2828 = vmatmul.mubr.f32.gmra.mrb[0].mxu0 %v2756
  %v2829 = vpop.f32.mrb[0].mxu0
  %v2830 = vadd.f32 0.0, %v2829
  %v2831 = vpop.f32.mrb[0].mxu0
  %2832 = vdwg.mxu0
  %2833 = vrot.lane.b32.xlu0 %v2538, 112
  %v2834 = vpop.permute.xlu0 %2833
  %2835 = vrot.lane.b32.xlu0 %v2543, 112
  %v2836 = vpop.permute.xlu0 %2835
  %2837 = vrot.lane.b32.xlu0 %v2622, 112
  %v2838 = vpop.permute.xlu0 %2837
  %2839 = vrot.lane.b32.xlu0 %v2627, 112
  %v2840 = vpop.permute.xlu0 %2839
  %v2841 = vsel %vm123, %v2834, 0
  %v2843 = vsel %vm123, %v2836, 0
  %v2845 = vsel %vm123, %v2838, 0
  %v2847 = vsel %vm123, %v2840, 0
  %2849 = vmatprep.subr.mxu0 0.0
  %2850 = vmatpush1.xpose.msra.mxu0 %v2845
  %2851 = vmatprep.subr.mxu0 0.0
  %2852 = vmatpush1.xpose.msra.mxu0 %v2847
  %2853 = vmatprep.subr.mxu0 0.0
  %2854 = vmatpush1.xpose.msra.mxu0 0.0
  %2855 = vmatprep.subr.mxu0 0.0
  %2856 = vmatpush1.xpose.msra.mxu0 0.0
  %2857 = vmatprep.subr.mxu0 0.0
  %2858 = vmatpush1.xpose.msra.mxu0 0.0
  %2859 = vmatprep.subr.mxu0 0.0
  %2860 = vmatpush1.xpose.msra.mxu0 0.0
  %2861 = vmatprep.subr.mxu0 0.0
  %2862 = vmatpush1.xpose.msra.mxu0 0.0
  %2863 = vmatprep.subr.mxu0 0.0
  %2864 = vmatpush1.xpose.msra.mxu0 0.0
  %2865 = vmatprep.subr.mxu0 0.0
  %2866 = vmatpush1.xpose.msra.mxu0 0.0
  %2867 = vmatprep.subr.mxu0 0.0
  %2868 = vmatpush1.xpose.msra.mxu0 0.0
  %2869 = vmatprep.subr.mxu0 0.0
  %2870 = vmatpush1.xpose.msra.mxu0 0.0
  %2871 = vmatprep.subr.mxu0 0.0
  %2872 = vmatpush1.xpose.msra.mxu0 0.0
  %2873 = vmatprep.subr.mxu0 0.0
  %2874 = vmatpush1.xpose.msra.mxu0 0.0
  %2875 = vmatprep.subr.mxu0 0.0
  %2876 = vmatpush1.xpose.msra.mxu0 0.0
  %2877 = vmatprep.subr.mxu0 0.0
  %2878 = vmatpush1.xpose.msra.mxu0 0.0
  %2879 = vmatprep.subr.mxu0 0.0
  %2880 = vmatpush1.xpose.msra.mxu0 0.0
  %2881 = vmatprep.subr.mxu0 0.0
  %2882 = vmatpush1.xpose.msra.mxu0 0.0
  %2883 = vmatprep.subr.mxu0 0.0
  %2884 = vmatpush1.xpose.msra.mxu0 0.0
  %2885 = vmatprep.subr.mxu0 0.0
  %2886 = vmatpush1.xpose.msra.mxu0 0.0
  %2887 = vmatprep.subr.mxu0 0.0
  %2888 = vmatpush1.xpose.msra.mxu0 0.0
  %2889 = vmatprep.subr.mxu0 0.0
  %2890 = vmatpush1.xpose.msra.mxu0 0.0
  %2891 = vmatprep.subr.mxu0 0.0
  %2892 = vmatpush1.xpose.msra.mxu0 0.0
  %2893 = vmatprep.subr.mxu0 0.0
  %2894 = vmatpush1.xpose.msra.mxu0 0.0
  %2895 = vmatprep.subr.mxu0 0.0
  %2896 = vmatpush1.xpose.msra.mxu0 0.0
  %2897 = vmatprep.subr.mxu0 0.0
  %2898 = vmatpush1.xpose.msra.mxu0 0.0
  %2899 = vmatprep.subr.mxu0 0.0
  %2900 = vmatpush1.xpose.msra.mxu0 0.0
  %2901 = vmatprep.subr.mxu0 0.0
  %2902 = vmatpush1.xpose.msra.mxu0 0.0
  %2903 = vmatprep.subr.mxu0 0.0
  %2904 = vmatpush1.xpose.msra.mxu0 0.0
  %2905 = vmatprep.subr.mxu0 0.0
  %2906 = vmatpush1.xpose.msra.mxu0 0.0
  %2907 = vmatprep.subr.mxu0 0.0
  %2908 = vmatpush1.xpose.msra.mxu0 0.0
  %2909 = vmatprep.subr.mxu0 0.0
  %2910 = vmatpush1.xpose.msra.mxu0 0.0
  %2911 = vmatprep.subr.mxu0 0.0
  %2912 = vmatpush1.xpose.msra.mxu0 0.0
  %2913 = vmatprep.mubr.f32.mxu0 0.0
  %2914 = vmatmul.mubr.f32.gmra.mrb[0].mxu0 %v2841
  %v2915 = vpop.f32.mrb[0].mxu0
  %v2916 = vadd.f32 %v915, %v2915
  %v2917 = vpop.f32.mrb[0].mxu0
  %2918 = vmatprep.mubr.f32.mxu0 0.0
  %2919 = vmatmul.mubr.f32.gmra.mrb[0].mxu0 %v2843
  %v2920 = vpop.f32.mrb[0].mxu0
  %v2921 = vadd.f32 %v917, %v2920
  %v2922 = vpop.f32.mrb[0].mxu0
  %2923 = vdwg.mxu0
  %v2924 = vsel %vm123, %v2916, -inf
  %2925 = vmax.xlane.f32.xlu0 %v2924
  %v2926 = vpop.xlane.xlu0 %2925
  %v2927 = vsel %vm123, %v2921, -inf
  %2928 = vmax.xlane.f32.xlu0 %v2927
  %v2929 = vpop.xlane.xlu0 %2928
  %v2930 = vsub.f32 %v2916, %v2926
  %v2931 = vsub.f32 %v2921, %v2929
  %v2932 = vmul.f32 %v2930, 1.442695
  %v2933 = vpow.pop %v2932
  %v2934 = vmul.f32 %v2931, 1.442695
  %v2935 = vpow.pop %v2934
  %v2936 = vsel %vm123, %v2933, 0.0
  %2937 = vadd.xlane.f32.xlu0 %v2936
  %v2938 = vpop.xlane.xlu0 %2937
  %v2939 = vsel %vm123, %v2935, 0.0
  %2940 = vadd.xlane.f32.xlu0 %v2939
  %v2941 = vpop.xlane.xlu0 %2940
  %v2942 = vrcp.pop %v2938
  %v2943 = vmul.f32 %v2933, %v2942
  %v2944 = vrcp.pop %v2941
  %v2945 = vmul.f32 %v2935, %v2944
  %2946 = vrot.lane.b32.xlu0 %v2622, 80
  %v2947 = vpop.permute.xlu0 %2946
  %2948 = vrot.lane.b32.xlu0 %v2627, 80
  %v2949 = vpop.permute.xlu0 %2948
  %v2953 = vsel %vm123, %v2943, 0
  %v2956 = vsel %vm123, %v2945, 0
  %2958 = vmatprep.subr.mxu0 0.0
  %2959 = vmatpush1.msra.mxu0 %v2947
  %2960 = vmatprep.subr.mxu0 0.0
  %2961 = vmatpush1.msra.mxu0 %v2949
  %2962 = vmatprep.subr.mxu0 0.0
  %2963 = vmatpush1.msra.mxu0 0.0
  %2964 = vmatprep.subr.mxu0 0.0
  %2965 = vmatpush1.msra.mxu0 0.0
  %2966 = vmatprep.subr.mxu0 0.0
  %2967 = vmatpush1.msra.mxu0 0.0
  %2968 = vmatprep.subr.mxu0 0.0
  %2969 = vmatpush1.msra.mxu0 0.0
  %2970 = vmatprep.subr.mxu0 0.0
  %2971 = vmatpush1.msra.mxu0 0.0
  %2972 = vmatprep.subr.mxu0 0.0
  %2973 = vmatpush1.msra.mxu0 0.0
  %2974 = vmatprep.subr.mxu0 0.0
  %2975 = vmatpush1.msra.mxu0 0.0
  %2976 = vmatprep.subr.mxu0 0.0
  %2977 = vmatpush1.msra.mxu0 0.0
  %2978 = vmatprep.subr.mxu0 0.0
  %2979 = vmatpush1.msra.mxu0 0.0
  %2980 = vmatprep.subr.mxu0 0.0
  %2981 = vmatpush1.msra.mxu0 0.0
  %2982 = vmatprep.subr.mxu0 0.0
  %2983 = vmatpush1.msra.mxu0 0.0
  %2984 = vmatprep.subr.mxu0 0.0
  %2985 = vmatpush1.msra.mxu0 0.0
  %2986 = vmatprep.subr.mxu0 0.0
  %2987 = vmatpush1.msra.mxu0 0.0
  %2988 = vmatprep.subr.mxu0 0.0
  %2989 = vmatpush1.msra.mxu0 0.0
  %2990 = vmatprep.subr.mxu0 0.0
  %2991 = vmatpush1.msra.mxu0 0.0
  %2992 = vmatprep.subr.mxu0 0.0
  %2993 = vmatpush1.msra.mxu0 0.0
  %2994 = vmatprep.subr.mxu0 0.0
  %2995 = vmatpush1.msra.mxu0 0.0
  %2996 = vmatprep.subr.mxu0 0.0
  %2997 = vmatpush1.msra.mxu0 0.0
  %2998 = vmatprep.subr.mxu0 0.0
  %2999 = vmatpush1.msra.mxu0 0.0
  %3000 = vmatprep.subr.mxu0 0.0
  %3001 = vmatpush1.msra.mxu0 0.0
  %3002 = vmatprep.subr.mxu0 0.0
  %3003 = vmatpush1.msra.mxu0 0.0
  %3004 = vmatprep.subr.mxu0 0.0
  %3005 = vmatpush1.msra.mxu0 0.0
  %3006 = vmatprep.subr.mxu0 0.0
  %3007 = vmatpush1.msra.mxu0 0.0
  %3008 = vmatprep.subr.mxu0 0.0
  %3009 = vmatpush1.msra.mxu0 0.0
  %3010 = vmatprep.subr.mxu0 0.0
  %3011 = vmatpush1.msra.mxu0 0.0
  %3012 = vmatprep.subr.mxu0 0.0
  %3013 = vmatpush1.msra.mxu0 0.0
  %3014 = vmatprep.subr.mxu0 0.0
  %3015 = vmatpush1.msra.mxu0 0.0
  %3016 = vmatprep.subr.mxu0 0.0
  %3017 = vmatpush1.msra.mxu0 0.0
  %3018 = vmatprep.subr.mxu0 0.0
  %3019 = vmatpush1.msra.mxu0 0.0
  %3020 = vmatprep.subr.mxu0 0.0
  %3021 = vmatpush1.msra.mxu0 0.0
  %3022 = vmatprep.mubr.f32.mxu0 0.0
  %3023 = vmatmul.mubr.f32.gmra.mrb[0].mxu0 %v2953
  %v3024 = vpop.f32.mrb[0].mxu0
  %v3025 = vadd.f32 0.0, %v3024
  %v3026 = vpop.f32.mrb[0].mxu0
  %3027 = vmatprep.mubr.f32.mxu0 0.0
  %3028 = vmatmul.mubr.f32.gmra.mrb[0].mxu0 %v2956
  %v3029 = vpop.f32.mrb[0].mxu0
  %v3030 = vadd.f32 0.0, %v3029
  %v3031 = vpop.f32.mrb[0].mxu0
  %3032 = vdwg.mxu0
  %v3034 = vsel %vm123, %v3025, 0
  %v3037 = vsel %vm123, %v3030, 0
  %3039 = vmatprep.subr.mxu0 0.0
  %3040 = vmatpush1.msra.mxu0 %v2632
  %3041 = vmatprep.subr.mxu0 0.0
  %3042 = vmatpush1.msra.mxu0 %v2633
  %3043 = vmatprep.subr.mxu0 0.0
  %3044 = vmatpush1.msra.mxu0 0.0
  %3045 = vmatprep.subr.mxu0 0.0
  %3046 = vmatpush1.msra.mxu0 0.0
  %3047 = vmatprep.subr.mxu0 0.0
  %3048 = vmatpush1.msra.mxu0 0.0
  %3049 = vmatprep.subr.mxu0 0.0
  %3050 = vmatpush1.msra.mxu0 0.0
  %3051 = vmatprep.subr.mxu0 0.0
  %3052 = vmatpush1.msra.mxu0 0.0
  %3053 = vmatprep.subr.mxu0 0.0
  %3054 = vmatpush1.msra.mxu0 0.0
  %3055 = vmatprep.subr.mxu0 0.0
  %3056 = vmatpush1.msra.mxu0 0.0
  %3057 = vmatprep.subr.mxu0 0.0
  %3058 = vmatpush1.msra.mxu0 0.0
  %3059 = vmatprep.subr.mxu0 0.0
  %3060 = vmatpush1.msra.mxu0 0.0
  %3061 = vmatprep.subr.mxu0 0.0
  %3062 = vmatpush1.msra.mxu0 0.0
  %3063 = vmatprep.subr.mxu0 0.0
  %3064 = vmatpush1.msra.mxu0 0.0
  %3065 = vmatprep.subr.mxu0 0.0
  %3066 = vmatpush1.msra.mxu0 0.0
  %3067 = vmatprep.subr.mxu0 0.0
  %3068 = vmatpush1.msra.mxu0 0.0
  %3069 = vmatprep.subr.mxu0 0.0
  %3070 = vmatpush1.msra.mxu0 0.0
  %3071 = vmatprep.subr.mxu0 0.0
  %3072 = vmatpush1.msra.mxu0 0.0
  %3073 = vmatprep.subr.mxu0 0.0
  %3074 = vmatpush1.msra.mxu0 0.0
  %3075 = vmatprep.subr.mxu0 0.0
  %3076 = vmatpush1.msra.mxu0 0.0
  %3077 = vmatprep.subr.mxu0 0.0
  %3078 = vmatpush1.msra.mxu0 0.0
  %3079 = vmatprep.subr.mxu0 0.0
  %3080 = vmatpush1.msra.mxu0 0.0
  %3081 = vmatprep.subr.mxu0 0.0
  %3082 = vmatpush1.msra.mxu0 0.0
  %3083 = vmatprep.subr.mxu0 0.0
  %3084 = vmatpush1.msra.mxu0 0.0
  %3085 = vmatprep.subr.mxu0 0.0
  %3086 = vmatpush1.msra.mxu0 0.0
  %3087 = vmatprep.subr.mxu0 0.0
  %3088 = vmatpush1.msra.mxu0 0.0
  %3089 = vmatprep.subr.mxu0 0.0
  %3090 = vmatpush1.msra.mxu0 0.0
  %3091 = vmatprep.subr.mxu0 0.0
  %3092 = vmatpush1.msra.mxu0 0.0
  %3093 = vmatprep.subr.mxu0 0.0
  %3094 = vmatpush1.msra.mxu0 0.0
  %3095 = vmatprep.subr.mxu0 0.0
  %3096 = vmatpush1.msra.mxu0 0.0
  %3097 = vmatprep.subr.mxu0 0.0
  %3098 = vmatpush1.msra.mxu0 0.0
  %3099 = vmatprep.subr.mxu0 0.0
  %3100 = vmatpush1.msra.mxu0 0.0
  %3101 = vmatprep.subr.mxu0 0.0
  %3102 = vmatpush1.msra.mxu0 0.0
  %3103 = vmatprep.mubr.f32.mxu0 0.0
  %3104 = vmatmul.mubr.f32.gmra.mrb[0].mxu0 %v3034
  %v3105 = vpop.f32.mrb[0].mxu0
  %v3106 = vadd.f32 0.0, %v3105
  %v3107 = vpop.f32.mrb[0].mxu0
  %3108 = vmatprep.mubr.f32.mxu0 0.0
  %3109 = vmatmul.mubr.f32.gmra.mrb[0].mxu0 %v3037
  %v3110 = vpop.f32.mrb[0].mxu0
  %v3111 = vadd.f32 0.0, %v3110
  %v3112 = vpop.f32.mrb[0].mxu0
  %3113 = vdwg.mxu0
  %v3115 = vsel %vm123, %v2825, 0
  %v3118 = vsel %vm123, %v2830, 0
  %3120 = vmatprep.subr.mxu0 0.0
  %3121 = vmatpush1.msra.mxu0 %v2630
  %3122 = vmatprep.subr.mxu0 0.0
  %3123 = vmatpush1.msra.mxu0 %v2631
  %3124 = vmatprep.subr.mxu0 0.0
  %3125 = vmatpush1.msra.mxu0 0.0
  %3126 = vmatprep.subr.mxu0 0.0
  %3127 = vmatpush1.msra.mxu0 0.0
  %3128 = vmatprep.subr.mxu0 0.0
  %3129 = vmatpush1.msra.mxu0 0.0
  %3130 = vmatprep.subr.mxu0 0.0
  %3131 = vmatpush1.msra.mxu0 0.0
  %3132 = vmatprep.subr.mxu0 0.0
  %3133 = vmatpush1.msra.mxu0 0.0
  %3134 = vmatprep.subr.mxu0 0.0
  %3135 = vmatpush1.msra.mxu0 0.0
  %3136 = vmatprep.subr.mxu0 0.0
  %3137 = vmatpush1.msra.mxu0 0.0
  %3138 = vmatprep.subr.mxu0 0.0
  %3139 = vmatpush1.msra.mxu0 0.0
  %3140 = vmatprep.subr.mxu0 0.0
  %3141 = vmatpush1.msra.mxu0 0.0
  %3142 = vmatprep.subr.mxu0 0.0
  %3143 = vmatpush1.msra.mxu0 0.0
  %3144 = vmatprep.subr.mxu0 0.0
  %3145 = vmatpush1.msra.mxu0 0.0
  %3146 = vmatprep.subr.mxu0 0.0
  %3147 = vmatpush1.msra.mxu0 0.0
  %3148 = vmatprep.subr.mxu0 0.0
  %3149 = vmatpush1.msra.mxu0 0.0
  %3150 = vmatprep.subr.mxu0 0.0
  %3151 = vmatpush1.msra.mxu0 0.0
  %3152 = vmatprep.subr.mxu0 0.0
  %3153 = vmatpush1.msra.mxu0 0.0
  %3154 = vmatprep.subr.mxu0 0.0
  %3155 = vmatpush1.msra.mxu0 0.0
  %3156 = vmatprep.subr.mxu0 0.0
  %3157 = vmatpush1.msra.mxu0 0.0
  %3158 = vmatprep.subr.mxu0 0.0
  %3159 = vmatpush1.msra.mxu0 0.0
  %3160 = vmatprep.subr.mxu0 0.0
  %3161 = vmatpush1.msra.mxu0 0.0
  %3162 = vmatprep.subr.mxu0 0.0
  %3163 = vmatpush1.msra.mxu0 0.0
  %3164 = vmatprep.subr.mxu0 0.0
  %3165 = vmatpush1.msra.mxu0 0.0
  %3166 = vmatprep.subr.mxu0 0.0
  %3167 = vmatpush1.msra.mxu0 0.0
  %3168 = vmatprep.subr.mxu0 0.0
  %3169 = vmatpush1.msra.mxu0 0.0
  %3170 = vmatprep.subr.mxu0 0.0
  %3171 = vmatpush1.msra.mxu0 0.0
  %3172 = vmatprep.subr.mxu0 0.0
  %3173 = vmatpush1.msra.mxu0 0.0
  %3174 = vmatprep.subr.mxu0 0.0
  %3175 = vmatpush1.msra.mxu0 0.0
  %3176 = vmatprep.subr.mxu0 0.0
  %3177 = vmatpush1.msra.mxu0 0.0
  %3178 = vmatprep.subr.mxu0 0.0
  %3179 = vmatpush1.msra.mxu0 0.0
  %3180 = vmatprep.subr.mxu0 0.0
  %3181 = vmatpush1.msra.mxu0 0.0
  %3182 = vmatprep.subr.mxu0 0.0
  %3183 = vmatpush1.msra.mxu0 0.0
  %3184 = vmatprep.mubr.f32.mxu0 0.0
  %3185 = vmatmul.mubr.f32.gmra.mrb[0].mxu0 %v3115
  %v3186 = vpop.f32.mrb[0].mxu0
  %v3187 = vadd.f32 %v3106, %v3186
  %v3188 = vpop.f32.mrb[0].mxu0
  %3189 = vmatprep.mubr.f32.mxu0 0.0
  %3190 = vmatmul.mubr.f32.gmra.mrb[0].mxu0 %v3118
  %v3191 = vpop.f32.mrb[0].mxu0
  %v3192 = vadd.f32 %v3111, %v3191
  %v3193 = vpop.f32.mrb[0].mxu0
  %3194 = vdwg.mxu0
  %v3195 = vlaneseq
  %v3196 = vshrl.u32 %v3195, 7
  %v3197 = vsub.s32 0, %v3196
  %v3198 = vrot.slane %v2634, %v3197
  %v3199 = vadd.f32 %v3187, %v3198
  %v3200 = vadd.f32 %v3192, %v3198
  %v3201 = vadd.f32 %v3199, %v2454
  %v3202 = vadd.f32 %v3200, %v2455
  %v3203 = vsel %vm22, %v3201, 0.0
  %3204 = vadd.xlane.f32.xlu0 %v3203
  %v3205 = vpop.xlane.xlu0 %3204
  %v3206 = vsel %vm22, %v3202, 0.0
  %3207 = vadd.xlane.f32.xlu0 %v3206
  %v3208 = vpop.xlane.xlu0 %3207
  %v3209 = vmul.f32 %v3205, %v692
  %v3210 = vmul.f32 %v3208, %v692
  %v3211 = vsub.f32 %v3201, %v3209
  %v3212 = vsub.f32 %v3202, %v3210
  %v3213 = vmul.f32 %v3211, %v3211
  %v3214 = vmul.f32 %v3212, %v3212
  %v3215 = vsel %vm22, %v3213, 0.0
  %3216 = vadd.xlane.f32.xlu0 %v3215
  %v3217 = vpop.xlane.xlu0 %3216
  %v3218 = vsel %vm22, %v3214, 0.0
  %3219 = vadd.xlane.f32.xlu0 %v3218
  %v3220 = vpop.xlane.xlu0 %3219
  %v3221 = vmul.f32 %v3217, %v692
  %v3222 = vmul.f32 %v3220, %v692
  %v3223 = vadd.f32 %v3221, 1e-05
  %v3224 = vadd.f32 %v3222, 1e-05
  %v3225 = vrsqrt.pop %v3223
  %v3226 = vrsqrt.pop %v3224
  %v3227 = vmul.f32 %v3211, %v3225
  %v3228 = vmul.f32 %v3212, %v3226
  %v3229 = vlaneseq
  %v3230 = vshrl.u32 %v3229, 7
  %v3231 = vsub.s32 0, %v3230
  %v3232 = vrot.slane %v2635, %v3231
  %v3233 = vmul.f32 %v3227, %v3232
  %v3234 = vmul.f32 %v3228, %v3232
  %v3235 = vlaneseq
  %v3236 = vshrl.u32 %v3235, 7
  %v3237 = vsub.s32 0, %v3236
  %v3238 = vrot.slane %v2636, %v3237
  %v3239 = vadd.f32 %v3233, %v3238
  %v3240 = vadd.f32 %v3234, %v3238
  %v3241 = vld [vmem:[%s1 + $0x208] sm:$0xff]
  %v3242 = vld [vmem:[%s1 + $0x210] sm:$0xff]
  %v3243 = vld [vmem:[%s1 + $0x218] sm:$0xff]
  %v3244 = vld [vmem:[%s1 + $0x220] sm:$0xff]
  %v3245 = vld [vmem:[%s1 + $0x2b0] sm:$0x1]
  %v3246 = vlaneseq
  %v3247 = vshrl.u32 %v3246, 7
  %v3248 = vsub.s32 0, %v3247
  %v3249 = vrot.slane %v3245, %v3248
  %v3251 = vsel %vm22, %v3239, 0
  %v3254 = vsel %vm22, %v3240, 0
  %3256 = vmatprep.subr.mxu0 0.0
  %3257 = vmatpush1.msra.mxu0 %v3241
  %3258 = vmatprep.subr.mxu0 0.0
  %3259 = vmatpush1.msra.mxu0 %v3242
  %3260 = vmatprep.subr.mxu0 0.0
  %3261 = vmatpush1.msra.mxu0 %v3243
  %3262 = vmatprep.subr.mxu0 0.0
  %3263 = vmatpush1.msra.mxu0 %v3244
  %3264 = vmatprep.subr.mxu0 0.0
  %3265 = vmatpush1.msra.mxu0 0.0
  %3266 = vmatprep.subr.mxu0 0.0
  %3267 = vmatpush1.msra.mxu0 0.0
  %3268 = vmatprep.subr.mxu0 0.0
  %3269 = vmatpush1.msra.mxu0 0.0
  %3270 = vmatprep.subr.mxu0 0.0
  %3271 = vmatpush1.msra.mxu0 0.0
  %3272 = vmatprep.subr.mxu0 0.0
  %3273 = vmatpush1.msra.mxu0 0.0
  %3274 = vmatprep.subr.mxu0 0.0
  %3275 = vmatpush1.msra.mxu0 0.0
  %3276 = vmatprep.subr.mxu0 0.0
  %3277 = vmatpush1.msra.mxu0 0.0
  %3278 = vmatprep.subr.mxu0 0.0
  %3279 = vmatpush1.msra.mxu0 0.0
  %3280 = vmatprep.subr.mxu0 0.0
  %3281 = vmatpush1.msra.mxu0 0.0
  %3282 = vmatprep.subr.mxu0 0.0
  %3283 = vmatpush1.msra.mxu0 0.0
  %3284 = vmatprep.subr.mxu0 0.0
  %3285 = vmatpush1.msra.mxu0 0.0
  %3286 = vmatprep.subr.mxu0 0.0
  %3287 = vmatpush1.msra.mxu0 0.0
  %3288 = vmatprep.subr.mxu0 0.0
  %3289 = vmatpush1.msra.mxu0 0.0
  %3290 = vmatprep.subr.mxu0 0.0
  %3291 = vmatpush1.msra.mxu0 0.0
  %3292 = vmatprep.subr.mxu0 0.0
  %3293 = vmatpush1.msra.mxu0 0.0
  %3294 = vmatprep.subr.mxu0 0.0
  %3295 = vmatpush1.msra.mxu0 0.0
  %3296 = vmatprep.subr.mxu0 0.0
  %3297 = vmatpush1.msra.mxu0 0.0
  %3298 = vmatprep.subr.mxu0 0.0
  %3299 = vmatpush1.msra.mxu0 0.0
  %3300 = vmatprep.subr.mxu0 0.0
  %3301 = vmatpush1.msra.mxu0 0.0
  %3302 = vmatprep.subr.mxu0 0.0
  %3303 = vmatpush1.msra.mxu0 0.0
  %3304 = vmatprep.subr.mxu0 0.0
  %3305 = vmatpush1.msra.mxu0 0.0
  %3306 = vmatprep.subr.mxu0 0.0
  %3307 = vmatpush1.msra.mxu0 0.0
  %3308 = vmatprep.subr.mxu0 0.0
  %3309 = vmatpush1.msra.mxu0 0.0
  %3310 = vmatprep.subr.mxu0 0.0
  %3311 = vmatpush1.msra.mxu0 0.0
  %3312 = vmatprep.subr.mxu0 0.0
  %3313 = vmatpush1.msra.mxu0 0.0
  %3314 = vmatprep.subr.mxu0 0.0
  %3315 = vmatpush1.msra.mxu0 0.0
  %3316 = vmatprep.subr.mxu0 0.0
  %3317 = vmatpush1.msra.mxu0 0.0
  %3318 = vmatprep.subr.mxu0 0.0
  %3319 = vmatpush1.msra.mxu0 0.0
  %3320 = vmatprep.mubr.f32.mxu0 0.0
  %3321 = vmatmul.mubr.f32.gmra.mrb[0].mxu0 %v3251
  %v3322 = vpop.f32.mrb[0].mxu0
  %v3323 = vadd.f32 %v3249, %v3322
  %v3324 = vpop.f32.mrb[0].mxu0
  %3325 = vmatprep.mubr.f32.mxu0 0.0
  %3326 = vmatmul.mubr.f32.gmra.mrb[0].mxu0 %v3254
  %v3327 = vpop.f32.mrb[0].mxu0
  %v3328 = vadd.f32 %v3249, %v3327
  %v3329 = vpop.f32.mrb[0].mxu0
  %3330 = vdwg.mxu0
  %v3331 = vmax.f32 %v3323, 0.0
  %v3332 = vmax.f32 %v3328, 0.0
  %v3333 = vld [vmem:[%s1 + $0x228] sm:$0xff]
  %v3334 = vld [vmem:[%s1 + $0x230] sm:$0xff]
  %v3335 = vld [vmem:[%s1 + $0x238] sm:$0xff]
  %v3336 = vld [vmem:[%s1 + $0x240] sm:$0xff]
  %v3337 = vld [vmem:[%s1 + $0x248] sm:$0xff]
  %v3338 = vld [vmem:[%s1 + $0x250] sm:$0xff]
  %v3339 = vld [vmem:[%s1 + $0x258] sm:$0xff]
  %v3340 = vld [vmem:[%s1 + $0x260] sm:$0xff]
  %v3341 = vld [vmem:[%s1 + $0x2b8] sm:$0x1]
  %v3342 = vlaneseq
  %v3343 = vshrl.u32 %v3342, 7
  %v3344 = vsub.s32 0, %v3343
  %v3345 = vrot.slane %v3341, %v3344
  %v3347 = vsel %vm1629, %v3331, 0
  %v3350 = vsel %vm1629, %v3332, 0
  %3352 = vmatprep.subr.mxu0 0.0
  %3353 = vmatpush1.msra.mxu0 %v3333
  %3354 = vmatprep.subr.mxu0 0.0
  %3355 = vmatpush1.msra.mxu0 %v3334
  %3356 = vmatprep.subr.mxu0 0.0
  %3357 = vmatpush1.msra.mxu0 %v3335
  %3358 = vmatprep.subr.mxu0 0.0
  %3359 = vmatpush1.msra.mxu0 %v3336
  %3360 = vmatprep.subr.mxu0 0.0
  %3361 = vmatpush1.msra.mxu0 %v3337
  %3362 = vmatprep.subr.mxu0 0.0
  %3363 = vmatpush1.msra.mxu0 %v3338
  %3364 = vmatprep.subr.mxu0 0.0
  %3365 = vmatpush1.msra.mxu0 %v3339
  %3366 = vmatprep.subr.mxu0 0.0
  %3367 = vmatpush1.msra.mxu0 %v3340
  %3368 = vmatprep.subr.mxu0 0.0
  %3369 = vmatpush1.msra.mxu0 0.0
  %3370 = vmatprep.subr.mxu0 0.0
  %3371 = vmatpush1.msra.mxu0 0.0
  %3372 = vmatprep.subr.mxu0 0.0
  %3373 = vmatpush1.msra.mxu0 0.0
  %3374 = vmatprep.subr.mxu0 0.0
  %3375 = vmatpush1.msra.mxu0 0.0
  %3376 = vmatprep.subr.mxu0 0.0
  %3377 = vmatpush1.msra.mxu0 0.0
  %3378 = vmatprep.subr.mxu0 0.0
  %3379 = vmatpush1.msra.mxu0 0.0
  %3380 = vmatprep.subr.mxu0 0.0
  %3381 = vmatpush1.msra.mxu0 0.0
  %3382 = vmatprep.subr.mxu0 0.0
  %3383 = vmatpush1.msra.mxu0 0.0
  %3384 = vmatprep.subr.mxu0 0.0
  %3385 = vmatpush1.msra.mxu0 0.0
  %3386 = vmatprep.subr.mxu0 0.0
  %3387 = vmatpush1.msra.mxu0 0.0
  %3388 = vmatprep.subr.mxu0 0.0
  %3389 = vmatpush1.msra.mxu0 0.0
  %3390 = vmatprep.subr.mxu0 0.0
  %3391 = vmatpush1.msra.mxu0 0.0
  %3392 = vmatprep.subr.mxu0 0.0
  %3393 = vmatpush1.msra.mxu0 0.0
  %3394 = vmatprep.subr.mxu0 0.0
  %3395 = vmatpush1.msra.mxu0 0.0
  %3396 = vmatprep.subr.mxu0 0.0
  %3397 = vmatpush1.msra.mxu0 0.0
  %3398 = vmatprep.subr.mxu0 0.0
  %3399 = vmatpush1.msra.mxu0 0.0
  %3400 = vmatprep.subr.mxu0 0.0
  %3401 = vmatpush1.msra.mxu0 0.0
  %3402 = vmatprep.subr.mxu0 0.0
  %3403 = vmatpush1.msra.mxu0 0.0
  %3404 = vmatprep.subr.mxu0 0.0
  %3405 = vmatpush1.msra.mxu0 0.0
  %3406 = vmatprep.subr.mxu0 0.0
  %3407 = vmatpush1.msra.mxu0 0.0
  %3408 = vmatprep.subr.mxu0 0.0
  %3409 = vmatpush1.msra.mxu0 0.0
  %3410 = vmatprep.subr.mxu0 0.0
  %3411 = vmatpush1.msra.mxu0 0.0
  %3412 = vmatprep.subr.mxu0 0.0
  %3413 = vmatpush1.msra.mxu0 0.0
  %3414 = vmatprep.subr.mxu0 0.0
  %3415 = vmatpush1.msra.mxu0 0.0
  %3416 = vmatprep.mubr.f32.mxu0 0.0
  %3417 = vmatmul.mubr.f32.gmra.mrb[0].mxu0 %v3347
  %v3418 = vpop.f32.mrb[0].mxu0
  %v3419 = vadd.f32 %v3345, %v3418
  %v3420 = vpop.f32.mrb[0].mxu0
  %3421 = vmatprep.mubr.f32.mxu0 0.0
  %3422 = vmatmul.mubr.f32.gmra.mrb[0].mxu0 %v3350
  %v3423 = vpop.f32.mrb[0].mxu0
  %v3424 = vadd.f32 %v3345, %v3423
  %v3425 = vpop.f32.mrb[0].mxu0
  %3426 = vdwg.mxu0
  %v3427 = vadd.f32 %v3419, %v3239
  %v3428 = vadd.f32 %v3424, %v3240
  %v3429 = vld [vmem:[%s1 + $0x2c0] sm:$0x1]
  %v3430 = vld [vmem:[%s1 + $0x2c8] sm:$0x1]
  %v3431 = vsel %vm22, %v3427, 0.0
  %3432 = vadd.xlane.f32.xlu0 %v3431
  %v3433 = vpop.xlane.xlu0 %3432
  %v3434 = vsel %vm22, %v3428, 0.0
  %3435 = vadd.xlane.f32.xlu0 %v3434
  %v3436 = vpop.xlane.xlu0 %3435
  %v3437 = vmul.f32 %v3433, %v692
  %v3438 = vmul.f32 %v3436, %v692
  %v3439 = vsub.f32 %v3427, %v3437
  %v3440 = vsub.f32 %v3428, %v3438
  %v3441 = vmul.f32 %v3439, %v3439
  %v3442 = vmul.f32 %v3440, %v3440
  %v3443 = vsel %vm22, %v3441, 0.0
  %3444 = vadd.xlane.f32.xlu0 %v3443
  %v3445 = vpop.xlane.xlu0 %3444
  %v3446 = vsel %vm22, %v3442, 0.0
  %3447 = vadd.xlane.f32.xlu0 %v3446
  %v3448 = vpop.xlane.xlu0 %3447
  %v3449 = vmul.f32 %v3445, %v692
  %v3450 = vmul.f32 %v3448, %v692
  %v3451 = vadd.f32 %v3449, 1e-05
  %v3452 = vadd.f32 %v3450, 1e-05
  %v3453 = vrsqrt.pop %v3451
  %v3454 = vrsqrt.pop %v3452
  %v3455 = vmul.f32 %v3439, %v3453
  %v3456 = vmul.f32 %v3440, %v3454
  %v3457 = vlaneseq
  %v3458 = vshrl.u32 %v3457, 7
  %v3459 = vsub.s32 0, %v3458
  %v3460 = vrot.slane %v3429, %v3459
  %v3461 = vmul.f32 %v3455, %v3460
  %v3462 = vmul.f32 %v3456, %v3460
  %v3463 = vlaneseq
  %v3464 = vshrl.u32 %v3463, 7
  %v3465 = vsub.s32 0, %v3464
  %v3466 = vrot.slane %v3430, %v3465
  %v3467 = vadd.f32 %v3461, %v3466
  %v3468 = vadd.f32 %v3462, %v3466
  %3469 = vst.msk [vmem:[%s2] sm:$0xff] %vm22, %v3467
  %3470 = vst.msk [vmem:[%s2 + $0x10] sm:$0xff] %vm22, %v3468
  %3471 = vrot.lane.b32.xlu0 %v226, 32
  %v3472 = vpop.permute.xlu0 %3471
  %3473 = vrot.lane.b32.xlu0 %v228, 32
  %v3474 = vpop.permute.xlu0 %3473
  %vm3477 = vcmask 392448
  %3478 = vst.msk [vmem:[%s2] sm:$0xff] %vm3477, %v3472
  %3479 = vst.msk [vmem:[%s2 + $0x10] sm:$0xff] %vm3477, %v3474
  %3480 = vrot.lane.b32.xlu0 %v426, 48
  %v3481 = vpop.permute.xlu0 %3480
  %3482 = vrot.lane.b32.xlu0 %v428, 48
  %v3483 = vpop.permute.xlu0 %3482
  %vm3486 = vcmask 523648
  %3487 = vst.msk [vmem:[%s2] sm:$0xff] %vm3486, %v3481
  %3488 = vst.msk [vmem:[%s2 + $0x10] sm:$0xff] %vm3486, %v3483
  %3489 = vrot.lane.b32.xlu0 %v1958, 64
  %v3490 = vpop.permute.xlu0 %3489
  %3491 = vrot.lane.b32.xlu0 %v1960, 64
  %v3492 = vpop.permute.xlu0 %3491
  %vm3495 = vcmask 654848
  %3496 = vst.msk [vmem:[%s2] sm:$0xff] %vm3495, %v3490
  %3497 = vst.msk [vmem:[%s2 + $0x10] sm:$0xff] %vm3495, %v3492
  %3498 = vrot.lane.b32.xlu0 %v2158, 80
  %v3499 = vpop.permute.xlu0 %3498
  %3500 = vrot.lane.b32.xlu0 %v2160, 80
  %v3501 = vpop.permute.xlu0 %3500
  %vm3504 = vcmask 786048
  %3505 = vst.msk [vmem:[%s2] sm:$0xff] %vm3504, %v3499
  %3506 = vst.msk [vmem:[%s2 + $0x10] sm:$0xff] %vm3504, %v3501
  %3507 = vrot.lane.b32.xlu0 %v1026, 96
  %v3508 = vpop.permute.xlu0 %3507
  %3509 = vrot.lane.b32.xlu0 %v1028, 96
  %v3510 = vpop.permute.xlu0 %3509
  %vm3513 = vcmask 917248
  %3514 = vst.msk [vmem:[%s2] sm:$0xff] %vm3513, %v3508
  %3515 = vst.msk [vmem:[%s2 + $0x10] sm:$0xff] %vm3513, %v3510
  %3516 = vrot.lane.b32.xlu0 %v1226, 112
  %v3517 = vpop.permute.xlu0 %3516
  %3518 = vrot.lane.b32.xlu0 %v1228, 112
  %v3519 = vpop.permute.xlu0 %3518
  %vm3522 = vcmask 1048448
  %3523 = vst.msk [vmem:[%s2] sm:$0xff] %vm3522, %v3517
  %3524 = vst.msk [vmem:[%s2 + $0x10] sm:$0xff] %vm3522, %v3519
  %3525 = vst.msk [vmem:[%s2 + $0x8] sm:$0xff] %vm123, %v2743
  %3526 = vst.msk [vmem:[%s2 + $0x18] sm:$0xff] %vm123, %v2745
  %3527 = vrot.lane.b32.xlu0 %v2943, 16
  %v3528 = vpop.permute.xlu0 %3527
  %3529 = vrot.lane.b32.xlu0 %v2945, 16
  %v3530 = vpop.permute.xlu0 %3529
  %vm3533 = vcmask 261248
  %3534 = vst.msk [vmem:[%s2 + $0x8] sm:$0xff] %vm3533, %v3528
  %3535 = vst.msk [vmem:[%s2 + $0x18] sm:$0xff] %vm3533, %v3530
  %vm3536 = vcmask 1047808
  %3537 = vst.msk [vmem:[%s2 + $0x8] sm:$0xff] %vm3536, 0.0
  %3538 = vst.msk [vmem:[%s2 + $0x18] sm:$0xff] %vm3536, 0.0
  // Predicated region
  $region10: #{decoder_forward.1} parent=0 // pred_check
    _
  $region11: #{decoder_forward.1} parent=0 // pred_check_branch
    %3540 = sbr.rel (0) target = $region13
  $region12: #{decoder_forward.1} parent=0 // pred_region
    _
  $region13: #{decoder_forward.1} parent=0 // pred_fallthru
    _
  // Predicated region
  $region14: #{decoder_forward.1} parent=0 // pred_check
    _
  $region15: #{decoder_forward.1} parent=0 // pred_check_branch
    %3542 = sbr.rel (0) target = $region17
  $region16: #{decoder_forward.1} parent=0 // pred_region
    _
  $region17: #{decoder_forward.1} parent=0 // pred_fallthru
    _

</llo_original>
